<compile_context>
chip_gen: v7x
topology: tpu7x:2x2x1
jax: 0.10.0
libtpu: 0.0.40
codegen_flags: <defaults>
</compile_context>

<pallas_src>
import jax
import jax.numpy as jnp
from jax.experimental import pallas as pl
from jax.experimental.pallas import tpu as pltpu


# ----------------------------------------------------------------------------
# Fused Pallas kernel: whole head_block for one image per grid step
# ----------------------------------------------------------------------------
def _make_head_block_kernel(Ho, Wo, Cin, Cout):
    M = Ho * Wo

    def kernel(p00_ref, p01_ref, p10_ref, p11_ref,
               w1_ref, b1_ref, w2_ref, wsc_ref, b2_ref,
               out_ref, y1pad_ref):
        phases = (p00_ref, p01_ref, p10_ref, p11_ref)

        # ---- stage 1: conv3x3/s2/p1 + BN + ReLU (im2col in-kernel) --------
        # Tap (kh,kw) of the stride-2 conv on the padded input is a contiguous
        # static slice of phase (kh&1, kw&1): x_pad[2i+kh, 2j+kw] ==
        # phase[kh&1, kw&1][i + kh//2, j + kw//2].
        acc1 = jnp.zeros((M, Cout), jnp.float32)
        for kh in range(3):
            for kw in range(3):
                pref = phases[(kh & 1) * 2 + (kw & 1)]
                oi, oj = kh >> 1, kw >> 1
                tap = pref[0, oi:oi + Ho, oj:oj + Wo, :].reshape(M, Cin)
                acc1 = acc1 + jnp.dot(tap, w1_ref[kh * 3 + kw],
                                      preferred_element_type=jnp.float32)
        y1 = jnp.maximum(acc1 + b1_ref[...], 0.0)            # (M, Cout) fp32

        # ---- keep y1 resident in VMEM (no HBM round trip) -----------------
        # Write it into a zero-padded scratch so the stride-1 3x3 taps of
        # stage 2 are again plain static slices.
        y1pad_ref[...] = jnp.zeros_like(y1pad_ref)
        y1pad_ref[1:Ho + 1, 1:Wo + 1, :] = y1.reshape(Ho, Wo, Cout)

        # ---- stage 2: conv3x3/s1/p1 + BN  +  1x1/s2 shortcut, add, ReLU ----
        # shortcut rows x[2i, 2j, :] == phase(1,1)[i, j, :]
        xs = phases[3][0, 0:Ho, 0:Wo, :].reshape(M, Cin)
        acc2 = jnp.dot(xs, wsc_ref[...], preferred_element_type=jnp.float32)
        for kh in range(3):
            for kw in range(3):
                tap = y1pad_ref[kh:kh + Ho, kw:kw + Wo, :].reshape(M, Cout)
                acc2 = acc2 + jnp.dot(tap, w2_ref[kh * 3 + kw],
                                      preferred_element_type=jnp.float32)
        out_ref[0] = jnp.maximum(acc2 + b2_ref[...], 0.0).astype(out_ref.dtype)

    return kernel


# ----------------------------------------------------------------------------
# Wrapper: BN/bias folding + stride-2 phase split + pallas_call
# ----------------------------------------------------------------------------
def head_block_forward(x_nchw, params, eps=1e-5):
    """NCHW in, NCHW out.  BN uses running stats (PyTorch eval semantics)."""
    x = jnp.transpose(x_nchw, (0, 2, 3, 1)).astype(jnp.float32)   # NHWC
    N, H, W, Cin = x.shape
    Cout = params["w1"].shape[0]
    Ho = (H - 1) // 2 + 1
    Wo = (W - 1) // 2 + 1
    PH, PW = Ho + 1, Wo + 1

    # Host prep touches only the raw input: zero-pad by 1 (plus bottom/right up
    # to an even extent) and split into the four stride-2 phases so in-kernel
    # gathers are contiguous static slices.
    xpad = jnp.zeros((N, 2 * PH, 2 * PW, Cin), jnp.float32)
    xpad = xpad.at[:, 1:H + 1, 1:W + 1, :].set(x)
    phases = [xpad[:, p::2, q::2, :] for p in (0, 1) for q in (0, 1)]

    # Fold conv bias + BN (running stats) into the matmul weights / one bias.
    s1 = params["bn1_gamma"] / jnp.sqrt(params["bn1_var"] + eps)
    s2 = params["bn2_gamma"] / jnp.sqrt(params["bn2_var"] + eps)
    w1 = jnp.transpose(params["w1"], (2, 3, 1, 0)).reshape(9, Cin, Cout) * s1
    b1 = ((params["b1"] - params["bn1_mean"]) * s1
          + params["bn1_beta"]).reshape(1, Cout)
    w2 = jnp.transpose(params["w2"], (2, 3, 1, 0)).reshape(9, Cout, Cout) * s2
    wsc = params["wsc"].reshape(Cout, Cin).T
    b2 = ((params["b2"] - params["bn2_mean"]) * s2 + params["bn2_beta"]
          + params["bsc"]).reshape(1, Cout)

    phase_spec = pl.BlockSpec((1, PH, PW, Cin), lambda b: (b, 0, 0, 0))
    kernel = _make_head_block_kernel(Ho, Wo, Cin, Cout)

    flops = 2 * N * Ho * Wo * Cout * (9 * Cin + 9 * Cout + Cin)
    bytes_accessed = 4 * (4 * N * PH * PW * Cin
                          + w1.size + w2.size + wsc.size + b1.size + b2.size
                          + N * Ho * Wo * Cout)

    out = pl.pallas_call(
        kernel,
        out_shape=jax.ShapeDtypeStruct((N, Ho * Wo, Cout), jnp.float32),
        grid_spec=pltpu.PrefetchScalarGridSpec(
            num_scalar_prefetch=0,
            grid=(N,),
            in_specs=[
                phase_spec, phase_spec, phase_spec, phase_spec,
                pl.BlockSpec((9, Cin, Cout), lambda b: (0, 0, 0)),   # w1 (folded BN1)
                pl.BlockSpec((1, Cout), lambda b: (0, 0)),           # bias1
                pl.BlockSpec((9, Cout, Cout), lambda b: (0, 0, 0)),  # w2 (folded BN2)
                pl.BlockSpec((Cin, Cout), lambda b: (0, 0)),         # shortcut 1x1
                pl.BlockSpec((1, Cout), lambda b: (0, 0)),           # bias2 (+bsc)
            ],
            out_specs=pl.BlockSpec((1, Ho * Wo, Cout), lambda b: (b, 0, 0)),
            scratch_shapes=[pltpu.VMEM((Ho + 2, Wo + 2, Cout), jnp.float32)],
        ),
        compiler_params=pltpu.CompilerParams(
            dimension_semantics=("parallel",),
            vmem_limit_bytes=32 * 1024 * 1024),
        cost_estimate=pl.CostEstimate(
            flops=flops, transcendentals=0, bytes_accessed=bytes_accessed),
    )(*phases, w1, b1, w2, wsc, b2)

    out_nhwc = out.reshape(N, Ho, Wo, Cout)
    return jnp.transpose(out_nhwc, (0, 3, 1, 2))                    # NCHW


# ----------------------------------------------------------------------------
# Pure-JAX reference (sanity check)
# ----------------------------------------------------------------------------
def head_block_reference(x_nchw, params, eps=1e-5):
    dn = ("NCHW", "OIHW", "NCHW")

    def conv(x, w, b, stride, pad):
        y = jax.lax.conv_general_dilated(
            x, w, (stride, stride), [(pad, pad), (pad, pad)],
            dimension_numbers=dn)
        return y + b.reshape(1, -1, 1, 1)

    def bn(x, gamma, beta, mean, var):
        c = lambda v: v.reshape(1, -1, 1, 1)
        return c(gamma) * (x - c(mean)) / jnp.sqrt(c(var) + eps) + c(beta)

    y = conv(x_nchw, params["w1"], params["b1"], 2, 1)
    y = jax.nn.relu(bn(y, params["bn1_gamma"], params["bn1_beta"],
                       params["bn1_mean"], params["bn1_var"]))
    y = conv(y, params["w2"], params["b2"], 1, 1)
    y = bn(y, params["bn2_gamma"], params["bn2_beta"],
           params["bn2_mean"], params["bn2_var"])
    sc = conv(x_nchw, params["wsc"], params["bsc"], 2, 0)
    return jax.nn.relu(y + sc)


# ----------------------------------------------------------------------------
# Main
# ----------------------------------------------------------------------------
def _make_params(key, cin, cout, *, nontrivial_bn_stats=False):
    ks = jax.random.split(key, 14)
    p = {
        "w1": jax.random.normal(ks[0], (cout, cin, 3, 3), jnp.float32) * 0.1,
        "b1": jax.random.normal(ks[1], (cout,), jnp.float32) * 0.1,
        "bn1_gamma": 1.0 + 0.1 * jax.random.normal(ks[2], (cout,), jnp.float32),
        "bn1_beta": 0.1 * jax.random.normal(ks[3], (cout,), jnp.float32),
        "w2": jax.random.normal(ks[4], (cout, cout, 3, 3), jnp.float32) * 0.1,
        "b2": jax.random.normal(ks[5], (cout,), jnp.float32) * 0.1,
        "bn2_gamma": 1.0 + 0.1 * jax.random.normal(ks[6], (cout,), jnp.float32),
        "bn2_beta": 0.1 * jax.random.normal(ks[7], (cout,), jnp.float32),
        "wsc": jax.random.normal(ks[8], (cout, cin, 1, 1), jnp.float32) * 0.1,
        "bsc": jax.random.normal(ks[9], (cout,), jnp.float32) * 0.1,
        # BN running stats (eval semantics). Fresh PyTorch BN: mean=0, var=1.
        "bn1_mean": jnp.zeros((cout,), jnp.float32),
        "bn1_var": jnp.ones((cout,), jnp.float32),
        "bn2_mean": jnp.zeros((cout,), jnp.float32),
        "bn2_var": jnp.ones((cout,), jnp.float32),
    }
    if nontrivial_bn_stats:
        p["bn1_mean"] = 0.1 * jax.random.normal(ks[10], (cout,), jnp.float32)
        p["bn1_var"] = 1.0 + 0.2 * jax.random.uniform(ks[11], (cout,))
        p["bn2_mean"] = 0.1 * jax.random.normal(ks[12], (cout,), jnp.float32)
        p["bn2_var"] = 1.0 + 0.2 * jax.random.uniform(ks[13], (cout,))
    return p


if __name__ == "__main__":
    key = jax.random.PRNGKey(0)
    k1, k2, k3, k4 = jax.random.split(key, 4)

    # --- case 1: the module's shapes (fresh PyTorch BN stats, eval) --------
    N, Cin, H, W, Cout = 2, 4, 16, 16, 8
    params = _make_params(k1, Cin, Cout)
    x = jax.random.normal(k2, (N, Cin, H, W), jnp.float32)
    out = jax.block_until_ready(head_block_forward(x, params))
    ref = jax.block_until_ready(head_block_reference(x, params))
    assert out.shape == (N, Cout, H // 2, W // 2), out.shape
    assert jnp.allclose(out, ref, atol=2e-3, rtol=2e-3), \
        float(jnp.max(jnp.abs(out - ref)))

    # --- case 2: grid of 4 (keeps both v7x TensorCores busy), ragged channel
    #             counts, non-trivial BN running stats to exercise the fold ---
    N2, Cin2, H2, W2, Cout2 = 4, 3, 16, 16, 6
    params2 = _make_params(k3, Cin2, Cout2, nontrivial_bn_stats=True)
    x2 = jax.random.normal(k4, (N2, Cin2, H2, W2), jnp.float32)
    out2 = jax.block_until_ready(head_block_forward(x2, params2))
    ref2 = jax.block_until_ready(head_block_reference(x2, params2))
    assert out2.shape == (N2, Cout2, H2 // 2, W2 // 2), out2.shape
    assert jnp.allclose(out2, ref2, atol=2e-3, rtol=2e-3), \
        float(jnp.max(jnp.abs(out2 - ref2)))

    print("KERNEL_OK")
</pallas_src>

<mosaic_0001>
module attributes {stable_mosaic.version = 11 : i64} {
  func.func @kernel(%arg0: i32, %arg1: memref<1x9x9x4xf32, #tpu.memory_space<vmem>>, %arg2: memref<1x9x9x4xf32, #tpu.memory_space<vmem>>, %arg3: memref<1x9x9x4xf32, #tpu.memory_space<vmem>>, %arg4: memref<1x9x9x4xf32, #tpu.memory_space<vmem>>, %arg5: memref<9x4x8xf32, #tpu.memory_space<vmem>>, %arg6: memref<1x8xf32, #tpu.memory_space<vmem>>, %arg7: memref<9x8x8xf32, #tpu.memory_space<vmem>>, %arg8: memref<4x8xf32, #tpu.memory_space<vmem>>, %arg9: memref<1x8xf32, #tpu.memory_space<vmem>>, %arg10: memref<1x64x8xf32, #tpu.memory_space<vmem>>, %arg11: memref<10x10x8xf32, #tpu.memory_space<vmem>>) attributes {dimension_semantics = [#tpu.dimension_semantics<parallel>], iteration_bounds = array<i64: 2>, scalar_prefetch = 0 : i64, scratch_operands = 1 : i64, tpu.core_type = #tpu.core_type<tc>, window_params = [{transform_indices = @transform_0, window_bounds = array<i64: 1, 9, 9, 4>}, {transform_indices = @transform_1, window_bounds = array<i64: 1, 9, 9, 4>}, {transform_indices = @transform_2, window_bounds = array<i64: 1, 9, 9, 4>}, {transform_indices = @transform_3, window_bounds = array<i64: 1, 9, 9, 4>}, {pipeline_mode = #tpu.pipeline_mode<synchronous>, transform_indices = @transform_4, window_bounds = array<i64: 9, 4, 8>}, {pipeline_mode = #tpu.pipeline_mode<synchronous>, transform_indices = @transform_5, window_bounds = array<i64: 1, 8>}, {pipeline_mode = #tpu.pipeline_mode<synchronous>, transform_indices = @transform_6, window_bounds = array<i64: 9, 8, 8>}, {pipeline_mode = #tpu.pipeline_mode<synchronous>, transform_indices = @transform_7, window_bounds = array<i64: 4, 8>}, {pipeline_mode = #tpu.pipeline_mode<synchronous>, transform_indices = @transform_8, window_bounds = array<i64: 1, 8>}, {transform_indices = @transform_9, window_bounds = array<i64: 1, 64, 8>}]} {
    %cst = arith.constant 0.000000e+00 : f32
    %0 = vector.broadcast %cst : f32 to vector<64x8xf32>
    %c0 = arith.constant 0 : index
    %c0_0 = arith.constant 0 : index
    %c0_1 = arith.constant 0 : index
    %c0_2 = arith.constant 0 : index
    %1 = vector.load %arg1[%c0, %c0_0, %c0_1, %c0_2] : memref<1x9x9x4xf32, #tpu.memory_space<vmem>>, vector<1x8x8x4xf32>
    %2 = vector.shape_cast %1 : vector<1x8x8x4xf32> to vector<8x8x4xf32>
    %3 = vector.shape_cast %2 : vector<8x8x4xf32> to vector<64x4xf32>
    %c0_3 = arith.constant 0 : index
    %c0_4 = arith.constant 0 : index
    %c0_5 = arith.constant 0 : index
    %4 = vector.load %arg5[%c0_3, %c0_4, %c0_5] : memref<9x4x8xf32, #tpu.memory_space<vmem>>, vector<1x4x8xf32>
    %5 = vector.shape_cast %4 : vector<1x4x8xf32> to vector<4x8xf32>
    %cst_6 = arith.constant dense<0.000000e+00> : vector<64x8xf32>
    %6 = tpu.matmul %3, %5, %cst_6 {dimension_numbers = #tpu.dot_dimension_numbers<[1], [0], [0], [1], [0, 0, 1, 1], [], []>} : vector<64x4xf32>, vector<4x8xf32>, vector<64x8xf32> -> vector<64x8xf32>
    %7 = arith.addf %0, %6 : vector<64x8xf32>
    %c0_7 = arith.constant 0 : index
    %c0_8 = arith.constant 0 : index
    %c0_9 = arith.constant 0 : index
    %c0_10 = arith.constant 0 : index
    %8 = vector.load %arg2[%c0_7, %c0_8, %c0_9, %c0_10] : memref<1x9x9x4xf32, #tpu.memory_space<vmem>>, vector<1x8x8x4xf32>
    %9 = vector.shape_cast %8 : vector<1x8x8x4xf32> to vector<8x8x4xf32>
    %10 = vector.shape_cast %9 : vector<8x8x4xf32> to vector<64x4xf32>
    %c1 = arith.constant 1 : index
    %c0_11 = arith.constant 0 : index
    %c0_12 = arith.constant 0 : index
    %11 = vector.load %arg5[%c1, %c0_11, %c0_12] : memref<9x4x8xf32, #tpu.memory_space<vmem>>, vector<1x4x8xf32>
    %12 = vector.shape_cast %11 : vector<1x4x8xf32> to vector<4x8xf32>
    %cst_13 = arith.constant dense<0.000000e+00> : vector<64x8xf32>
    %13 = tpu.matmul %10, %12, %cst_13 {dimension_numbers = #tpu.dot_dimension_numbers<[1], [0], [0], [1], [0, 0, 1, 1], [], []>} : vector<64x4xf32>, vector<4x8xf32>, vector<64x8xf32> -> vector<64x8xf32>
    %14 = arith.addf %7, %13 : vector<64x8xf32>
    %c0_14 = arith.constant 0 : index
    %c0_15 = arith.constant 0 : index
    %c1_16 = arith.constant 1 : index
    %c0_17 = arith.constant 0 : index
    %15 = vector.load %arg1[%c0_14, %c0_15, %c1_16, %c0_17] : memref<1x9x9x4xf32, #tpu.memory_space<vmem>>, vector<1x8x8x4xf32>
    %16 = vector.shape_cast %15 : vector<1x8x8x4xf32> to vector<8x8x4xf32>
    %17 = vector.shape_cast %16 : vector<8x8x4xf32> to vector<64x4xf32>
    %c2 = arith.constant 2 : index
    %c0_18 = arith.constant 0 : index
    %c0_19 = arith.constant 0 : index
    %18 = vector.load %arg5[%c2, %c0_18, %c0_19] : memref<9x4x8xf32, #tpu.memory_space<vmem>>, vector<1x4x8xf32>
    %19 = vector.shape_cast %18 : vector<1x4x8xf32> to vector<4x8xf32>
    %cst_20 = arith.constant dense<0.000000e+00> : vector<64x8xf32>
    %20 = tpu.matmul %17, %19, %cst_20 {dimension_numbers = #tpu.dot_dimension_numbers<[1], [0], [0], [1], [0, 0, 1, 1], [], []>} : vector<64x4xf32>, vector<4x8xf32>, vector<64x8xf32> -> vector<64x8xf32>
    %21 = arith.addf %14, %20 : vector<64x8xf32>
    %c0_21 = arith.constant 0 : index
    %c0_22 = arith.constant 0 : index
    %c0_23 = arith.constant 0 : index
    %c0_24 = arith.constant 0 : index
    %22 = vector.load %arg3[%c0_21, %c0_22, %c0_23, %c0_24] : memref<1x9x9x4xf32, #tpu.memory_space<vmem>>, vector<1x8x8x4xf32>
    %23 = vector.shape_cast %22 : vector<1x8x8x4xf32> to vector<8x8x4xf32>
    %24 = vector.shape_cast %23 : vector<8x8x4xf32> to vector<64x4xf32>
    %c3 = arith.constant 3 : index
    %c0_25 = arith.constant 0 : index
    %c0_26 = arith.constant 0 : index
    %25 = vector.load %arg5[%c3, %c0_25, %c0_26] : memref<9x4x8xf32, #tpu.memory_space<vmem>>, vector<1x4x8xf32>
    %26 = vector.shape_cast %25 : vector<1x4x8xf32> to vector<4x8xf32>
    %cst_27 = arith.constant dense<0.000000e+00> : vector<64x8xf32>
    %27 = tpu.matmul %24, %26, %cst_27 {dimension_numbers = #tpu.dot_dimension_numbers<[1], [0], [0], [1], [0, 0, 1, 1], [], []>} : vector<64x4xf32>, vector<4x8xf32>, vector<64x8xf32> -> vector<64x8xf32>
    %28 = arith.addf %21, %27 : vector<64x8xf32>
    %c0_28 = arith.constant 0 : index
    %c0_29 = arith.constant 0 : index
    %c0_30 = arith.constant 0 : index
    %c0_31 = arith.constant 0 : index
    %29 = vector.load %arg4[%c0_28, %c0_29, %c0_30, %c0_31] : memref<1x9x9x4xf32, #tpu.memory_space<vmem>>, vector<1x8x8x4xf32>
    %30 = vector.shape_cast %29 : vector<1x8x8x4xf32> to vector<8x8x4xf32>
    %31 = vector.shape_cast %30 : vector<8x8x4xf32> to vector<64x4xf32>
    %c4 = arith.constant 4 : index
    %c0_32 = arith.constant 0 : index
    %c0_33 = arith.constant 0 : index
    %32 = vector.load %arg5[%c4, %c0_32, %c0_33] : memref<9x4x8xf32, #tpu.memory_space<vmem>>, vector<1x4x8xf32>
    %33 = vector.shape_cast %32 : vector<1x4x8xf32> to vector<4x8xf32>
    %cst_34 = arith.constant dense<0.000000e+00> : vector<64x8xf32>
    %34 = tpu.matmul %31, %33, %cst_34 {dimension_numbers = #tpu.dot_dimension_numbers<[1], [0], [0], [1], [0, 0, 1, 1], [], []>} : vector<64x4xf32>, vector<4x8xf32>, vector<64x8xf32> -> vector<64x8xf32>
    %35 = arith.addf %28, %34 : vector<64x8xf32>
    %c0_35 = arith.constant 0 : index
    %c0_36 = arith.constant 0 : index
    %c1_37 = arith.constant 1 : index
    %c0_38 = arith.constant 0 : index
    %36 = vector.load %arg3[%c0_35, %c0_36, %c1_37, %c0_38] : memref<1x9x9x4xf32, #tpu.memory_space<vmem>>, vector<1x8x8x4xf32>
    %37 = vector.shape_cast %36 : vector<1x8x8x4xf32> to vector<8x8x4xf32>
    %38 = vector.shape_cast %37 : vector<8x8x4xf32> to vector<64x4xf32>
    %c5 = arith.constant 5 : index
    %c0_39 = arith.constant 0 : index
    %c0_40 = arith.constant 0 : index
    %39 = vector.load %arg5[%c5, %c0_39, %c0_40] : memref<9x4x8xf32, #tpu.memory_space<vmem>>, vector<1x4x8xf32>
    %40 = vector.shape_cast %39 : vector<1x4x8xf32> to vector<4x8xf32>
    %cst_41 = arith.constant dense<0.000000e+00> : vector<64x8xf32>
    %41 = tpu.matmul %38, %40, %cst_41 {dimension_numbers = #tpu.dot_dimension_numbers<[1], [0], [0], [1], [0, 0, 1, 1], [], []>} : vector<64x4xf32>, vector<4x8xf32>, vector<64x8xf32> -> vector<64x8xf32>
    %42 = arith.addf %35, %41 : vector<64x8xf32>
    %c0_42 = arith.constant 0 : index
    %c1_43 = arith.constant 1 : index
    %c0_44 = arith.constant 0 : index
    %c0_45 = arith.constant 0 : index
    %43 = vector.load %arg1[%c0_42, %c1_43, %c0_44, %c0_45] : memref<1x9x9x4xf32, #tpu.memory_space<vmem>>, vector<1x8x8x4xf32>
    %44 = vector.shape_cast %43 : vector<1x8x8x4xf32> to vector<8x8x4xf32>
    %45 = vector.shape_cast %44 : vector<8x8x4xf32> to vector<64x4xf32>
    %c6 = arith.constant 6 : index
    %c0_46 = arith.constant 0 : index
    %c0_47 = arith.constant 0 : index
    %46 = vector.load %arg5[%c6, %c0_46, %c0_47] : memref<9x4x8xf32, #tpu.memory_space<vmem>>, vector<1x4x8xf32>
    %47 = vector.shape_cast %46 : vector<1x4x8xf32> to vector<4x8xf32>
    %cst_48 = arith.constant dense<0.000000e+00> : vector<64x8xf32>
    %48 = tpu.matmul %45, %47, %cst_48 {dimension_numbers = #tpu.dot_dimension_numbers<[1], [0], [0], [1], [0, 0, 1, 1], [], []>} : vector<64x4xf32>, vector<4x8xf32>, vector<64x8xf32> -> vector<64x8xf32>
    %49 = arith.addf %42, %48 : vector<64x8xf32>
    %c0_49 = arith.constant 0 : index
    %c1_50 = arith.constant 1 : index
    %c0_51 = arith.constant 0 : index
    %c0_52 = arith.constant 0 : index
    %50 = vector.load %arg2[%c0_49, %c1_50, %c0_51, %c0_52] : memref<1x9x9x4xf32, #tpu.memory_space<vmem>>, vector<1x8x8x4xf32>
    %51 = vector.shape_cast %50 : vector<1x8x8x4xf32> to vector<8x8x4xf32>
    %52 = vector.shape_cast %51 : vector<8x8x4xf32> to vector<64x4xf32>
    %c7 = arith.constant 7 : index
    %c0_53 = arith.constant 0 : index
    %c0_54 = arith.constant 0 : index
    %53 = vector.load %arg5[%c7, %c0_53, %c0_54] : memref<9x4x8xf32, #tpu.memory_space<vmem>>, vector<1x4x8xf32>
    %54 = vector.shape_cast %53 : vector<1x4x8xf32> to vector<4x8xf32>
    %cst_55 = arith.constant dense<0.000000e+00> : vector<64x8xf32>
    %55 = tpu.matmul %52, %54, %cst_55 {dimension_numbers = #tpu.dot_dimension_numbers<[1], [0], [0], [1], [0, 0, 1, 1], [], []>} : vector<64x4xf32>, vector<4x8xf32>, vector<64x8xf32> -> vector<64x8xf32>
    %56 = arith.addf %49, %55 : vector<64x8xf32>
    %c0_56 = arith.constant 0 : index
    %c1_57 = arith.constant 1 : index
    %c1_58 = arith.constant 1 : index
    %c0_59 = arith.constant 0 : index
    %57 = vector.load %arg1[%c0_56, %c1_57, %c1_58, %c0_59] : memref<1x9x9x4xf32, #tpu.memory_space<vmem>>, vector<1x8x8x4xf32>
    %58 = vector.shape_cast %57 : vector<1x8x8x4xf32> to vector<8x8x4xf32>
    %59 = vector.shape_cast %58 : vector<8x8x4xf32> to vector<64x4xf32>
    %c8 = arith.constant 8 : index
    %c0_60 = arith.constant 0 : index
    %c0_61 = arith.constant 0 : index
    %60 = vector.load %arg5[%c8, %c0_60, %c0_61] : memref<9x4x8xf32, #tpu.memory_space<vmem>>, vector<1x4x8xf32>
    %61 = vector.shape_cast %60 : vector<1x4x8xf32> to vector<4x8xf32>
    %cst_62 = arith.constant dense<0.000000e+00> : vector<64x8xf32>
    %62 = tpu.matmul %59, %61, %cst_62 {dimension_numbers = #tpu.dot_dimension_numbers<[1], [0], [0], [1], [0, 0, 1, 1], [], []>} : vector<64x4xf32>, vector<4x8xf32>, vector<64x8xf32> -> vector<64x8xf32>
    %63 = arith.addf %56, %62 : vector<64x8xf32>
    %c0_63 = arith.constant 0 : index
    %c0_64 = arith.constant 0 : index
    %64 = vector.load %arg6[%c0_63, %c0_64] : memref<1x8xf32, #tpu.memory_space<vmem>>, vector<1x8xf32>
    %65 = vector.broadcast %64 : vector<1x8xf32> to vector<64x8xf32>
    %66 = arith.addf %63, %65 : vector<64x8xf32>
    %cst_65 = arith.constant 0.000000e+00 : f32
    %67 = vector.broadcast %cst_65 : f32 to vector<64x8xf32>
    %68 = arith.maximumf %66, %67 : vector<64x8xf32>
    %cst_66 = arith.constant 0.000000e+00 : f32
    %69 = vector.broadcast %cst_66 : f32 to vector<10x10x8xf32>
    %c0_67 = arith.constant 0 : index
    %c0_68 = arith.constant 0 : index
    %c0_69 = arith.constant 0 : index
    %70 = vector.load %arg11[%c0_67, %c0_68, %c0_69] : memref<10x10x8xf32, #tpu.memory_space<vmem>>, vector<10x10x8xf32>
    tpu.vector_store %arg11[%c0_67, %c0_68, %c0_69], %69 {strides = array<i32>} : memref<10x10x8xf32, #tpu.memory_space<vmem>>, vector<10x10x8xf32>,
    %71 = vector.shape_cast %68 : vector<64x8xf32> to vector<8x8x8xf32>
    %c1_70 = arith.constant 1 : index
    %c1_71 = arith.constant 1 : index
    %c0_72 = arith.constant 0 : index
    %72 = vector.load %arg11[%c1_70, %c1_71, %c0_72] : memref<10x10x8xf32, #tpu.memory_space<vmem>>, vector<8x8x8xf32>
    tpu.vector_store %arg11[%c1_70, %c1_71, %c0_72], %71 {strides = array<i32>} : memref<10x10x8xf32, #tpu.memory_space<vmem>>, vector<8x8x8xf32>,
    %c0_73 = arith.constant 0 : index
    %c0_74 = arith.constant 0 : index
    %c0_75 = arith.constant 0 : index
    %c0_76 = arith.constant 0 : index
    %73 = vector.load %arg4[%c0_73, %c0_74, %c0_75, %c0_76] : memref<1x9x9x4xf32, #tpu.memory_space<vmem>>, vector<1x8x8x4xf32>
    %74 = vector.shape_cast %73 : vector<1x8x8x4xf32> to vector<8x8x4xf32>
    %75 = vector.shape_cast %74 : vector<8x8x4xf32> to vector<64x4xf32>
    %c0_77 = arith.constant 0 : index
    %c0_78 = arith.constant 0 : index
    %76 = vector.load %arg8[%c0_77, %c0_78] : memref<4x8xf32, #tpu.memory_space<vmem>>, vector<4x8xf32>
    %cst_79 = arith.constant dense<0.000000e+00> : vector<64x8xf32>
    %77 = tpu.matmul %75, %76, %cst_79 {dimension_numbers = #tpu.dot_dimension_numbers<[1], [0], [0], [1], [0, 0, 1, 1], [], []>} : vector<64x4xf32>, vector<4x8xf32>, vector<64x8xf32> -> vector<64x8xf32>
    %c0_80 = arith.constant 0 : index
    %c0_81 = arith.constant 0 : index
    %c0_82 = arith.constant 0 : index
    %78 = vector.load %arg11[%c0_80, %c0_81, %c0_82] : memref<10x10x8xf32, #tpu.memory_space<vmem>>, vector<8x8x8xf32>
    %79 = vector.shape_cast %78 : vector<8x8x8xf32> to vector<64x8xf32>
    %c0_83 = arith.constant 0 : index
    %c0_84 = arith.constant 0 : index
    %c0_85 = arith.constant 0 : index
    %80 = vector.load %arg7[%c0_83, %c0_84, %c0_85] : memref<9x8x8xf32, #tpu.memory_space<vmem>>, vector<1x8x8xf32>
    %81 = vector.shape_cast %80 : vector<1x8x8xf32> to vector<8x8xf32>
    %cst_86 = arith.constant dense<0.000000e+00> : vector<64x8xf32>
    %82 = tpu.matmul %79, %81, %cst_86 {dimension_numbers = #tpu.dot_dimension_numbers<[1], [0], [0], [1], [0, 0, 1, 1], [], []>} : vector<64x8xf32>, vector<8x8xf32>, vector<64x8xf32> -> vector<64x8xf32>
    %83 = arith.addf %77, %82 : vector<64x8xf32>
    %c0_87 = arith.constant 0 : index
    %c1_88 = arith.constant 1 : index
    %c0_89 = arith.constant 0 : index
    %84 = vector.load %arg11[%c0_87, %c1_88, %c0_89] : memref<10x10x8xf32, #tpu.memory_space<vmem>>, vector<8x8x8xf32>
    %85 = vector.shape_cast %84 : vector<8x8x8xf32> to vector<64x8xf32>
    %c1_90 = arith.constant 1 : index
    %c0_91 = arith.constant 0 : index
    %c0_92 = arith.constant 0 : index
    %86 = vector.load %arg7[%c1_90, %c0_91, %c0_92] : memref<9x8x8xf32, #tpu.memory_space<vmem>>, vector<1x8x8xf32>
    %87 = vector.shape_cast %86 : vector<1x8x8xf32> to vector<8x8xf32>
    %cst_93 = arith.constant dense<0.000000e+00> : vector<64x8xf32>
    %88 = tpu.matmul %85, %87, %cst_93 {dimension_numbers = #tpu.dot_dimension_numbers<[1], [0], [0], [1], [0, 0, 1, 1], [], []>} : vector<64x8xf32>, vector<8x8xf32>, vector<64x8xf32> -> vector<64x8xf32>
    %89 = arith.addf %83, %88 : vector<64x8xf32>
    %c0_94 = arith.constant 0 : index
    %c2_95 = arith.constant 2 : index
    %c0_96 = arith.constant 0 : index
    %90 = vector.load %arg11[%c0_94, %c2_95, %c0_96] : memref<10x10x8xf32, #tpu.memory_space<vmem>>, vector<8x8x8xf32>
    %91 = vector.shape_cast %90 : vector<8x8x8xf32> to vector<64x8xf32>
    %c2_97 = arith.constant 2 : index
    %c0_98 = arith.constant 0 : index
    %c0_99 = arith.constant 0 : index
    %92 = vector.load %arg7[%c2_97, %c0_98, %c0_99] : memref<9x8x8xf32, #tpu.memory_space<vmem>>, vector<1x8x8xf32>
    %93 = vector.shape_cast %92 : vector<1x8x8xf32> to vector<8x8xf32>
    %cst_100 = arith.constant dense<0.000000e+00> : vector<64x8xf32>
    %94 = tpu.matmul %91, %93, %cst_100 {dimension_numbers = #tpu.dot_dimension_numbers<[1], [0], [0], [1], [0, 0, 1, 1], [], []>} : vector<64x8xf32>, vector<8x8xf32>, vector<64x8xf32> -> vector<64x8xf32>
    %95 = arith.addf %89, %94 : vector<64x8xf32>
    %c1_101 = arith.constant 1 : index
    %c0_102 = arith.constant 0 : index
    %c0_103 = arith.constant 0 : index
    %96 = vector.load %arg11[%c1_101, %c0_102, %c0_103] : memref<10x10x8xf32, #tpu.memory_space<vmem>>, vector<8x8x8xf32>
    %97 = vector.shape_cast %96 : vector<8x8x8xf32> to vector<64x8xf32>
    %c3_104 = arith.constant 3 : index
    %c0_105 = arith.constant 0 : index
    %c0_106 = arith.constant 0 : index
    %98 = vector.load %arg7[%c3_104, %c0_105, %c0_106] : memref<9x8x8xf32, #tpu.memory_space<vmem>>, vector<1x8x8xf32>
    %99 = vector.shape_cast %98 : vector<1x8x8xf32> to vector<8x8xf32>
    %cst_107 = arith.constant dense<0.000000e+00> : vector<64x8xf32>
    %100 = tpu.matmul %97, %99, %cst_107 {dimension_numbers = #tpu.dot_dimension_numbers<[1], [0], [0], [1], [0, 0, 1, 1], [], []>} : vector<64x8xf32>, vector<8x8xf32>, vector<64x8xf32> -> vector<64x8xf32>
    %101 = arith.addf %95, %100 : vector<64x8xf32>
    %c1_108 = arith.constant 1 : index
    %c1_109 = arith.constant 1 : index
    %c0_110 = arith.constant 0 : index
    %102 = vector.load %arg11[%c1_108, %c1_109, %c0_110] : memref<10x10x8xf32, #tpu.memory_space<vmem>>, vector<8x8x8xf32>
    %103 = vector.shape_cast %102 : vector<8x8x8xf32> to vector<64x8xf32>
    %c4_111 = arith.constant 4 : index
    %c0_112 = arith.constant 0 : index
    %c0_113 = arith.constant 0 : index
    %104 = vector.load %arg7[%c4_111, %c0_112, %c0_113] : memref<9x8x8xf32, #tpu.memory_space<vmem>>, vector<1x8x8xf32>
    %105 = vector.shape_cast %104 : vector<1x8x8xf32> to vector<8x8xf32>
    %cst_114 = arith.constant dense<0.000000e+00> : vector<64x8xf32>
    %106 = tpu.matmul %103, %105, %cst_114 {dimension_numbers = #tpu.dot_dimension_numbers<[1], [0], [0], [1], [0, 0, 1, 1], [], []>} : vector<64x8xf32>, vector<8x8xf32>, vector<64x8xf32> -> vector<64x8xf32>
    %107 = arith.addf %101, %106 : vector<64x8xf32>
    %c1_115 = arith.constant 1 : index
    %c2_116 = arith.constant 2 : index
    %c0_117 = arith.constant 0 : index
    %108 = vector.load %arg11[%c1_115, %c2_116, %c0_117] : memref<10x10x8xf32, #tpu.memory_space<vmem>>, vector<8x8x8xf32>
    %109 = vector.shape_cast %108 : vector<8x8x8xf32> to vector<64x8xf32>
    %c5_118 = arith.constant 5 : index
    %c0_119 = arith.constant 0 : index
    %c0_120 = arith.constant 0 : index
    %110 = vector.load %arg7[%c5_118, %c0_119, %c0_120] : memref<9x8x8xf32, #tpu.memory_space<vmem>>, vector<1x8x8xf32>
    %111 = vector.shape_cast %110 : vector<1x8x8xf32> to vector<8x8xf32>
    %cst_121 = arith.constant dense<0.000000e+00> : vector<64x8xf32>
    %112 = tpu.matmul %109, %111, %cst_121 {dimension_numbers = #tpu.dot_dimension_numbers<[1], [0], [0], [1], [0, 0, 1, 1], [], []>} : vector<64x8xf32>, vector<8x8xf32>, vector<64x8xf32> -> vector<64x8xf32>
    %113 = arith.addf %107, %112 : vector<64x8xf32>
    %c2_122 = arith.constant 2 : index
    %c0_123 = arith.constant 0 : index
    %c0_124 = arith.constant 0 : index
    %114 = vector.load %arg11[%c2_122, %c0_123, %c0_124] : memref<10x10x8xf32, #tpu.memory_space<vmem>>, vector<8x8x8xf32>
    %115 = vector.shape_cast %114 : vector<8x8x8xf32> to vector<64x8xf32>
    %c6_125 = arith.constant 6 : index
    %c0_126 = arith.constant 0 : index
    %c0_127 = arith.constant 0 : index
    %116 = vector.load %arg7[%c6_125, %c0_126, %c0_127] : memref<9x8x8xf32, #tpu.memory_space<vmem>>, vector<1x8x8xf32>
    %117 = vector.shape_cast %116 : vector<1x8x8xf32> to vector<8x8xf32>
    %cst_128 = arith.constant dense<0.000000e+00> : vector<64x8xf32>
    %118 = tpu.matmul %115, %117, %cst_128 {dimension_numbers = #tpu.dot_dimension_numbers<[1], [0], [0], [1], [0, 0, 1, 1], [], []>} : vector<64x8xf32>, vector<8x8xf32>, vector<64x8xf32> -> vector<64x8xf32>
    %119 = arith.addf %113, %118 : vector<64x8xf32>
    %c2_129 = arith.constant 2 : index
    %c1_130 = arith.constant 1 : index
    %c0_131 = arith.constant 0 : index
    %120 = vector.load %arg11[%c2_129, %c1_130, %c0_131] : memref<10x10x8xf32, #tpu.memory_space<vmem>>, vector<8x8x8xf32>
    %121 = vector.shape_cast %120 : vector<8x8x8xf32> to vector<64x8xf32>
    %c7_132 = arith.constant 7 : index
    %c0_133 = arith.constant 0 : index
    %c0_134 = arith.constant 0 : index
    %122 = vector.load %arg7[%c7_132, %c0_133, %c0_134] : memref<9x8x8xf32, #tpu.memory_space<vmem>>, vector<1x8x8xf32>
    %123 = vector.shape_cast %122 : vector<1x8x8xf32> to vector<8x8xf32>
    %cst_135 = arith.constant dense<0.000000e+00> : vector<64x8xf32>
    %124 = tpu.matmul %121, %123, %cst_135 {dimension_numbers = #tpu.dot_dimension_numbers<[1], [0], [0], [1], [0, 0, 1, 1], [], []>} : vector<64x8xf32>, vector<8x8xf32>, vector<64x8xf32> -> vector<64x8xf32>
    %125 = arith.addf %119, %124 : vector<64x8xf32>
    %c2_136 = arith.constant 2 : index
    %c2_137 = arith.constant 2 : index
    %c0_138 = arith.constant 0 : index
    %126 = vector.load %arg11[%c2_136, %c2_137, %c0_138] : memref<10x10x8xf32, #tpu.memory_space<vmem>>, vector<8x8x8xf32>
    %127 = vector.shape_cast %126 : vector<8x8x8xf32> to vector<64x8xf32>
    %c8_139 = arith.constant 8 : index
    %c0_140 = arith.constant 0 : index
    %c0_141 = arith.constant 0 : index
    %128 = vector.load %arg7[%c8_139, %c0_140, %c0_141] : memref<9x8x8xf32, #tpu.memory_space<vmem>>, vector<1x8x8xf32>
    %129 = vector.shape_cast %128 : vector<1x8x8xf32> to vector<8x8xf32>
    %cst_142 = arith.constant dense<0.000000e+00> : vector<64x8xf32>
    %130 = tpu.matmul %127, %129, %cst_142 {dimension_numbers = #tpu.dot_dimension_numbers<[1], [0], [0], [1], [0, 0, 1, 1], [], []>} : vector<64x8xf32>, vector<8x8xf32>, vector<64x8xf32> -> vector<64x8xf32>
    %131 = arith.addf %125, %130 : vector<64x8xf32>
    %c0_143 = arith.constant 0 : index
    %c0_144 = arith.constant 0 : index
    %132 = vector.load %arg9[%c0_143, %c0_144] : memref<1x8xf32, #tpu.memory_space<vmem>>, vector<1x8xf32>
    %133 = vector.broadcast %132 : vector<1x8xf32> to vector<64x8xf32>
    %134 = arith.addf %131, %133 : vector<64x8xf32>
    %cst_145 = arith.constant 0.000000e+00 : f32
    %135 = vector.broadcast %cst_145 : f32 to vector<64x8xf32>
    %136 = arith.maximumf %134, %135 : vector<64x8xf32>
    %c0_146 = arith.constant 0 : index
    %c0_147 = arith.constant 0 : index
    %c0_148 = arith.constant 0 : index
    %137 = vector.load %arg10[%c0_146, %c0_147, %c0_148] : memref<1x64x8xf32, #tpu.memory_space<vmem>>, vector<1x64x8xf32>
    %138 = vector.shape_cast %137 : vector<1x64x8xf32> to vector<64x8xf32>
    %139 = vector.shape_cast %136 : vector<64x8xf32> to vector<1x64x8xf32>
    tpu.vector_store %arg10[%c0_146, %c0_147, %c0_148], %139 {strides = array<i32>} : memref<1x64x8xf32, #tpu.memory_space<vmem>>, vector<1x64x8xf32>,
    return
  }
  func.func @transform_0(%arg0: i32) -> (i32, i32, i32, i32) {
    %c0_i32 = arith.constant 0 : i32
    %c0_i32_0 = arith.constant 0 : i32
    %c0_i32_1 = arith.constant 0 : i32
    %c0_i32_2 = arith.constant 0 : i32
    return %arg0, %c0_i32, %c0_i32_0, %c0_i32_1 : i32, i32, i32, i32
  }
  func.func @transform_1(%arg0: i32) -> (i32, i32, i32, i32) {
    %c0_i32 = arith.constant 0 : i32
    %c0_i32_0 = arith.constant 0 : i32
    %c0_i32_1 = arith.constant 0 : i32
    %c0_i32_2 = arith.constant 0 : i32
    return %arg0, %c0_i32, %c0_i32_0, %c0_i32_1 : i32, i32, i32, i32
  }
  func.func @transform_2(%arg0: i32) -> (i32, i32, i32, i32) {
    %c0_i32 = arith.constant 0 : i32
    %c0_i32_0 = arith.constant 0 : i32
    %c0_i32_1 = arith.constant 0 : i32
    %c0_i32_2 = arith.constant 0 : i32
    return %arg0, %c0_i32, %c0_i32_0, %c0_i32_1 : i32, i32, i32, i32
  }
  func.func @transform_3(%arg0: i32) -> (i32, i32, i32, i32) {
    %c0_i32 = arith.constant 0 : i32
    %c0_i32_0 = arith.constant 0 : i32
    %c0_i32_1 = arith.constant 0 : i32
    %c0_i32_2 = arith.constant 0 : i32
    return %arg0, %c0_i32, %c0_i32_0, %c0_i32_1 : i32, i32, i32, i32
  }
  func.func @transform_4(%arg0: i32) -> (i32, i32, i32) {
    %c0_i32 = arith.constant 0 : i32
    %c0_i32_0 = arith.constant 0 : i32
    %c0_i32_1 = arith.constant 0 : i32
    %c0_i32_2 = arith.constant 0 : i32
    return %c0_i32, %c0_i32_0, %c0_i32_1 : i32, i32, i32
  }
  func.func @transform_5(%arg0: i32) -> (i32, i32) {
    %c0_i32 = arith.constant 0 : i32
    %c0_i32_0 = arith.constant 0 : i32
    %c0_i32_1 = arith.constant 0 : i32
    return %c0_i32, %c0_i32_0 : i32, i32
  }
  func.func @transform_6(%arg0: i32) -> (i32, i32, i32) {
    %c0_i32 = arith.constant 0 : i32
    %c0_i32_0 = arith.constant 0 : i32
    %c0_i32_1 = arith.constant 0 : i32
    %c0_i32_2 = arith.constant 0 : i32
    return %c0_i32, %c0_i32_0, %c0_i32_1 : i32, i32, i32
  }
  func.func @transform_7(%arg0: i32) -> (i32, i32) {
    %c0_i32 = arith.constant 0 : i32
    %c0_i32_0 = arith.constant 0 : i32
    %c0_i32_1 = arith.constant 0 : i32
    return %c0_i32, %c0_i32_0 : i32, i32
  }
  func.func @transform_8(%arg0: i32) -> (i32, i32) {
    %c0_i32 = arith.constant 0 : i32
    %c0_i32_0 = arith.constant 0 : i32
    %c0_i32_1 = arith.constant 0 : i32
    return %c0_i32, %c0_i32_0 : i32, i32
  }
  func.func @transform_9(%arg0: i32) -> (i32, i32, i32) {
    %c0_i32 = arith.constant 0 : i32
    %c0_i32_0 = arith.constant 0 : i32
    %c0_i32_1 = arith.constant 0 : i32
    return %arg0, %c0_i32, %c0_i32_0 : i32, i32, i32
  }
}

</mosaic_0001>

<llo_original>
// kernel: tpu_custom_call.1
$region0: #{tpu_custom_call.1}
  #allocation0 [shape = 'u32[]', space=smem, size = 0x4, offset = 0x4, fixed_abs, tag = 'smem constant byte address 0x4 - core index']
  #allocation1 [shape = 'u32[144,128]{1,0:T(1,128)}', space=vmem, size = 0x12000, scoped, tag = 'internal scratch']
  #allocation2 [shape = 'f32[10,10,8]{2,1,0:T(8,128)}', space=vmem, size = 0x14000, scoped, tag = 'scratch operand']
  %s0 = inlined_call_operand.vmem [shape: f32[2,9,9,4], index: 0, kind: input, shape index: {}]
  %s1 = inlined_call_operand.vmem [shape: f32[2,9,9,4], index: 1, kind: input, shape index: {}]
  %s2 = inlined_call_operand.vmem [shape: f32[2,9,9,4], index: 2, kind: input, shape index: {}]
  %s3 = inlined_call_operand.vmem [shape: f32[2,9,9,4], index: 3, kind: input, shape index: {}]
  %s4 = inlined_call_operand.vmem [shape: f32[9,4,8], index: 4, kind: input, shape index: {}]
  %s5 = inlined_call_operand.vmem [shape: f32[1,8], index: 5, kind: input, shape index: {}]
  %s6 = inlined_call_operand.vmem [shape: f32[9,8,8], index: 6, kind: input, shape index: {}]
  %s7 = inlined_call_operand.vmem [shape: f32[4,8], index: 7, kind: input, shape index: {}]
  %s8 = inlined_call_operand.vmem [shape: f32[1,8], index: 8, kind: input, shape index: {}]
  %s9 = inlined_call_operand.vmem [shape: f32[2,64,8], index: 9, kind: output, shape index: {}]
  %s10 = sld [smem:[#allocation0]]
  $region69: #{tpu_custom_call.1} parent=0
    _
  %s12 = ssub.s32 1, %s10
  %s13 = scalar_select 0, %s12, %s10
  loop: start=0, step=1, limit=4
  $region2: #{tpu_custom_call.1} parent=0 // loop_pre_header
    _
  $region3: #{tpu_custom_call.1} parent=0 // loop_header
    %s15 = sphi 0, %s19
    %p16 = scmp.ge.s32.totalorder %s15, 4
    %s25 = sphi 0, %s27
    %s28 = sphi 0, %s25
    %s29 = sphi 0, %s28
    %s45 = sphi 0, %s29
    %s51 = sphi 0, %s53
    %s54 = sphi 0, %s51
    %s55 = sphi 0, %s54
    %s71 = sphi 0, %s55
    %s77 = sphi 0, %s79
    %s80 = sphi 0, %s77
    %s81 = sphi 0, %s80
    %s97 = sphi 0, %s81
    %s103 = sphi 0, %s105
    %s106 = sphi 0, %s103
    %s107 = sphi 0, %s106
    %s123 = sphi 0, %s107
    %s127 = sphi 0, %s127
    %s129 = sphi 0, %s127
    %s130 = sphi 0, %s129
    %s144 = sphi 0, %s130
    %s148 = sphi 0, %s148
    %s150 = sphi 0, %s148
    %s151 = sphi 0, %s150
    %s165 = sphi 0, %s151
    %s169 = sphi 0, %s169
    %s171 = sphi 0, %s169
    %s172 = sphi 0, %s171
    %s186 = sphi 0, %s172
    %s190 = sphi 0, %s190
    %s192 = sphi 0, %s190
    %s193 = sphi 0, %s192
    %s207 = sphi 0, %s193
    %s211 = sphi 0, %s211
    %s213 = sphi 0, %s211
    %s214 = sphi 0, %s213
    %s228 = sphi 0, %s214
    %s234 = sphi 0, %s236
    %s237 = sphi 0, %s234
    %s238 = sphi 0, %s237
    %s254 = sphi 0, %s238
  $region4: #{tpu_custom_call.1} parent=0 // loop_header_branch
    %18 = sbr.rel (%p16) target = $region8
  $region5: #{tpu_custom_call.1} parent=0 // loop_body
    %s20 = ssub.s32 %s15, 1
    %s21 = ssub.s32 %s15, 2
    %s22 = sadd.s32 %s15, 1
    %s23 = ssub.s32 %s15, %s22
    %p24 = scmp.eq.s32.totalorder %s23, 0
    %s26 = sadd.s32 %s25, 1
    %s27 = scalar_select %p24, %s25, %s26
    %p30 = pneg %p24
    %p31 = scmp.eq.s32.totalorder %s15, 1
    %p32 = por %p30, %p31
    %p33 = scmp.ne.s32.totalorder %s25, %s28
    %p34 = scmp.eq.s32.totalorder %s15, 0
    %p35 = por %p33, %p34
    %p36 = scmp.ne.s32.totalorder %s25, %s28
    %p37 = scmp.eq.s32.totalorder %s20, 1
    %p38 = por %p36, %p37
    %p39 = scmp.ne.s32.totalorder %s28, %s29
    %p40 = scmp.eq.s32.totalorder %s20, 0
    %p41 = por %p39, %p40
    %p42 = scmp.ne.s32.totalorder %s28, %s29
    %p43 = scmp.eq.s32.totalorder %s21, 1
    %p44 = por %p42, %p43
    %p46 = scmp.ne.s32.totalorder %s29, %s45
    %p47 = scmp.eq.s32.totalorder %s21, 0
    %p48 = por %p46, %p47
    %s49 = ssub.s32 %s15, %s22
    %p50 = scmp.eq.s32.totalorder %s49, 0
    %s52 = sadd.s32 %s51, 1
    %s53 = scalar_select %p50, %s51, %s52
    %p56 = pneg %p50
    %p57 = scmp.eq.s32.totalorder %s15, 1
    %p58 = por %p56, %p57
    %p59 = scmp.ne.s32.totalorder %s51, %s54
    %p60 = scmp.eq.s32.totalorder %s15, 0
    %p61 = por %p59, %p60
    %p62 = scmp.ne.s32.totalorder %s51, %s54
    %p63 = scmp.eq.s32.totalorder %s20, 1
    %p64 = por %p62, %p63
    %p65 = scmp.ne.s32.totalorder %s54, %s55
    %p66 = scmp.eq.s32.totalorder %s20, 0
    %p67 = por %p65, %p66
    %p68 = scmp.ne.s32.totalorder %s54, %s55
    %p69 = scmp.eq.s32.totalorder %s21, 1
    %p70 = por %p68, %p69
    %p72 = scmp.ne.s32.totalorder %s55, %s71
    %p73 = scmp.eq.s32.totalorder %s21, 0
    %p74 = por %p72, %p73
    %s75 = ssub.s32 %s15, %s22
    %p76 = scmp.eq.s32.totalorder %s75, 0
    %s78 = sadd.s32 %s77, 1
    %s79 = scalar_select %p76, %s77, %s78
    %p82 = pneg %p76
    %p83 = scmp.eq.s32.totalorder %s15, 1
    %p84 = por %p82, %p83
    %p85 = scmp.ne.s32.totalorder %s77, %s80
    %p86 = scmp.eq.s32.totalorder %s15, 0
    %p87 = por %p85, %p86
    %p88 = scmp.ne.s32.totalorder %s77, %s80
    %p89 = scmp.eq.s32.totalorder %s20, 1
    %p90 = por %p88, %p89
    %p91 = scmp.ne.s32.totalorder %s80, %s81
    %p92 = scmp.eq.s32.totalorder %s20, 0
    %p93 = por %p91, %p92
    %p94 = scmp.ne.s32.totalorder %s80, %s81
    %p95 = scmp.eq.s32.totalorder %s21, 1
    %p96 = por %p94, %p95
    %p98 = scmp.ne.s32.totalorder %s81, %s97
    %p99 = scmp.eq.s32.totalorder %s21, 0
    %p100 = por %p98, %p99
    %s101 = ssub.s32 %s15, %s22
    %p102 = scmp.eq.s32.totalorder %s101, 0
    %s104 = sadd.s32 %s103, 1
    %s105 = scalar_select %p102, %s103, %s104
    %p108 = pneg %p102
    %p109 = scmp.eq.s32.totalorder %s15, 1
    %p110 = por %p108, %p109
    %p111 = scmp.ne.s32.totalorder %s103, %s106
    %p112 = scmp.eq.s32.totalorder %s15, 0
    %p113 = por %p111, %p112
    %p114 = scmp.ne.s32.totalorder %s103, %s106
    %p115 = scmp.eq.s32.totalorder %s20, 1
    %p116 = por %p114, %p115
    %p117 = scmp.ne.s32.totalorder %s106, %s107
    %p118 = scmp.eq.s32.totalorder %s20, 0
    %p119 = por %p117, %p118
    %p120 = scmp.ne.s32.totalorder %s106, %s107
    %p121 = scmp.eq.s32.totalorder %s21, 1
    %p122 = por %p120, %p121
    %p124 = scmp.ne.s32.totalorder %s107, %s123
    %p125 = scmp.eq.s32.totalorder %s21, 0
    %p126 = por %p124, %p125
    %s128 = sadd.s32 %s127, 1
    %p131 = scmp.eq.s32.totalorder %s15, 1
    %p132 = scmp.ne.s32.totalorder %s127, %s129
    %p133 = scmp.eq.s32.totalorder %s15, 0
    %p134 = por %p132, %p133
    %p135 = scmp.ne.s32.totalorder %s127, %s129
    %p136 = scmp.eq.s32.totalorder %s20, 1
    %p137 = por %p135, %p136
    %p138 = scmp.ne.s32.totalorder %s129, %s130
    %p139 = scmp.eq.s32.totalorder %s20, 0
    %p140 = por %p138, %p139
    %p141 = scmp.ne.s32.totalorder %s129, %s130
    %p142 = scmp.eq.s32.totalorder %s21, 1
    %p143 = por %p141, %p142
    %p145 = scmp.ne.s32.totalorder %s130, %s144
    %p146 = scmp.eq.s32.totalorder %s21, 0
    %p147 = por %p145, %p146
    %s149 = sadd.s32 %s148, 1
    %p152 = scmp.eq.s32.totalorder %s15, 1
    %p153 = scmp.ne.s32.totalorder %s148, %s150
    %p154 = scmp.eq.s32.totalorder %s15, 0
    %p155 = por %p153, %p154
    %p156 = scmp.ne.s32.totalorder %s148, %s150
    %p157 = scmp.eq.s32.totalorder %s20, 1
    %p158 = por %p156, %p157
    %p159 = scmp.ne.s32.totalorder %s150, %s151
    %p160 = scmp.eq.s32.totalorder %s20, 0
    %p161 = por %p159, %p160
    %p162 = scmp.ne.s32.totalorder %s150, %s151
    %p163 = scmp.eq.s32.totalorder %s21, 1
    %p164 = por %p162, %p163
    %p166 = scmp.ne.s32.totalorder %s151, %s165
    %p167 = scmp.eq.s32.totalorder %s21, 0
    %p168 = por %p166, %p167
    %s170 = sadd.s32 %s169, 1
    %p173 = scmp.eq.s32.totalorder %s15, 1
    %p174 = scmp.ne.s32.totalorder %s169, %s171
    %p175 = scmp.eq.s32.totalorder %s15, 0
    %p176 = por %p174, %p175
    %p177 = scmp.ne.s32.totalorder %s169, %s171
    %p178 = scmp.eq.s32.totalorder %s20, 1
    %p179 = por %p177, %p178
    %p180 = scmp.ne.s32.totalorder %s171, %s172
    %p181 = scmp.eq.s32.totalorder %s20, 0
    %p182 = por %p180, %p181
    %p183 = scmp.ne.s32.totalorder %s171, %s172
    %p184 = scmp.eq.s32.totalorder %s21, 1
    %p185 = por %p183, %p184
    %p187 = scmp.ne.s32.totalorder %s172, %s186
    %p188 = scmp.eq.s32.totalorder %s21, 0
    %p189 = por %p187, %p188
    %s191 = sadd.s32 %s190, 1
    %p194 = scmp.eq.s32.totalorder %s15, 1
    %p195 = scmp.ne.s32.totalorder %s190, %s192
    %p196 = scmp.eq.s32.totalorder %s15, 0
    %p197 = por %p195, %p196
    %p198 = scmp.ne.s32.totalorder %s190, %s192
    %p199 = scmp.eq.s32.totalorder %s20, 1
    %p200 = por %p198, %p199
    %p201 = scmp.ne.s32.totalorder %s192, %s193
    %p202 = scmp.eq.s32.totalorder %s20, 0
    %p203 = por %p201, %p202
    %p204 = scmp.ne.s32.totalorder %s192, %s193
    %p205 = scmp.eq.s32.totalorder %s21, 1
    %p206 = por %p204, %p205
    %p208 = scmp.ne.s32.totalorder %s193, %s207
    %p209 = scmp.eq.s32.totalorder %s21, 0
    %p210 = por %p208, %p209
    %s212 = sadd.s32 %s211, 1
    %p215 = scmp.eq.s32.totalorder %s15, 1
    %p216 = scmp.ne.s32.totalorder %s211, %s213
    %p217 = scmp.eq.s32.totalorder %s15, 0
    %p218 = por %p216, %p217
    %p219 = scmp.ne.s32.totalorder %s211, %s213
    %p220 = scmp.eq.s32.totalorder %s20, 1
    %p221 = por %p219, %p220
    %p222 = scmp.ne.s32.totalorder %s213, %s214
    %p223 = scmp.eq.s32.totalorder %s20, 0
    %p224 = por %p222, %p223
    %p225 = scmp.ne.s32.totalorder %s213, %s214
    %p226 = scmp.eq.s32.totalorder %s21, 1
    %p227 = por %p225, %p226
    %p229 = scmp.ne.s32.totalorder %s214, %s228
    %p230 = scmp.eq.s32.totalorder %s21, 0
    %p231 = por %p229, %p230
    %s232 = ssub.s32 %s15, %s22
    %p233 = scmp.eq.s32.totalorder %s232, 0
    %s235 = sadd.s32 %s234, 1
    %s236 = scalar_select %p233, %s234, %s235
    %p239 = pneg %p233
    %p240 = scmp.eq.s32.totalorder %s15, 1
    %p241 = por %p239, %p240
    %p242 = scmp.ne.s32.totalorder %s234, %s237
    %p243 = scmp.eq.s32.totalorder %s15, 0
    %p244 = por %p242, %p243
    %p245 = scmp.ne.s32.totalorder %s234, %s237
    %p246 = scmp.eq.s32.totalorder %s20, 1
    %p247 = por %p245, %p246
    %p248 = scmp.ne.s32.totalorder %s237, %s238
    %p249 = scmp.eq.s32.totalorder %s20, 0
    %p250 = por %p248, %p249
    %p251 = scmp.ne.s32.totalorder %s237, %s238
    %p252 = scmp.eq.s32.totalorder %s21, 1
    %p253 = por %p251, %p252
    %p255 = scmp.ne.s32.totalorder %s238, %s254
    %p256 = scmp.eq.s32.totalorder %s21, 0
    %p257 = por %p255, %p256
    %p258 = scmp.le.s32.totalorder 1, %s15
    %p259 = scmp.lt.s32.totalorder %s15, 3
    %p260 = pnand %p258, %p259
    %p261 = pneg %p260
    // Predicated region
    $region9: #{tpu_custom_call.1} parent=5 // pred_check
      _
    $region10: #{tpu_custom_call.1} parent=5 // pred_check_branch
      %263 = sbr.rel (%p260) target = $region12
    $region11: #{tpu_custom_call.1} parent=5 // pred_region
      %s264 = ssub.s32 %s15, 1
      // Predicated region
      $region13: #{tpu_custom_call.1} parent=11 // pred_check
        %p265 = pneg %p140
      $region14: #{tpu_custom_call.1} parent=11 // pred_check_branch
        %267 = sbr.rel (%p265) target = $region16
      $region15: #{tpu_custom_call.1} parent=11 // pred_region
        _
      $region16: #{tpu_custom_call.1} parent=11 // pred_fallthru
        _
      // Predicated region
      $region17: #{tpu_custom_call.1} parent=11 // pred_check
        %p268 = pneg %p161
      $region18: #{tpu_custom_call.1} parent=11 // pred_check_branch
        %270 = sbr.rel (%p268) target = $region20
      $region19: #{tpu_custom_call.1} parent=11 // pred_region
        _
      $region20: #{tpu_custom_call.1} parent=11 // pred_fallthru
        _
      // Predicated region
      $region21: #{tpu_custom_call.1} parent=11 // pred_check
        %p271 = pneg %p182
      $region22: #{tpu_custom_call.1} parent=11 // pred_check_branch
        %273 = sbr.rel (%p271) target = $region24
      $region23: #{tpu_custom_call.1} parent=11 // pred_region
        _
      $region24: #{tpu_custom_call.1} parent=11 // pred_fallthru
        _
      // Predicated region
      $region25: #{tpu_custom_call.1} parent=11 // pred_check
        %p274 = pneg %p203
      $region26: #{tpu_custom_call.1} parent=11 // pred_check_branch
        %276 = sbr.rel (%p274) target = $region28
      $region27: #{tpu_custom_call.1} parent=11 // pred_region
        _
      $region28: #{tpu_custom_call.1} parent=11 // pred_fallthru
        _
      // Predicated region
      $region29: #{tpu_custom_call.1} parent=11 // pred_check
        %p277 = pneg %p224
      $region30: #{tpu_custom_call.1} parent=11 // pred_check_branch
        %279 = sbr.rel (%p277) target = $region32
      $region31: #{tpu_custom_call.1} parent=11 // pred_region
        _
      $region32: #{tpu_custom_call.1} parent=11 // pred_fallthru
        _
    $region12: #{tpu_custom_call.1} parent=5 // pred_fallthru
      _
    %p280 = scmp.lt.s32.totalorder %s15, 2
    // Predicated region
    $region33: #{tpu_custom_call.1} parent=5 // pred_check
      %p281 = pneg %p280
    $region34: #{tpu_custom_call.1} parent=5 // pred_check_branch
      %283 = sbr.rel (%p281) target = $region36
    $region35: #{tpu_custom_call.1} parent=5 // pred_region
      // Predicated region
      $region37: #{tpu_custom_call.1} parent=35 // pred_check
        %p284 = pneg %p35
      $region38: #{tpu_custom_call.1} parent=35 // pred_check_branch
        %286 = sbr.rel (%p284) target = $region40
      $region39: #{tpu_custom_call.1} parent=35 // pred_region
        %p287 = scmp.lt.s32.totalorder %s15, 1
        %s288 = scalar_select %p287, %s15, 1
        %s289 = smul.addr %s288, 18
        %s290 = smul.addr %s289, 8
        %s291 = scalar_lea.vmem %s0, %s290
      $region40: #{tpu_custom_call.1} parent=35 // pred_fallthru
        _
      // Predicated region
      $region41: #{tpu_custom_call.1} parent=35 // pred_check
        %p292 = pneg %p61
      $region42: #{tpu_custom_call.1} parent=35 // pred_check_branch
        %294 = sbr.rel (%p292) target = $region44
      $region43: #{tpu_custom_call.1} parent=35 // pred_region
        %p295 = scmp.lt.s32.totalorder %s15, 1
        %s296 = scalar_select %p295, %s15, 1
        %s297 = smul.addr %s296, 18
        %s298 = smul.addr %s297, 8
        %s299 = scalar_lea.vmem %s1, %s298
      $region44: #{tpu_custom_call.1} parent=35 // pred_fallthru
        _
      // Predicated region
      $region45: #{tpu_custom_call.1} parent=35 // pred_check
        %p300 = pneg %p87
      $region46: #{tpu_custom_call.1} parent=35 // pred_check_branch
        %302 = sbr.rel (%p300) target = $region48
      $region47: #{tpu_custom_call.1} parent=35 // pred_region
        %p303 = scmp.lt.s32.totalorder %s15, 1
        %s304 = scalar_select %p303, %s15, 1
        %s305 = smul.addr %s304, 18
        %s306 = smul.addr %s305, 8
        %s307 = scalar_lea.vmem %s2, %s306
      $region48: #{tpu_custom_call.1} parent=35 // pred_fallthru
        _
      // Predicated region
      $region49: #{tpu_custom_call.1} parent=35 // pred_check
        %p308 = pneg %p113
      $region50: #{tpu_custom_call.1} parent=35 // pred_check_branch
        %310 = sbr.rel (%p308) target = $region52
      $region51: #{tpu_custom_call.1} parent=35 // pred_region
        %p311 = scmp.lt.s32.totalorder %s15, 1
        %s312 = scalar_select %p311, %s15, 1
        %s313 = smul.addr %s312, 18
        %s314 = smul.addr %s313, 8
        %s315 = scalar_lea.vmem %s3, %s314
      $region52: #{tpu_custom_call.1} parent=35 // pred_fallthru
        _
    $region36: #{tpu_custom_call.1} parent=5 // pred_fallthru
      _
    %p316 = scmp.le.s32.totalorder 1, %s15
    %p317 = scmp.lt.s32.totalorder %s15, 3
    %p318 = pnand %p316, %p317
    %p319 = pneg %p318
    // Predicated region
    $region53: #{tpu_custom_call.1} parent=5 // pred_check
      _
    $region54: #{tpu_custom_call.1} parent=5 // pred_check_branch
      %321 = sbr.rel (%p318) target = $region56
    $region55: #{tpu_custom_call.1} parent=5 // pred_region
      %s322 = ssub.s32 %s15, 1
      %p323 = scmp.lt.s32.totalorder %s20, 1
      %s324 = scalar_select %p323, %s20, 1
      %s325 = smul.addr %s324, 18
      %s326 = smul.addr %s325, 8
      %s327 = scalar_lea.vmem %s0, %s326
      %p328 = pneg %p41
      %p329 = pneg %p38
      %p330 = scmp.lt.s32.totalorder %s20, 1
      %s331 = scalar_select %p330, %s20, 1
      %s332 = smul.addr %s331, 18
      %s333 = smul.addr %s332, 8
      %s334 = scalar_lea.vmem %s1, %s333
      %p335 = pneg %p67
      %p336 = pneg %p64
      %p337 = scmp.lt.s32.totalorder %s20, 1
      %s338 = scalar_select %p337, %s20, 1
      %s339 = smul.addr %s338, 18
      %s340 = smul.addr %s339, 8
      %s341 = scalar_lea.vmem %s2, %s340
      %p342 = pneg %p93
      %p343 = pneg %p90
      %p344 = scmp.lt.s32.totalorder %s20, 1
      %s345 = scalar_select %p344, %s20, 1
      %s346 = smul.addr %s345, 18
      %s347 = smul.addr %s346, 8
      %s348 = scalar_lea.vmem %s3, %s347
      %p349 = pneg %p119
      %p350 = pneg %p116
      %p351 = pneg %p140
      %p352 = pneg %p137
      %p353 = pneg %p161
      %p354 = pneg %p158
      %p355 = pneg %p182
      %p356 = pneg %p179
      %p357 = pneg %p203
      %p358 = pneg %p200
      %p359 = pneg %p224
      %p360 = pneg %p221
      %p361 = pneg %p250
      %p362 = pneg %p247
      %p363 = scmp.lt.s32.totalorder %s20, 1
      %s364 = scalar_select %p363, %s20, 1
      %s365 = smul.addr %s364, 8
      %s366 = smul.addr %s365, 8
      %s367 = scalar_lea.vmem %s9, %s366
      %p368 = scmp.lt.s32.totalorder %s20, 1
      %s369 = scalar_select %p368, %s20, 1
      %s370 = smul.addr %s369, 18
      %s371 = smul.addr %s370, 8
      %s372 = scalar_lea.vmem %s0, %s371
      %p373 = scmp.lt.s32.totalorder %s20, 1
      %s374 = scalar_select %p373, %s20, 1
      %s375 = smul.addr %s374, 18
      %s376 = smul.addr %s375, 8
      %s377 = scalar_lea.vmem %s1, %s376
      %p378 = scmp.lt.s32.totalorder %s20, 1
      %s379 = scalar_select %p378, %s20, 1
      %s380 = smul.addr %s379, 18
      %s381 = smul.addr %s380, 8
      %s382 = scalar_lea.vmem %s2, %s381
      %p383 = scmp.lt.s32.totalorder %s20, 1
      %s384 = scalar_select %p383, %s20, 1
      %s385 = smul.addr %s384, 18
      %s386 = smul.addr %s385, 8
      %s387 = scalar_lea.vmem %s3, %s386
      %p388 = scmp.lt.s32.totalorder %s20, 1
      %s389 = scalar_select %p388, %s20, 1
      %s390 = smul.addr %s389, 8
      %s391 = smul.addr %s390, 8
      %s392 = scalar_lea.vmem %s9, %s391
      %v393 = vld [vmem:[%s372] sm:$0xff]
      %v394 = vld [vmem:[%s372 + $0x10] sm:$0xff]
      %v395 = vld [vmem:[%s372 + $0x20] sm:$0xff]
      %v396 = vld [vmem:[%s372 + $0x30] sm:$0xff]
      %v397 = vld [vmem:[%s372 + $0x40] sm:$0xff]
      %v398 = vld [vmem:[%s372 + $0x50] sm:$0xff]
      %v399 = vld [vmem:[%s372 + $0x60] sm:$0xff]
      %v400 = vld [vmem:[%s372 + $0x70] sm:$0xff]
      %v401 = vld [vmem:[%s4] sm:$0xf]
      %v402 = vld [vmem:[%s377] sm:$0xff]
      %v403 = vld [vmem:[%s377 + $0x10] sm:$0xff]
      %v404 = vld [vmem:[%s377 + $0x20] sm:$0xff]
      %v405 = vld [vmem:[%s377 + $0x30] sm:$0xff]
      %v406 = vld [vmem:[%s377 + $0x40] sm:$0xff]
      %v407 = vld [vmem:[%s377 + $0x50] sm:$0xff]
      %v408 = vld [vmem:[%s377 + $0x60] sm:$0xff]
      %v409 = vld [vmem:[%s377 + $0x70] sm:$0xff]
      %s410 = scalar_lea.vmem %s4, 4
      %v411 = vld [vmem:[%s410] sm:$0xf]
      %vm412 = vcmask 31744
      %v414 = vsel %vm412, %v402, 0
      %v417 = vsel %vm412, %v403, 0
      %v420 = vsel %vm412, %v404, 0
      %v423 = vsel %vm412, %v405, 0
      %v426 = vsel %vm412, %v406, 0
      %v429 = vsel %vm412, %v407, 0
      %v432 = vsel %vm412, %v408, 0
      %v435 = vsel %vm412, %v409, 0
      %vm437 = vcmask 1043456
      %v439 = vsel %vm437, %v411, 0
      %441 = vmatprep.subr.mxu0 0.0
      %442 = vmatpush1.msra.mxu0 %v439
      %443 = vmatprep.subr.mxu0 0.0
      %444 = vmatpush1.msra.mxu0 0.0
      %445 = vmatprep.subr.mxu0 0.0
      %446 = vmatpush1.msra.mxu0 0.0
      %447 = vmatprep.subr.mxu0 0.0
      %448 = vmatpush1.msra.mxu0 0.0
      %449 = vmatprep.subr.mxu0 0.0
      %450 = vmatpush1.msra.mxu0 0.0
      %451 = vmatprep.subr.mxu0 0.0
      %452 = vmatpush1.msra.mxu0 0.0
      %453 = vmatprep.subr.mxu0 0.0
      %454 = vmatpush1.msra.mxu0 0.0
      %455 = vmatprep.subr.mxu0 0.0
      %456 = vmatpush1.msra.mxu0 0.0
      %457 = vmatprep.subr.mxu0 0.0
      %458 = vmatpush1.msra.mxu0 0.0
      %459 = vmatprep.subr.mxu0 0.0
      %460 = vmatpush1.msra.mxu0 0.0
      %461 = vmatprep.subr.mxu0 0.0
      %462 = vmatpush1.msra.mxu0 0.0
      %463 = vmatprep.subr.mxu0 0.0
      %464 = vmatpush1.msra.mxu0 0.0
      %465 = vmatprep.subr.mxu0 0.0
      %466 = vmatpush1.msra.mxu0 0.0
      %467 = vmatprep.subr.mxu0 0.0
      %468 = vmatpush1.msra.mxu0 0.0
      %469 = vmatprep.subr.mxu0 0.0
      %470 = vmatpush1.msra.mxu0 0.0
      %471 = vmatprep.subr.mxu0 0.0
      %472 = vmatpush1.msra.mxu0 0.0
      %473 = vmatprep.subr.mxu0 0.0
      %474 = vmatpush1.msra.mxu0 0.0
      %475 = vmatprep.subr.mxu0 0.0
      %476 = vmatpush1.msra.mxu0 0.0
      %477 = vmatprep.subr.mxu0 0.0
      %478 = vmatpush1.msra.mxu0 0.0
      %479 = vmatprep.subr.mxu0 0.0
      %480 = vmatpush1.msra.mxu0 0.0
      %481 = vmatprep.subr.mxu0 0.0
      %482 = vmatpush1.msra.mxu0 0.0
      %483 = vmatprep.subr.mxu0 0.0
      %484 = vmatpush1.msra.mxu0 0.0
      %485 = vmatprep.subr.mxu0 0.0
      %486 = vmatpush1.msra.mxu0 0.0
      %487 = vmatprep.subr.mxu0 0.0
      %488 = vmatpush1.msra.mxu0 0.0
      %489 = vmatprep.subr.mxu0 0.0
      %490 = vmatpush1.msra.mxu0 0.0
      %491 = vmatprep.subr.mxu0 0.0
      %492 = vmatpush1.msra.mxu0 0.0
      %493 = vmatprep.subr.mxu0 0.0
      %494 = vmatpush1.msra.mxu0 0.0
      %495 = vmatprep.subr.mxu0 0.0
      %496 = vmatpush1.msra.mxu0 0.0
      %497 = vmatprep.subr.mxu0 0.0
      %498 = vmatpush1.msra.mxu0 0.0
      %499 = vmatprep.subr.mxu0 0.0
      %500 = vmatpush1.msra.mxu0 0.0
      %501 = vmatprep.subr.mxu0 0.0
      %502 = vmatpush1.msra.mxu0 0.0
      %503 = vmatprep.subr.mxu0 0.0
      %504 = vmatpush1.msra.mxu0 0.0
      %505 = vmatprep.mubr.f32.mxu0 0.0
      %506 = vmatmul.mubr.f32.gmra.mrb[0].mxu0 %v414
      %v507 = vpop.f32.mrb[0].mxu0
      %v508 = vadd.f32 0.0, %v507
      %v509 = vpop.f32.mrb[0].mxu0
      %510 = vmatprep.mubr.f32.mxu0 0.0
      %511 = vmatmul.mubr.f32.gmra.mrb[0].mxu0 %v417
      %v512 = vpop.f32.mrb[0].mxu0
      %v513 = vadd.f32 0.0, %v512
      %v514 = vpop.f32.mrb[0].mxu0
      %515 = vmatprep.mubr.f32.mxu0 0.0
      %516 = vmatmul.mubr.f32.gmra.mrb[0].mxu0 %v420
      %v517 = vpop.f32.mrb[0].mxu0
      %v518 = vadd.f32 0.0, %v517
      %v519 = vpop.f32.mrb[0].mxu0
      %520 = vmatprep.mubr.f32.mxu0 0.0
      %521 = vmatmul.mubr.f32.gmra.mrb[0].mxu0 %v423
      %v522 = vpop.f32.mrb[0].mxu0
      %v523 = vadd.f32 0.0, %v522
      %v524 = vpop.f32.mrb[0].mxu0
      %525 = vmatprep.mubr.f32.mxu0 0.0
      %526 = vmatmul.mubr.f32.gmra.mrb[0].mxu0 %v426
      %v527 = vpop.f32.mrb[0].mxu0
      %v528 = vadd.f32 0.0, %v527
      %v529 = vpop.f32.mrb[0].mxu0
      %530 = vmatprep.mubr.f32.mxu0 0.0
      %531 = vmatmul.mubr.f32.gmra.mrb[0].mxu0 %v429
      %v532 = vpop.f32.mrb[0].mxu0
      %v533 = vadd.f32 0.0, %v532
      %v534 = vpop.f32.mrb[0].mxu0
      %535 = vmatprep.mubr.f32.mxu0 0.0
      %536 = vmatmul.mubr.f32.gmra.mrb[0].mxu0 %v432
      %v537 = vpop.f32.mrb[0].mxu0
      %v538 = vadd.f32 0.0, %v537
      %v539 = vpop.f32.mrb[0].mxu0
      %540 = vmatprep.mubr.f32.mxu0 0.0
      %541 = vmatmul.mubr.f32.gmra.mrb[0].mxu0 %v435
      %v542 = vpop.f32.mrb[0].mxu0
      %v543 = vadd.f32 0.0, %v542
      %v544 = vpop.f32.mrb[0].mxu0
      %545 = vdwg.mxu0
      %v547 = vsel %vm412, %v393, 0
      %v550 = vsel %vm412, %v394, 0
      %v553 = vsel %vm412, %v395, 0
      %v556 = vsel %vm412, %v396, 0
      %v559 = vsel %vm412, %v397, 0
      %v562 = vsel %vm412, %v398, 0
      %v565 = vsel %vm412, %v399, 0
      %v568 = vsel %vm412, %v400, 0
      %v571 = vsel %vm437, %v401, 0
      %573 = vmatprep.subr.mxu0 0.0
      %574 = vmatpush1.msra.mxu0 %v571
      %575 = vmatprep.subr.mxu0 0.0
      %576 = vmatpush1.msra.mxu0 0.0
      %577 = vmatprep.subr.mxu0 0.0
      %578 = vmatpush1.msra.mxu0 0.0
      %579 = vmatprep.subr.mxu0 0.0
      %580 = vmatpush1.msra.mxu0 0.0
      %581 = vmatprep.subr.mxu0 0.0
      %582 = vmatpush1.msra.mxu0 0.0
      %583 = vmatprep.subr.mxu0 0.0
      %584 = vmatpush1.msra.mxu0 0.0
      %585 = vmatprep.subr.mxu0 0.0
      %586 = vmatpush1.msra.mxu0 0.0
      %587 = vmatprep.subr.mxu0 0.0
      %588 = vmatpush1.msra.mxu0 0.0
      %589 = vmatprep.subr.mxu0 0.0
      %590 = vmatpush1.msra.mxu0 0.0
      %591 = vmatprep.subr.mxu0 0.0
      %592 = vmatpush1.msra.mxu0 0.0
      %593 = vmatprep.subr.mxu0 0.0
      %594 = vmatpush1.msra.mxu0 0.0
      %595 = vmatprep.subr.mxu0 0.0
      %596 = vmatpush1.msra.mxu0 0.0
      %597 = vmatprep.subr.mxu0 0.0
      %598 = vmatpush1.msra.mxu0 0.0
      %599 = vmatprep.subr.mxu0 0.0
      %600 = vmatpush1.msra.mxu0 0.0
      %601 = vmatprep.subr.mxu0 0.0
      %602 = vmatpush1.msra.mxu0 0.0
      %603 = vmatprep.subr.mxu0 0.0
      %604 = vmatpush1.msra.mxu0 0.0
      %605 = vmatprep.subr.mxu0 0.0
      %606 = vmatpush1.msra.mxu0 0.0
      %607 = vmatprep.subr.mxu0 0.0
      %608 = vmatpush1.msra.mxu0 0.0
      %609 = vmatprep.subr.mxu0 0.0
      %610 = vmatpush1.msra.mxu0 0.0
      %611 = vmatprep.subr.mxu0 0.0
      %612 = vmatpush1.msra.mxu0 0.0
      %613 = vmatprep.subr.mxu0 0.0
      %614 = vmatpush1.msra.mxu0 0.0
      %615 = vmatprep.subr.mxu0 0.0
      %616 = vmatpush1.msra.mxu0 0.0
      %617 = vmatprep.subr.mxu0 0.0
      %618 = vmatpush1.msra.mxu0 0.0
      %619 = vmatprep.subr.mxu0 0.0
      %620 = vmatpush1.msra.mxu0 0.0
      %621 = vmatprep.subr.mxu0 0.0
      %622 = vmatpush1.msra.mxu0 0.0
      %623 = vmatprep.subr.mxu0 0.0
      %624 = vmatpush1.msra.mxu0 0.0
      %625 = vmatprep.subr.mxu0 0.0
      %626 = vmatpush1.msra.mxu0 0.0
      %627 = vmatprep.subr.mxu0 0.0
      %628 = vmatpush1.msra.mxu0 0.0
      %629 = vmatprep.subr.mxu0 0.0
      %630 = vmatpush1.msra.mxu0 0.0
      %631 = vmatprep.subr.mxu0 0.0
      %632 = vmatpush1.msra.mxu0 0.0
      %633 = vmatprep.subr.mxu0 0.0
      %634 = vmatpush1.msra.mxu0 0.0
      %635 = vmatprep.subr.mxu0 0.0
      %636 = vmatpush1.msra.mxu0 0.0
      %637 = vmatprep.mubr.f32.mxu0 0.0
      %638 = vmatmul.mubr.f32.gmra.mrb[0].mxu0 %v547
      %v639 = vpop.f32.mrb[0].mxu0
      %v640 = vadd.f32 %v508, %v639
      %v641 = vpop.f32.mrb[0].mxu0
      %642 = vmatprep.mubr.f32.mxu0 0.0
      %643 = vmatmul.mubr.f32.gmra.mrb[0].mxu0 %v550
      %v644 = vpop.f32.mrb[0].mxu0
      %v645 = vadd.f32 %v513, %v644
      %v646 = vpop.f32.mrb[0].mxu0
      %647 = vmatprep.mubr.f32.mxu0 0.0
      %648 = vmatmul.mubr.f32.gmra.mrb[0].mxu0 %v553
      %v649 = vpop.f32.mrb[0].mxu0
      %v650 = vadd.f32 %v518, %v649
      %v651 = vpop.f32.mrb[0].mxu0
      %652 = vmatprep.mubr.f32.mxu0 0.0
      %653 = vmatmul.mubr.f32.gmra.mrb[0].mxu0 %v556
      %v654 = vpop.f32.mrb[0].mxu0
      %v655 = vadd.f32 %v523, %v654
      %v656 = vpop.f32.mrb[0].mxu0
      %657 = vmatprep.mubr.f32.mxu0 0.0
      %658 = vmatmul.mubr.f32.gmra.mrb[0].mxu0 %v559
      %v659 = vpop.f32.mrb[0].mxu0
      %v660 = vadd.f32 %v528, %v659
      %v661 = vpop.f32.mrb[0].mxu0
      %662 = vmatprep.mubr.f32.mxu0 0.0
      %663 = vmatmul.mubr.f32.gmra.mrb[0].mxu0 %v562
      %v664 = vpop.f32.mrb[0].mxu0
      %v665 = vadd.f32 %v533, %v664
      %v666 = vpop.f32.mrb[0].mxu0
      %667 = vmatprep.mubr.f32.mxu0 0.0
      %668 = vmatmul.mubr.f32.gmra.mrb[0].mxu0 %v565
      %v669 = vpop.f32.mrb[0].mxu0
      %v670 = vadd.f32 %v538, %v669
      %v671 = vpop.f32.mrb[0].mxu0
      %672 = vmatprep.mubr.f32.mxu0 0.0
      %673 = vmatmul.mubr.f32.gmra.mrb[0].mxu0 %v568
      %v674 = vpop.f32.mrb[0].mxu0
      %v675 = vadd.f32 %v543, %v674
      %v676 = vpop.f32.mrb[0].mxu0
      %677 = vdwg.mxu0
      %v678 = vld [vmem:[%s372 + $0x1] sm:$0xff]
      %v679 = vld [vmem:[%s372 + $0x11] sm:$0xff]
      %v680 = vld [vmem:[%s372 + $0x21] sm:$0xff]
      %v681 = vld [vmem:[%s372 + $0x31] sm:$0xff]
      %v682 = vld [vmem:[%s372 + $0x41] sm:$0xff]
      %v683 = vld [vmem:[%s372 + $0x51] sm:$0xff]
      %v684 = vld [vmem:[%s372 + $0x61] sm:$0xff]
      %v685 = vld [vmem:[%s372 + $0x71] sm:$0xff]
      %s686 = scalar_lea.vmem %s4, 8
      %v687 = vld [vmem:[%s686] sm:$0xf]
      %v689 = vsel %vm412, %v678, 0
      %v692 = vsel %vm412, %v679, 0
      %v695 = vsel %vm412, %v680, 0
      %v698 = vsel %vm412, %v681, 0
      %v701 = vsel %vm412, %v682, 0
      %v704 = vsel %vm412, %v683, 0
      %v707 = vsel %vm412, %v684, 0
      %v710 = vsel %vm412, %v685, 0
      %v713 = vsel %vm437, %v687, 0
      %715 = vmatprep.subr.mxu0 0.0
      %716 = vmatpush1.msra.mxu0 %v713
      %717 = vmatprep.subr.mxu0 0.0
      %718 = vmatpush1.msra.mxu0 0.0
      %719 = vmatprep.subr.mxu0 0.0
      %720 = vmatpush1.msra.mxu0 0.0
      %721 = vmatprep.subr.mxu0 0.0
      %722 = vmatpush1.msra.mxu0 0.0
      %723 = vmatprep.subr.mxu0 0.0
      %724 = vmatpush1.msra.mxu0 0.0
      %725 = vmatprep.subr.mxu0 0.0
      %726 = vmatpush1.msra.mxu0 0.0
      %727 = vmatprep.subr.mxu0 0.0
      %728 = vmatpush1.msra.mxu0 0.0
      %729 = vmatprep.subr.mxu0 0.0
      %730 = vmatpush1.msra.mxu0 0.0
      %731 = vmatprep.subr.mxu0 0.0
      %732 = vmatpush1.msra.mxu0 0.0
      %733 = vmatprep.subr.mxu0 0.0
      %734 = vmatpush1.msra.mxu0 0.0
      %735 = vmatprep.subr.mxu0 0.0
      %736 = vmatpush1.msra.mxu0 0.0
      %737 = vmatprep.subr.mxu0 0.0
      %738 = vmatpush1.msra.mxu0 0.0
      %739 = vmatprep.subr.mxu0 0.0
      %740 = vmatpush1.msra.mxu0 0.0
      %741 = vmatprep.subr.mxu0 0.0
      %742 = vmatpush1.msra.mxu0 0.0
      %743 = vmatprep.subr.mxu0 0.0
      %744 = vmatpush1.msra.mxu0 0.0
      %745 = vmatprep.subr.mxu0 0.0
      %746 = vmatpush1.msra.mxu0 0.0
      %747 = vmatprep.subr.mxu0 0.0
      %748 = vmatpush1.msra.mxu0 0.0
      %749 = vmatprep.subr.mxu0 0.0
      %750 = vmatpush1.msra.mxu0 0.0
      %751 = vmatprep.subr.mxu0 0.0
      %752 = vmatpush1.msra.mxu0 0.0
      %753 = vmatprep.subr.mxu0 0.0
      %754 = vmatpush1.msra.mxu0 0.0
      %755 = vmatprep.subr.mxu0 0.0
      %756 = vmatpush1.msra.mxu0 0.0
      %757 = vmatprep.subr.mxu0 0.0
      %758 = vmatpush1.msra.mxu0 0.0
      %759 = vmatprep.subr.mxu0 0.0
      %760 = vmatpush1.msra.mxu0 0.0
      %761 = vmatprep.subr.mxu0 0.0
      %762 = vmatpush1.msra.mxu0 0.0
      %763 = vmatprep.subr.mxu0 0.0
      %764 = vmatpush1.msra.mxu0 0.0
      %765 = vmatprep.subr.mxu0 0.0
      %766 = vmatpush1.msra.mxu0 0.0
      %767 = vmatprep.subr.mxu0 0.0
      %768 = vmatpush1.msra.mxu0 0.0
      %769 = vmatprep.subr.mxu0 0.0
      %770 = vmatpush1.msra.mxu0 0.0
      %771 = vmatprep.subr.mxu0 0.0
      %772 = vmatpush1.msra.mxu0 0.0
      %773 = vmatprep.subr.mxu0 0.0
      %774 = vmatpush1.msra.mxu0 0.0
      %775 = vmatprep.subr.mxu0 0.0
      %776 = vmatpush1.msra.mxu0 0.0
      %777 = vmatprep.subr.mxu0 0.0
      %778 = vmatpush1.msra.mxu0 0.0
      %779 = vmatprep.mubr.f32.mxu0 0.0
      %780 = vmatmul.mubr.f32.gmra.mrb[0].mxu0 %v689
      %v781 = vpop.f32.mrb[0].mxu0
      %v782 = vadd.f32 0.0, %v781
      %v783 = vpop.f32.mrb[0].mxu0
      %784 = vmatprep.mubr.f32.mxu0 0.0
      %785 = vmatmul.mubr.f32.gmra.mrb[0].mxu0 %v692
      %v786 = vpop.f32.mrb[0].mxu0
      %v787 = vadd.f32 0.0, %v786
      %v788 = vpop.f32.mrb[0].mxu0
      %789 = vmatprep.mubr.f32.mxu0 0.0
      %790 = vmatmul.mubr.f32.gmra.mrb[0].mxu0 %v695
      %v791 = vpop.f32.mrb[0].mxu0
      %v792 = vadd.f32 0.0, %v791
      %v793 = vpop.f32.mrb[0].mxu0
      %794 = vmatprep.mubr.f32.mxu0 0.0
      %795 = vmatmul.mubr.f32.gmra.mrb[0].mxu0 %v698
      %v796 = vpop.f32.mrb[0].mxu0
      %v797 = vadd.f32 0.0, %v796
      %v798 = vpop.f32.mrb[0].mxu0
      %799 = vmatprep.mubr.f32.mxu0 0.0
      %800 = vmatmul.mubr.f32.gmra.mrb[0].mxu0 %v701
      %v801 = vpop.f32.mrb[0].mxu0
      %v802 = vadd.f32 0.0, %v801
      %v803 = vpop.f32.mrb[0].mxu0
      %804 = vmatprep.mubr.f32.mxu0 0.0
      %805 = vmatmul.mubr.f32.gmra.mrb[0].mxu0 %v704
      %v806 = vpop.f32.mrb[0].mxu0
      %v807 = vadd.f32 0.0, %v806
      %v808 = vpop.f32.mrb[0].mxu0
      %809 = vmatprep.mubr.f32.mxu0 0.0
      %810 = vmatmul.mubr.f32.gmra.mrb[0].mxu0 %v707
      %v811 = vpop.f32.mrb[0].mxu0
      %v812 = vadd.f32 0.0, %v811
      %v813 = vpop.f32.mrb[0].mxu0
      %814 = vmatprep.mubr.f32.mxu0 0.0
      %815 = vmatmul.mubr.f32.gmra.mrb[0].mxu0 %v710
      %v816 = vpop.f32.mrb[0].mxu0
      %v817 = vadd.f32 0.0, %v816
      %v818 = vpop.f32.mrb[0].mxu0
      %819 = vdwg.mxu0
      %v820 = vadd.f32 %v640, %v782
      %v821 = vadd.f32 %v645, %v787
      %v822 = vadd.f32 %v650, %v792
      %v823 = vadd.f32 %v655, %v797
      %v824 = vadd.f32 %v660, %v802
      %v825 = vadd.f32 %v665, %v807
      %v826 = vadd.f32 %v670, %v812
      %v827 = vadd.f32 %v675, %v817
      %v828 = vld [vmem:[%s382] sm:$0xff]
      %v829 = vld [vmem:[%s382 + $0x10] sm:$0xff]
      %v830 = vld [vmem:[%s382 + $0x20] sm:$0xff]
      %v831 = vld [vmem:[%s382 + $0x30] sm:$0xff]
      %v832 = vld [vmem:[%s382 + $0x40] sm:$0xff]
      %v833 = vld [vmem:[%s382 + $0x50] sm:$0xff]
      %v834 = vld [vmem:[%s382 + $0x60] sm:$0xff]
      %v835 = vld [vmem:[%s382 + $0x70] sm:$0xff]
      %s836 = scalar_lea.vmem %s4, 12
      %v837 = vld [vmem:[%s836] sm:$0xf]
      %v839 = vsel %vm412, %v828, 0
      %v842 = vsel %vm412, %v829, 0
      %v845 = vsel %vm412, %v830, 0
      %v848 = vsel %vm412, %v831, 0
      %v851 = vsel %vm412, %v832, 0
      %v854 = vsel %vm412, %v833, 0
      %v857 = vsel %vm412, %v834, 0
      %v860 = vsel %vm412, %v835, 0
      %v863 = vsel %vm437, %v837, 0
      %865 = vmatprep.subr.mxu0 0.0
      %866 = vmatpush1.msra.mxu0 %v863
      %867 = vmatprep.subr.mxu0 0.0
      %868 = vmatpush1.msra.mxu0 0.0
      %869 = vmatprep.subr.mxu0 0.0
      %870 = vmatpush1.msra.mxu0 0.0
      %871 = vmatprep.subr.mxu0 0.0
      %872 = vmatpush1.msra.mxu0 0.0
      %873 = vmatprep.subr.mxu0 0.0
      %874 = vmatpush1.msra.mxu0 0.0
      %875 = vmatprep.subr.mxu0 0.0
      %876 = vmatpush1.msra.mxu0 0.0
      %877 = vmatprep.subr.mxu0 0.0
      %878 = vmatpush1.msra.mxu0 0.0
      %879 = vmatprep.subr.mxu0 0.0
      %880 = vmatpush1.msra.mxu0 0.0
      %881 = vmatprep.subr.mxu0 0.0
      %882 = vmatpush1.msra.mxu0 0.0
      %883 = vmatprep.subr.mxu0 0.0
      %884 = vmatpush1.msra.mxu0 0.0
      %885 = vmatprep.subr.mxu0 0.0
      %886 = vmatpush1.msra.mxu0 0.0
      %887 = vmatprep.subr.mxu0 0.0
      %888 = vmatpush1.msra.mxu0 0.0
      %889 = vmatprep.subr.mxu0 0.0
      %890 = vmatpush1.msra.mxu0 0.0
      %891 = vmatprep.subr.mxu0 0.0
      %892 = vmatpush1.msra.mxu0 0.0
      %893 = vmatprep.subr.mxu0 0.0
      %894 = vmatpush1.msra.mxu0 0.0
      %895 = vmatprep.subr.mxu0 0.0
      %896 = vmatpush1.msra.mxu0 0.0
      %897 = vmatprep.subr.mxu0 0.0
      %898 = vmatpush1.msra.mxu0 0.0
      %899 = vmatprep.subr.mxu0 0.0
      %900 = vmatpush1.msra.mxu0 0.0
      %901 = vmatprep.subr.mxu0 0.0
      %902 = vmatpush1.msra.mxu0 0.0
      %903 = vmatprep.subr.mxu0 0.0
      %904 = vmatpush1.msra.mxu0 0.0
      %905 = vmatprep.subr.mxu0 0.0
      %906 = vmatpush1.msra.mxu0 0.0
      %907 = vmatprep.subr.mxu0 0.0
      %908 = vmatpush1.msra.mxu0 0.0
      %909 = vmatprep.subr.mxu0 0.0
      %910 = vmatpush1.msra.mxu0 0.0
      %911 = vmatprep.subr.mxu0 0.0
      %912 = vmatpush1.msra.mxu0 0.0
      %913 = vmatprep.subr.mxu0 0.0
      %914 = vmatpush1.msra.mxu0 0.0
      %915 = vmatprep.subr.mxu0 0.0
      %916 = vmatpush1.msra.mxu0 0.0
      %917 = vmatprep.subr.mxu0 0.0
      %918 = vmatpush1.msra.mxu0 0.0
      %919 = vmatprep.subr.mxu0 0.0
      %920 = vmatpush1.msra.mxu0 0.0
      %921 = vmatprep.subr.mxu0 0.0
      %922 = vmatpush1.msra.mxu0 0.0
      %923 = vmatprep.subr.mxu0 0.0
      %924 = vmatpush1.msra.mxu0 0.0
      %925 = vmatprep.subr.mxu0 0.0
      %926 = vmatpush1.msra.mxu0 0.0
      %927 = vmatprep.subr.mxu0 0.0
      %928 = vmatpush1.msra.mxu0 0.0
      %929 = vmatprep.mubr.f32.mxu0 0.0
      %930 = vmatmul.mubr.f32.gmra.mrb[0].mxu0 %v839
      %v931 = vpop.f32.mrb[0].mxu0
      %v932 = vadd.f32 0.0, %v931
      %v933 = vpop.f32.mrb[0].mxu0
      %934 = vmatprep.mubr.f32.mxu0 0.0
      %935 = vmatmul.mubr.f32.gmra.mrb[0].mxu0 %v842
      %v936 = vpop.f32.mrb[0].mxu0
      %v937 = vadd.f32 0.0, %v936
      %v938 = vpop.f32.mrb[0].mxu0
      %939 = vmatprep.mubr.f32.mxu0 0.0
      %940 = vmatmul.mubr.f32.gmra.mrb[0].mxu0 %v845
      %v941 = vpop.f32.mrb[0].mxu0
      %v942 = vadd.f32 0.0, %v941
      %v943 = vpop.f32.mrb[0].mxu0
      %944 = vmatprep.mubr.f32.mxu0 0.0
      %945 = vmatmul.mubr.f32.gmra.mrb[0].mxu0 %v848
      %v946 = vpop.f32.mrb[0].mxu0
      %v947 = vadd.f32 0.0, %v946
      %v948 = vpop.f32.mrb[0].mxu0
      %949 = vmatprep.mubr.f32.mxu0 0.0
      %950 = vmatmul.mubr.f32.gmra.mrb[0].mxu0 %v851
      %v951 = vpop.f32.mrb[0].mxu0
      %v952 = vadd.f32 0.0, %v951
      %v953 = vpop.f32.mrb[0].mxu0
      %954 = vmatprep.mubr.f32.mxu0 0.0
      %955 = vmatmul.mubr.f32.gmra.mrb[0].mxu0 %v854
      %v956 = vpop.f32.mrb[0].mxu0
      %v957 = vadd.f32 0.0, %v956
      %v958 = vpop.f32.mrb[0].mxu0
      %959 = vmatprep.mubr.f32.mxu0 0.0
      %960 = vmatmul.mubr.f32.gmra.mrb[0].mxu0 %v857
      %v961 = vpop.f32.mrb[0].mxu0
      %v962 = vadd.f32 0.0, %v961
      %v963 = vpop.f32.mrb[0].mxu0
      %964 = vmatprep.mubr.f32.mxu0 0.0
      %965 = vmatmul.mubr.f32.gmra.mrb[0].mxu0 %v860
      %v966 = vpop.f32.mrb[0].mxu0
      %v967 = vadd.f32 0.0, %v966
      %v968 = vpop.f32.mrb[0].mxu0
      %969 = vdwg.mxu0
      %v970 = vadd.f32 %v820, %v932
      %v971 = vadd.f32 %v821, %v937
      %v972 = vadd.f32 %v822, %v942
      %v973 = vadd.f32 %v823, %v947
      %v974 = vadd.f32 %v824, %v952
      %v975 = vadd.f32 %v825, %v957
      %v976 = vadd.f32 %v826, %v962
      %v977 = vadd.f32 %v827, %v967
      %v978 = vld [vmem:[%s387] sm:$0xff]
      %v979 = vld [vmem:[%s387 + $0x10] sm:$0xff]
      %v980 = vld [vmem:[%s387 + $0x20] sm:$0xff]
      %v981 = vld [vmem:[%s387 + $0x30] sm:$0xff]
      %v982 = vld [vmem:[%s387 + $0x40] sm:$0xff]
      %v983 = vld [vmem:[%s387 + $0x50] sm:$0xff]
      %v984 = vld [vmem:[%s387 + $0x60] sm:$0xff]
      %v985 = vld [vmem:[%s387 + $0x70] sm:$0xff]
      %s986 = scalar_lea.vmem %s4, 16
      %v987 = vld [vmem:[%s986] sm:$0xf]
      %v989 = vsel %vm412, %v978, 0
      %v992 = vsel %vm412, %v979, 0
      %v995 = vsel %vm412, %v980, 0
      %v998 = vsel %vm412, %v981, 0
      %v1001 = vsel %vm412, %v982, 0
      %v1004 = vsel %vm412, %v983, 0
      %v1007 = vsel %vm412, %v984, 0
      %v1010 = vsel %vm412, %v985, 0
      %v1013 = vsel %vm437, %v987, 0
      %1015 = vmatprep.subr.mxu0 0.0
      %1016 = vmatpush1.msra.mxu0 %v1013
      %1017 = vmatprep.subr.mxu0 0.0
      %1018 = vmatpush1.msra.mxu0 0.0
      %1019 = vmatprep.subr.mxu0 0.0
      %1020 = vmatpush1.msra.mxu0 0.0
      %1021 = vmatprep.subr.mxu0 0.0
      %1022 = vmatpush1.msra.mxu0 0.0
      %1023 = vmatprep.subr.mxu0 0.0
      %1024 = vmatpush1.msra.mxu0 0.0
      %1025 = vmatprep.subr.mxu0 0.0
      %1026 = vmatpush1.msra.mxu0 0.0
      %1027 = vmatprep.subr.mxu0 0.0
      %1028 = vmatpush1.msra.mxu0 0.0
      %1029 = vmatprep.subr.mxu0 0.0
      %1030 = vmatpush1.msra.mxu0 0.0
      %1031 = vmatprep.subr.mxu0 0.0
      %1032 = vmatpush1.msra.mxu0 0.0
      %1033 = vmatprep.subr.mxu0 0.0
      %1034 = vmatpush1.msra.mxu0 0.0
      %1035 = vmatprep.subr.mxu0 0.0
      %1036 = vmatpush1.msra.mxu0 0.0
      %1037 = vmatprep.subr.mxu0 0.0
      %1038 = vmatpush1.msra.mxu0 0.0
      %1039 = vmatprep.subr.mxu0 0.0
      %1040 = vmatpush1.msra.mxu0 0.0
      %1041 = vmatprep.subr.mxu0 0.0
      %1042 = vmatpush1.msra.mxu0 0.0
      %1043 = vmatprep.subr.mxu0 0.0
      %1044 = vmatpush1.msra.mxu0 0.0
      %1045 = vmatprep.subr.mxu0 0.0
      %1046 = vmatpush1.msra.mxu0 0.0
      %1047 = vmatprep.subr.mxu0 0.0
      %1048 = vmatpush1.msra.mxu0 0.0
      %1049 = vmatprep.subr.mxu0 0.0
      %1050 = vmatpush1.msra.mxu0 0.0
      %1051 = vmatprep.subr.mxu0 0.0
      %1052 = vmatpush1.msra.mxu0 0.0
      %1053 = vmatprep.subr.mxu0 0.0
      %1054 = vmatpush1.msra.mxu0 0.0
      %1055 = vmatprep.subr.mxu0 0.0
      %1056 = vmatpush1.msra.mxu0 0.0
      %1057 = vmatprep.subr.mxu0 0.0
      %1058 = vmatpush1.msra.mxu0 0.0
      %1059 = vmatprep.subr.mxu0 0.0
      %1060 = vmatpush1.msra.mxu0 0.0
      %1061 = vmatprep.subr.mxu0 0.0
      %1062 = vmatpush1.msra.mxu0 0.0
      %1063 = vmatprep.subr.mxu0 0.0
      %1064 = vmatpush1.msra.mxu0 0.0
      %1065 = vmatprep.subr.mxu0 0.0
      %1066 = vmatpush1.msra.mxu0 0.0
      %1067 = vmatprep.subr.mxu0 0.0
      %1068 = vmatpush1.msra.mxu0 0.0
      %1069 = vmatprep.subr.mxu0 0.0
      %1070 = vmatpush1.msra.mxu0 0.0
      %1071 = vmatprep.subr.mxu0 0.0
      %1072 = vmatpush1.msra.mxu0 0.0
      %1073 = vmatprep.subr.mxu0 0.0
      %1074 = vmatpush1.msra.mxu0 0.0
      %1075 = vmatprep.subr.mxu0 0.0
      %1076 = vmatpush1.msra.mxu0 0.0
      %1077 = vmatprep.subr.mxu0 0.0
      %1078 = vmatpush1.msra.mxu0 0.0
      %1079 = vmatprep.mubr.f32.mxu0 0.0
      %1080 = vmatmul.mubr.f32.gmra.mrb[0].mxu0 %v989
      %v1081 = vpop.f32.mrb[0].mxu0
      %v1082 = vadd.f32 0.0, %v1081
      %v1083 = vpop.f32.mrb[0].mxu0
      %1084 = vmatprep.mubr.f32.mxu0 0.0
      %1085 = vmatmul.mubr.f32.gmra.mrb[0].mxu0 %v992
      %v1086 = vpop.f32.mrb[0].mxu0
      %v1087 = vadd.f32 0.0, %v1086
      %v1088 = vpop.f32.mrb[0].mxu0
      %1089 = vmatprep.mubr.f32.mxu0 0.0
      %1090 = vmatmul.mubr.f32.gmra.mrb[0].mxu0 %v995
      %v1091 = vpop.f32.mrb[0].mxu0
      %v1092 = vadd.f32 0.0, %v1091
      %v1093 = vpop.f32.mrb[0].mxu0
      %1094 = vmatprep.mubr.f32.mxu0 0.0
      %1095 = vmatmul.mubr.f32.gmra.mrb[0].mxu0 %v998
      %v1096 = vpop.f32.mrb[0].mxu0
      %v1097 = vadd.f32 0.0, %v1096
      %v1098 = vpop.f32.mrb[0].mxu0
      %1099 = vmatprep.mubr.f32.mxu0 0.0
      %1100 = vmatmul.mubr.f32.gmra.mrb[0].mxu0 %v1001
      %v1101 = vpop.f32.mrb[0].mxu0
      %v1102 = vadd.f32 0.0, %v1101
      %v1103 = vpop.f32.mrb[0].mxu0
      %1104 = vmatprep.mubr.f32.mxu0 0.0
      %1105 = vmatmul.mubr.f32.gmra.mrb[0].mxu0 %v1004
      %v1106 = vpop.f32.mrb[0].mxu0
      %v1107 = vadd.f32 0.0, %v1106
      %v1108 = vpop.f32.mrb[0].mxu0
      %1109 = vmatprep.mubr.f32.mxu0 0.0
      %1110 = vmatmul.mubr.f32.gmra.mrb[0].mxu0 %v1007
      %v1111 = vpop.f32.mrb[0].mxu0
      %v1112 = vadd.f32 0.0, %v1111
      %v1113 = vpop.f32.mrb[0].mxu0
      %1114 = vmatprep.mubr.f32.mxu0 0.0
      %1115 = vmatmul.mubr.f32.gmra.mrb[0].mxu0 %v1010
      %v1116 = vpop.f32.mrb[0].mxu0
      %v1117 = vadd.f32 0.0, %v1116
      %v1118 = vpop.f32.mrb[0].mxu0
      %1119 = vdwg.mxu0
      %v1120 = vadd.f32 %v970, %v1082
      %v1121 = vadd.f32 %v971, %v1087
      %v1122 = vadd.f32 %v972, %v1092
      %v1123 = vadd.f32 %v973, %v1097
      %v1124 = vadd.f32 %v974, %v1102
      %v1125 = vadd.f32 %v975, %v1107
      %v1126 = vadd.f32 %v976, %v1112
      %v1127 = vadd.f32 %v977, %v1117
      %v1128 = vld [vmem:[%s382 + $0x1] sm:$0xff]
      %v1129 = vld [vmem:[%s382 + $0x11] sm:$0xff]
      %v1130 = vld [vmem:[%s382 + $0x21] sm:$0xff]
      %v1131 = vld [vmem:[%s382 + $0x31] sm:$0xff]
      %v1132 = vld [vmem:[%s382 + $0x41] sm:$0xff]
      %v1133 = vld [vmem:[%s382 + $0x51] sm:$0xff]
      %v1134 = vld [vmem:[%s382 + $0x61] sm:$0xff]
      %v1135 = vld [vmem:[%s382 + $0x71] sm:$0xff]
      %s1136 = scalar_lea.vmem %s4, 20
      %v1137 = vld [vmem:[%s1136] sm:$0xf]
      %v1139 = vsel %vm412, %v1128, 0
      %v1142 = vsel %vm412, %v1129, 0
      %v1145 = vsel %vm412, %v1130, 0
      %v1148 = vsel %vm412, %v1131, 0
      %v1151 = vsel %vm412, %v1132, 0
      %v1154 = vsel %vm412, %v1133, 0
      %v1157 = vsel %vm412, %v1134, 0
      %v1160 = vsel %vm412, %v1135, 0
      %v1163 = vsel %vm437, %v1137, 0
      %1165 = vmatprep.subr.mxu0 0.0
      %1166 = vmatpush1.msra.mxu0 %v1163
      %1167 = vmatprep.subr.mxu0 0.0
      %1168 = vmatpush1.msra.mxu0 0.0
      %1169 = vmatprep.subr.mxu0 0.0
      %1170 = vmatpush1.msra.mxu0 0.0
      %1171 = vmatprep.subr.mxu0 0.0
      %1172 = vmatpush1.msra.mxu0 0.0
      %1173 = vmatprep.subr.mxu0 0.0
      %1174 = vmatpush1.msra.mxu0 0.0
      %1175 = vmatprep.subr.mxu0 0.0
      %1176 = vmatpush1.msra.mxu0 0.0
      %1177 = vmatprep.subr.mxu0 0.0
      %1178 = vmatpush1.msra.mxu0 0.0
      %1179 = vmatprep.subr.mxu0 0.0
      %1180 = vmatpush1.msra.mxu0 0.0
      %1181 = vmatprep.subr.mxu0 0.0
      %1182 = vmatpush1.msra.mxu0 0.0
      %1183 = vmatprep.subr.mxu0 0.0
      %1184 = vmatpush1.msra.mxu0 0.0
      %1185 = vmatprep.subr.mxu0 0.0
      %1186 = vmatpush1.msra.mxu0 0.0
      %1187 = vmatprep.subr.mxu0 0.0
      %1188 = vmatpush1.msra.mxu0 0.0
      %1189 = vmatprep.subr.mxu0 0.0
      %1190 = vmatpush1.msra.mxu0 0.0
      %1191 = vmatprep.subr.mxu0 0.0
      %1192 = vmatpush1.msra.mxu0 0.0
      %1193 = vmatprep.subr.mxu0 0.0
      %1194 = vmatpush1.msra.mxu0 0.0
      %1195 = vmatprep.subr.mxu0 0.0
      %1196 = vmatpush1.msra.mxu0 0.0
      %1197 = vmatprep.subr.mxu0 0.0
      %1198 = vmatpush1.msra.mxu0 0.0
      %1199 = vmatprep.subr.mxu0 0.0
      %1200 = vmatpush1.msra.mxu0 0.0
      %1201 = vmatprep.subr.mxu0 0.0
      %1202 = vmatpush1.msra.mxu0 0.0
      %1203 = vmatprep.subr.mxu0 0.0
      %1204 = vmatpush1.msra.mxu0 0.0
      %1205 = vmatprep.subr.mxu0 0.0
      %1206 = vmatpush1.msra.mxu0 0.0
      %1207 = vmatprep.subr.mxu0 0.0
      %1208 = vmatpush1.msra.mxu0 0.0
      %1209 = vmatprep.subr.mxu0 0.0
      %1210 = vmatpush1.msra.mxu0 0.0
      %1211 = vmatprep.subr.mxu0 0.0
      %1212 = vmatpush1.msra.mxu0 0.0
      %1213 = vmatprep.subr.mxu0 0.0
      %1214 = vmatpush1.msra.mxu0 0.0
      %1215 = vmatprep.subr.mxu0 0.0
      %1216 = vmatpush1.msra.mxu0 0.0
      %1217 = vmatprep.subr.mxu0 0.0
      %1218 = vmatpush1.msra.mxu0 0.0
      %1219 = vmatprep.subr.mxu0 0.0
      %1220 = vmatpush1.msra.mxu0 0.0
      %1221 = vmatprep.subr.mxu0 0.0
      %1222 = vmatpush1.msra.mxu0 0.0
      %1223 = vmatprep.subr.mxu0 0.0
      %1224 = vmatpush1.msra.mxu0 0.0
      %1225 = vmatprep.subr.mxu0 0.0
      %1226 = vmatpush1.msra.mxu0 0.0
      %1227 = vmatprep.subr.mxu0 0.0
      %1228 = vmatpush1.msra.mxu0 0.0
      %1229 = vmatprep.mubr.f32.mxu0 0.0
      %1230 = vmatmul.mubr.f32.gmra.mrb[0].mxu0 %v1139
      %v1231 = vpop.f32.mrb[0].mxu0
      %v1232 = vadd.f32 0.0, %v1231
      %v1233 = vpop.f32.mrb[0].mxu0
      %1234 = vmatprep.mubr.f32.mxu0 0.0
      %1235 = vmatmul.mubr.f32.gmra.mrb[0].mxu0 %v1142
      %v1236 = vpop.f32.mrb[0].mxu0
      %v1237 = vadd.f32 0.0, %v1236
      %v1238 = vpop.f32.mrb[0].mxu0
      %1239 = vmatprep.mubr.f32.mxu0 0.0
      %1240 = vmatmul.mubr.f32.gmra.mrb[0].mxu0 %v1145
      %v1241 = vpop.f32.mrb[0].mxu0
      %v1242 = vadd.f32 0.0, %v1241
      %v1243 = vpop.f32.mrb[0].mxu0
      %1244 = vmatprep.mubr.f32.mxu0 0.0
      %1245 = vmatmul.mubr.f32.gmra.mrb[0].mxu0 %v1148
      %v1246 = vpop.f32.mrb[0].mxu0
      %v1247 = vadd.f32 0.0, %v1246
      %v1248 = vpop.f32.mrb[0].mxu0
      %1249 = vmatprep.mubr.f32.mxu0 0.0
      %1250 = vmatmul.mubr.f32.gmra.mrb[0].mxu0 %v1151
      %v1251 = vpop.f32.mrb[0].mxu0
      %v1252 = vadd.f32 0.0, %v1251
      %v1253 = vpop.f32.mrb[0].mxu0
      %1254 = vmatprep.mubr.f32.mxu0 0.0
      %1255 = vmatmul.mubr.f32.gmra.mrb[0].mxu0 %v1154
      %v1256 = vpop.f32.mrb[0].mxu0
      %v1257 = vadd.f32 0.0, %v1256
      %v1258 = vpop.f32.mrb[0].mxu0
      %1259 = vmatprep.mubr.f32.mxu0 0.0
      %1260 = vmatmul.mubr.f32.gmra.mrb[0].mxu0 %v1157
      %v1261 = vpop.f32.mrb[0].mxu0
      %v1262 = vadd.f32 0.0, %v1261
      %v1263 = vpop.f32.mrb[0].mxu0
      %1264 = vmatprep.mubr.f32.mxu0 0.0
      %1265 = vmatmul.mubr.f32.gmra.mrb[0].mxu0 %v1160
      %v1266 = vpop.f32.mrb[0].mxu0
      %v1267 = vadd.f32 0.0, %v1266
      %v1268 = vpop.f32.mrb[0].mxu0
      %1269 = vdwg.mxu0
      %v1270 = vadd.f32 %v1120, %v1232
      %v1271 = vadd.f32 %v1121, %v1237
      %v1272 = vadd.f32 %v1122, %v1242
      %v1273 = vadd.f32 %v1123, %v1247
      %v1274 = vadd.f32 %v1124, %v1252
      %v1275 = vadd.f32 %v1125, %v1257
      %v1276 = vadd.f32 %v1126, %v1262
      %v1277 = vadd.f32 %v1127, %v1267
      %s1278 = scalar_lea.vmem %s372, 16
      %v1279 = vld [vmem:[%s1278] sm:$0xff]
      %v1280 = vld [vmem:[%s1278 + $0x10] sm:$0xff]
      %v1281 = vld [vmem:[%s1278 + $0x20] sm:$0xff]
      %v1282 = vld [vmem:[%s1278 + $0x30] sm:$0xff]
      %v1283 = vld [vmem:[%s1278 + $0x40] sm:$0xff]
      %v1284 = vld [vmem:[%s1278 + $0x50] sm:$0xff]
      %v1285 = vld [vmem:[%s1278 + $0x60] sm:$0xff]
      %v1286 = vld [vmem:[%s1278 + $0x70] sm:$0xff]
      %s1287 = scalar_lea.vmem %s4, 24
      %v1288 = vld [vmem:[%s1287] sm:$0xf]
      %v1290 = vsel %vm412, %v1279, 0
      %v1293 = vsel %vm412, %v1280, 0
      %v1296 = vsel %vm412, %v1281, 0
      %v1299 = vsel %vm412, %v1282, 0
      %v1302 = vsel %vm412, %v1283, 0
      %v1305 = vsel %vm412, %v1284, 0
      %v1308 = vsel %vm412, %v1285, 0
      %v1311 = vsel %vm412, %v1286, 0
      %v1314 = vsel %vm437, %v1288, 0
      %1316 = vmatprep.subr.mxu0 0.0
      %1317 = vmatpush1.msra.mxu0 %v1314
      %1318 = vmatprep.subr.mxu0 0.0
      %1319 = vmatpush1.msra.mxu0 0.0
      %1320 = vmatprep.subr.mxu0 0.0
      %1321 = vmatpush1.msra.mxu0 0.0
      %1322 = vmatprep.subr.mxu0 0.0
      %1323 = vmatpush1.msra.mxu0 0.0
      %1324 = vmatprep.subr.mxu0 0.0
      %1325 = vmatpush1.msra.mxu0 0.0
      %1326 = vmatprep.subr.mxu0 0.0
      %1327 = vmatpush1.msra.mxu0 0.0
      %1328 = vmatprep.subr.mxu0 0.0
      %1329 = vmatpush1.msra.mxu0 0.0
      %1330 = vmatprep.subr.mxu0 0.0
      %1331 = vmatpush1.msra.mxu0 0.0
      %1332 = vmatprep.subr.mxu0 0.0
      %1333 = vmatpush1.msra.mxu0 0.0
      %1334 = vmatprep.subr.mxu0 0.0
      %1335 = vmatpush1.msra.mxu0 0.0
      %1336 = vmatprep.subr.mxu0 0.0
      %1337 = vmatpush1.msra.mxu0 0.0
      %1338 = vmatprep.subr.mxu0 0.0
      %1339 = vmatpush1.msra.mxu0 0.0
      %1340 = vmatprep.subr.mxu0 0.0
      %1341 = vmatpush1.msra.mxu0 0.0
      %1342 = vmatprep.subr.mxu0 0.0
      %1343 = vmatpush1.msra.mxu0 0.0
      %1344 = vmatprep.subr.mxu0 0.0
      %1345 = vmatpush1.msra.mxu0 0.0
      %1346 = vmatprep.subr.mxu0 0.0
      %1347 = vmatpush1.msra.mxu0 0.0
      %1348 = vmatprep.subr.mxu0 0.0
      %1349 = vmatpush1.msra.mxu0 0.0
      %1350 = vmatprep.subr.mxu0 0.0
      %1351 = vmatpush1.msra.mxu0 0.0
      %1352 = vmatprep.subr.mxu0 0.0
      %1353 = vmatpush1.msra.mxu0 0.0
      %1354 = vmatprep.subr.mxu0 0.0
      %1355 = vmatpush1.msra.mxu0 0.0
      %1356 = vmatprep.subr.mxu0 0.0
      %1357 = vmatpush1.msra.mxu0 0.0
      %1358 = vmatprep.subr.mxu0 0.0
      %1359 = vmatpush1.msra.mxu0 0.0
      %1360 = vmatprep.subr.mxu0 0.0
      %1361 = vmatpush1.msra.mxu0 0.0
      %1362 = vmatprep.subr.mxu0 0.0
      %1363 = vmatpush1.msra.mxu0 0.0
      %1364 = vmatprep.subr.mxu0 0.0
      %1365 = vmatpush1.msra.mxu0 0.0
      %1366 = vmatprep.subr.mxu0 0.0
      %1367 = vmatpush1.msra.mxu0 0.0
      %1368 = vmatprep.subr.mxu0 0.0
      %1369 = vmatpush1.msra.mxu0 0.0
      %1370 = vmatprep.subr.mxu0 0.0
      %1371 = vmatpush1.msra.mxu0 0.0
      %1372 = vmatprep.subr.mxu0 0.0
      %1373 = vmatpush1.msra.mxu0 0.0
      %1374 = vmatprep.subr.mxu0 0.0
      %1375 = vmatpush1.msra.mxu0 0.0
      %1376 = vmatprep.subr.mxu0 0.0
      %1377 = vmatpush1.msra.mxu0 0.0
      %1378 = vmatprep.subr.mxu0 0.0
      %1379 = vmatpush1.msra.mxu0 0.0
      %1380 = vmatprep.mubr.f32.mxu0 0.0
      %1381 = vmatmul.mubr.f32.gmra.mrb[0].mxu0 %v1290
      %v1382 = vpop.f32.mrb[0].mxu0
      %v1383 = vadd.f32 0.0, %v1382
      %v1384 = vpop.f32.mrb[0].mxu0
      %1385 = vmatprep.mubr.f32.mxu0 0.0
      %1386 = vmatmul.mubr.f32.gmra.mrb[0].mxu0 %v1293
      %v1387 = vpop.f32.mrb[0].mxu0
      %v1388 = vadd.f32 0.0, %v1387
      %v1389 = vpop.f32.mrb[0].mxu0
      %1390 = vmatprep.mubr.f32.mxu0 0.0
      %1391 = vmatmul.mubr.f32.gmra.mrb[0].mxu0 %v1296
      %v1392 = vpop.f32.mrb[0].mxu0
      %v1393 = vadd.f32 0.0, %v1392
      %v1394 = vpop.f32.mrb[0].mxu0
      %1395 = vmatprep.mubr.f32.mxu0 0.0
      %1396 = vmatmul.mubr.f32.gmra.mrb[0].mxu0 %v1299
      %v1397 = vpop.f32.mrb[0].mxu0
      %v1398 = vadd.f32 0.0, %v1397
      %v1399 = vpop.f32.mrb[0].mxu0
      %1400 = vmatprep.mubr.f32.mxu0 0.0
      %1401 = vmatmul.mubr.f32.gmra.mrb[0].mxu0 %v1302
      %v1402 = vpop.f32.mrb[0].mxu0
      %v1403 = vadd.f32 0.0, %v1402
      %v1404 = vpop.f32.mrb[0].mxu0
      %1405 = vmatprep.mubr.f32.mxu0 0.0
      %1406 = vmatmul.mubr.f32.gmra.mrb[0].mxu0 %v1305
      %v1407 = vpop.f32.mrb[0].mxu0
      %v1408 = vadd.f32 0.0, %v1407
      %v1409 = vpop.f32.mrb[0].mxu0
      %1410 = vmatprep.mubr.f32.mxu0 0.0
      %1411 = vmatmul.mubr.f32.gmra.mrb[0].mxu0 %v1308
      %v1412 = vpop.f32.mrb[0].mxu0
      %v1413 = vadd.f32 0.0, %v1412
      %v1414 = vpop.f32.mrb[0].mxu0
      %1415 = vmatprep.mubr.f32.mxu0 0.0
      %1416 = vmatmul.mubr.f32.gmra.mrb[0].mxu0 %v1311
      %v1417 = vpop.f32.mrb[0].mxu0
      %v1418 = vadd.f32 0.0, %v1417
      %v1419 = vpop.f32.mrb[0].mxu0
      %1420 = vdwg.mxu0
      %v1421 = vadd.f32 %v1270, %v1383
      %v1422 = vadd.f32 %v1271, %v1388
      %v1423 = vadd.f32 %v1272, %v1393
      %v1424 = vadd.f32 %v1273, %v1398
      %v1425 = vadd.f32 %v1274, %v1403
      %v1426 = vadd.f32 %v1275, %v1408
      %v1427 = vadd.f32 %v1276, %v1413
      %v1428 = vadd.f32 %v1277, %v1418
      %s1429 = scalar_lea.vmem %s377, 16
      %v1430 = vld [vmem:[%s1429] sm:$0xff]
      %v1431 = vld [vmem:[%s1429 + $0x10] sm:$0xff]
      %v1432 = vld [vmem:[%s1429 + $0x20] sm:$0xff]
      %v1433 = vld [vmem:[%s1429 + $0x30] sm:$0xff]
      %v1434 = vld [vmem:[%s1429 + $0x40] sm:$0xff]
      %v1435 = vld [vmem:[%s1429 + $0x50] sm:$0xff]
      %v1436 = vld [vmem:[%s1429 + $0x60] sm:$0xff]
      %v1437 = vld [vmem:[%s1429 + $0x70] sm:$0xff]
      %s1438 = scalar_lea.vmem %s4, 28
      %v1439 = vld [vmem:[%s1438] sm:$0xf]
      %v1441 = vsel %vm412, %v1430, 0
      %v1444 = vsel %vm412, %v1431, 0
      %v1447 = vsel %vm412, %v1432, 0
      %v1450 = vsel %vm412, %v1433, 0
      %v1453 = vsel %vm412, %v1434, 0
      %v1456 = vsel %vm412, %v1435, 0
      %v1459 = vsel %vm412, %v1436, 0
      %v1462 = vsel %vm412, %v1437, 0
      %v1465 = vsel %vm437, %v1439, 0
      %1467 = vmatprep.subr.mxu0 0.0
      %1468 = vmatpush1.msra.mxu0 %v1465
      %1469 = vmatprep.subr.mxu0 0.0
      %1470 = vmatpush1.msra.mxu0 0.0
      %1471 = vmatprep.subr.mxu0 0.0
      %1472 = vmatpush1.msra.mxu0 0.0
      %1473 = vmatprep.subr.mxu0 0.0
      %1474 = vmatpush1.msra.mxu0 0.0
      %1475 = vmatprep.subr.mxu0 0.0
      %1476 = vmatpush1.msra.mxu0 0.0
      %1477 = vmatprep.subr.mxu0 0.0
      %1478 = vmatpush1.msra.mxu0 0.0
      %1479 = vmatprep.subr.mxu0 0.0
      %1480 = vmatpush1.msra.mxu0 0.0
      %1481 = vmatprep.subr.mxu0 0.0
      %1482 = vmatpush1.msra.mxu0 0.0
      %1483 = vmatprep.subr.mxu0 0.0
      %1484 = vmatpush1.msra.mxu0 0.0
      %1485 = vmatprep.subr.mxu0 0.0
      %1486 = vmatpush1.msra.mxu0 0.0
      %1487 = vmatprep.subr.mxu0 0.0
      %1488 = vmatpush1.msra.mxu0 0.0
      %1489 = vmatprep.subr.mxu0 0.0
      %1490 = vmatpush1.msra.mxu0 0.0
      %1491 = vmatprep.subr.mxu0 0.0
      %1492 = vmatpush1.msra.mxu0 0.0
      %1493 = vmatprep.subr.mxu0 0.0
      %1494 = vmatpush1.msra.mxu0 0.0
      %1495 = vmatprep.subr.mxu0 0.0
      %1496 = vmatpush1.msra.mxu0 0.0
      %1497 = vmatprep.subr.mxu0 0.0
      %1498 = vmatpush1.msra.mxu0 0.0
      %1499 = vmatprep.subr.mxu0 0.0
      %1500 = vmatpush1.msra.mxu0 0.0
      %1501 = vmatprep.subr.mxu0 0.0
      %1502 = vmatpush1.msra.mxu0 0.0
      %1503 = vmatprep.subr.mxu0 0.0
      %1504 = vmatpush1.msra.mxu0 0.0
      %1505 = vmatprep.subr.mxu0 0.0
      %1506 = vmatpush1.msra.mxu0 0.0
      %1507 = vmatprep.subr.mxu0 0.0
      %1508 = vmatpush1.msra.mxu0 0.0
      %1509 = vmatprep.subr.mxu0 0.0
      %1510 = vmatpush1.msra.mxu0 0.0
      %1511 = vmatprep.subr.mxu0 0.0
      %1512 = vmatpush1.msra.mxu0 0.0
      %1513 = vmatprep.subr.mxu0 0.0
      %1514 = vmatpush1.msra.mxu0 0.0
      %1515 = vmatprep.subr.mxu0 0.0
      %1516 = vmatpush1.msra.mxu0 0.0
      %1517 = vmatprep.subr.mxu0 0.0
      %1518 = vmatpush1.msra.mxu0 0.0
      %1519 = vmatprep.subr.mxu0 0.0
      %1520 = vmatpush1.msra.mxu0 0.0
      %1521 = vmatprep.subr.mxu0 0.0
      %1522 = vmatpush1.msra.mxu0 0.0
      %1523 = vmatprep.subr.mxu0 0.0
      %1524 = vmatpush1.msra.mxu0 0.0
      %1525 = vmatprep.subr.mxu0 0.0
      %1526 = vmatpush1.msra.mxu0 0.0
      %1527 = vmatprep.subr.mxu0 0.0
      %1528 = vmatpush1.msra.mxu0 0.0
      %1529 = vmatprep.subr.mxu0 0.0
      %1530 = vmatpush1.msra.mxu0 0.0
      %1531 = vmatprep.mubr.f32.mxu0 0.0
      %1532 = vmatmul.mubr.f32.gmra.mrb[0].mxu0 %v1441
      %v1533 = vpop.f32.mrb[0].mxu0
      %v1534 = vadd.f32 0.0, %v1533
      %v1535 = vpop.f32.mrb[0].mxu0
      %1536 = vmatprep.mubr.f32.mxu0 0.0
      %1537 = vmatmul.mubr.f32.gmra.mrb[0].mxu0 %v1444
      %v1538 = vpop.f32.mrb[0].mxu0
      %v1539 = vadd.f32 0.0, %v1538
      %v1540 = vpop.f32.mrb[0].mxu0
      %1541 = vmatprep.mubr.f32.mxu0 0.0
      %1542 = vmatmul.mubr.f32.gmra.mrb[0].mxu0 %v1447
      %v1543 = vpop.f32.mrb[0].mxu0
      %v1544 = vadd.f32 0.0, %v1543
      %v1545 = vpop.f32.mrb[0].mxu0
      %1546 = vmatprep.mubr.f32.mxu0 0.0
      %1547 = vmatmul.mubr.f32.gmra.mrb[0].mxu0 %v1450
      %v1548 = vpop.f32.mrb[0].mxu0
      %v1549 = vadd.f32 0.0, %v1548
      %v1550 = vpop.f32.mrb[0].mxu0
      %1551 = vmatprep.mubr.f32.mxu0 0.0
      %1552 = vmatmul.mubr.f32.gmra.mrb[0].mxu0 %v1453
      %v1553 = vpop.f32.mrb[0].mxu0
      %v1554 = vadd.f32 0.0, %v1553
      %v1555 = vpop.f32.mrb[0].mxu0
      %1556 = vmatprep.mubr.f32.mxu0 0.0
      %1557 = vmatmul.mubr.f32.gmra.mrb[0].mxu0 %v1456
      %v1558 = vpop.f32.mrb[0].mxu0
      %v1559 = vadd.f32 0.0, %v1558
      %v1560 = vpop.f32.mrb[0].mxu0
      %1561 = vmatprep.mubr.f32.mxu0 0.0
      %1562 = vmatmul.mubr.f32.gmra.mrb[0].mxu0 %v1459
      %v1563 = vpop.f32.mrb[0].mxu0
      %v1564 = vadd.f32 0.0, %v1563
      %v1565 = vpop.f32.mrb[0].mxu0
      %1566 = vmatprep.mubr.f32.mxu0 0.0
      %1567 = vmatmul.mubr.f32.gmra.mrb[0].mxu0 %v1462
      %v1568 = vpop.f32.mrb[0].mxu0
      %v1569 = vadd.f32 0.0, %v1568
      %v1570 = vpop.f32.mrb[0].mxu0
      %1571 = vdwg.mxu0
      %v1572 = vadd.f32 %v1421, %v1534
      %v1573 = vadd.f32 %v1422, %v1539
      %v1574 = vadd.f32 %v1423, %v1544
      %v1575 = vadd.f32 %v1424, %v1549
      %v1576 = vadd.f32 %v1425, %v1554
      %v1577 = vadd.f32 %v1426, %v1559
      %v1578 = vadd.f32 %v1427, %v1564
      %v1579 = vadd.f32 %v1428, %v1569
      %v1580 = vld [vmem:[%s1278 + $0x1] sm:$0xff]
      %v1581 = vld [vmem:[%s1278 + $0x11] sm:$0xff]
      %v1582 = vld [vmem:[%s1278 + $0x21] sm:$0xff]
      %v1583 = vld [vmem:[%s1278 + $0x31] sm:$0xff]
      %v1584 = vld [vmem:[%s1278 + $0x41] sm:$0xff]
      %v1585 = vld [vmem:[%s1278 + $0x51] sm:$0xff]
      %v1586 = vld [vmem:[%s1278 + $0x61] sm:$0xff]
      %v1587 = vld [vmem:[%s1278 + $0x71] sm:$0xff]
      %s1588 = scalar_lea.vmem %s4, 32
      %v1589 = vld [vmem:[%s1588] sm:$0xf]
      %v1591 = vsel %vm412, %v1580, 0
      %v1594 = vsel %vm412, %v1581, 0
      %v1597 = vsel %vm412, %v1582, 0
      %v1600 = vsel %vm412, %v1583, 0
      %v1603 = vsel %vm412, %v1584, 0
      %v1606 = vsel %vm412, %v1585, 0
      %v1609 = vsel %vm412, %v1586, 0
      %v1612 = vsel %vm412, %v1587, 0
      %v1615 = vsel %vm437, %v1589, 0
      %1617 = vmatprep.subr.mxu0 0.0
      %1618 = vmatpush1.msra.mxu0 %v1615
      %1619 = vmatprep.subr.mxu0 0.0
      %1620 = vmatpush1.msra.mxu0 0.0
      %1621 = vmatprep.subr.mxu0 0.0
      %1622 = vmatpush1.msra.mxu0 0.0
      %1623 = vmatprep.subr.mxu0 0.0
      %1624 = vmatpush1.msra.mxu0 0.0
      %1625 = vmatprep.subr.mxu0 0.0
      %1626 = vmatpush1.msra.mxu0 0.0
      %1627 = vmatprep.subr.mxu0 0.0
      %1628 = vmatpush1.msra.mxu0 0.0
      %1629 = vmatprep.subr.mxu0 0.0
      %1630 = vmatpush1.msra.mxu0 0.0
      %1631 = vmatprep.subr.mxu0 0.0
      %1632 = vmatpush1.msra.mxu0 0.0
      %1633 = vmatprep.subr.mxu0 0.0
      %1634 = vmatpush1.msra.mxu0 0.0
      %1635 = vmatprep.subr.mxu0 0.0
      %1636 = vmatpush1.msra.mxu0 0.0
      %1637 = vmatprep.subr.mxu0 0.0
      %1638 = vmatpush1.msra.mxu0 0.0
      %1639 = vmatprep.subr.mxu0 0.0
      %1640 = vmatpush1.msra.mxu0 0.0
      %1641 = vmatprep.subr.mxu0 0.0
      %1642 = vmatpush1.msra.mxu0 0.0
      %1643 = vmatprep.subr.mxu0 0.0
      %1644 = vmatpush1.msra.mxu0 0.0
      %1645 = vmatprep.subr.mxu0 0.0
      %1646 = vmatpush1.msra.mxu0 0.0
      %1647 = vmatprep.subr.mxu0 0.0
      %1648 = vmatpush1.msra.mxu0 0.0
      %1649 = vmatprep.subr.mxu0 0.0
      %1650 = vmatpush1.msra.mxu0 0.0
      %1651 = vmatprep.subr.mxu0 0.0
      %1652 = vmatpush1.msra.mxu0 0.0
      %1653 = vmatprep.subr.mxu0 0.0
      %1654 = vmatpush1.msra.mxu0 0.0
      %1655 = vmatprep.subr.mxu0 0.0
      %1656 = vmatpush1.msra.mxu0 0.0
      %1657 = vmatprep.subr.mxu0 0.0
      %1658 = vmatpush1.msra.mxu0 0.0
      %1659 = vmatprep.subr.mxu0 0.0
      %1660 = vmatpush1.msra.mxu0 0.0
      %1661 = vmatprep.subr.mxu0 0.0
      %1662 = vmatpush1.msra.mxu0 0.0
      %1663 = vmatprep.subr.mxu0 0.0
      %1664 = vmatpush1.msra.mxu0 0.0
      %1665 = vmatprep.subr.mxu0 0.0
      %1666 = vmatpush1.msra.mxu0 0.0
      %1667 = vmatprep.subr.mxu0 0.0
      %1668 = vmatpush1.msra.mxu0 0.0
      %1669 = vmatprep.subr.mxu0 0.0
      %1670 = vmatpush1.msra.mxu0 0.0
      %1671 = vmatprep.subr.mxu0 0.0
      %1672 = vmatpush1.msra.mxu0 0.0
      %1673 = vmatprep.subr.mxu0 0.0
      %1674 = vmatpush1.msra.mxu0 0.0
      %1675 = vmatprep.subr.mxu0 0.0
      %1676 = vmatpush1.msra.mxu0 0.0
      %1677 = vmatprep.subr.mxu0 0.0
      %1678 = vmatpush1.msra.mxu0 0.0
      %1679 = vmatprep.subr.mxu0 0.0
      %1680 = vmatpush1.msra.mxu0 0.0
      %1681 = vmatprep.mubr.f32.mxu0 0.0
      %1682 = vmatmul.mubr.f32.gmra.mrb[0].mxu0 %v1591
      %v1683 = vpop.f32.mrb[0].mxu0
      %v1684 = vadd.f32 0.0, %v1683
      %v1685 = vpop.f32.mrb[0].mxu0
      %1686 = vmatprep.mubr.f32.mxu0 0.0
      %1687 = vmatmul.mubr.f32.gmra.mrb[0].mxu0 %v1594
      %v1688 = vpop.f32.mrb[0].mxu0
      %v1689 = vadd.f32 0.0, %v1688
      %v1690 = vpop.f32.mrb[0].mxu0
      %1691 = vmatprep.mubr.f32.mxu0 0.0
      %1692 = vmatmul.mubr.f32.gmra.mrb[0].mxu0 %v1597
      %v1693 = vpop.f32.mrb[0].mxu0
      %v1694 = vadd.f32 0.0, %v1693
      %v1695 = vpop.f32.mrb[0].mxu0
      %1696 = vmatprep.mubr.f32.mxu0 0.0
      %1697 = vmatmul.mubr.f32.gmra.mrb[0].mxu0 %v1600
      %v1698 = vpop.f32.mrb[0].mxu0
      %v1699 = vadd.f32 0.0, %v1698
      %v1700 = vpop.f32.mrb[0].mxu0
      %1701 = vmatprep.mubr.f32.mxu0 0.0
      %1702 = vmatmul.mubr.f32.gmra.mrb[0].mxu0 %v1603
      %v1703 = vpop.f32.mrb[0].mxu0
      %v1704 = vadd.f32 0.0, %v1703
      %v1705 = vpop.f32.mrb[0].mxu0
      %1706 = vmatprep.mubr.f32.mxu0 0.0
      %1707 = vmatmul.mubr.f32.gmra.mrb[0].mxu0 %v1606
      %v1708 = vpop.f32.mrb[0].mxu0
      %v1709 = vadd.f32 0.0, %v1708
      %v1710 = vpop.f32.mrb[0].mxu0
      %1711 = vmatprep.mubr.f32.mxu0 0.0
      %1712 = vmatmul.mubr.f32.gmra.mrb[0].mxu0 %v1609
      %v1713 = vpop.f32.mrb[0].mxu0
      %v1714 = vadd.f32 0.0, %v1713
      %v1715 = vpop.f32.mrb[0].mxu0
      %1716 = vmatprep.mubr.f32.mxu0 0.0
      %1717 = vmatmul.mubr.f32.gmra.mrb[0].mxu0 %v1612
      %v1718 = vpop.f32.mrb[0].mxu0
      %v1719 = vadd.f32 0.0, %v1718
      %v1720 = vpop.f32.mrb[0].mxu0
      %1721 = vdwg.mxu0
      %v1722 = vadd.f32 %v1572, %v1684
      %v1723 = vadd.f32 %v1573, %v1689
      %v1724 = vadd.f32 %v1574, %v1694
      %v1725 = vadd.f32 %v1575, %v1699
      %v1726 = vadd.f32 %v1576, %v1704
      %v1727 = vadd.f32 %v1577, %v1709
      %v1728 = vadd.f32 %v1578, %v1714
      %v1729 = vadd.f32 %v1579, %v1719
      %v1730 = vld [vmem:[%s5] sm:$0x1]
      %v1732 = vlaneseq
      %v1733 = vshrl.u32 %v1732, 7
      %v1734 = vsub.s32 0, %v1733
      %v1735 = vrot.slane %v1730, %v1734
      %v1737 = vadd.f32 %v1722, %v1735
      %v1738 = vadd.f32 %v1723, %v1735
      %v1739 = vadd.f32 %v1724, %v1735
      %v1740 = vadd.f32 %v1725, %v1735
      %v1741 = vadd.f32 %v1726, %v1735
      %v1742 = vadd.f32 %v1727, %v1735
      %v1743 = vadd.f32 %v1728, %v1735
      %v1744 = vadd.f32 %v1729, %v1735
      %v1745 = vmax.f32 %v1737, 0.0
      %v1746 = vmax.f32 %v1738, 0.0
      %v1747 = vmax.f32 %v1739, 0.0
      %v1748 = vmax.f32 %v1740, 0.0
      %v1749 = vmax.f32 %v1741, 0.0
      %v1750 = vmax.f32 %v1742, 0.0
      %v1751 = vmax.f32 %v1743, 0.0
      %v1752 = vmax.f32 %v1744, 0.0
      %vm1753 = vcmask 64512
      %1754 = vst.msk [vmem:[#allocation2] sm:$0xff] %vm1753, 0.0
      %vm1755 = vcmask 58368
      %1756 = vst.msk [vmem:[#allocation2 + $0x8] sm:$0x3] %vm1755, 0.0
      %1757 = vst.msk [vmem:[#allocation2 + $0x10] sm:$0xff] %vm1753, 0.0
      %1758 = vst.msk [vmem:[#allocation2 + $0x18] sm:$0x3] %vm1755, 0.0
      %1759 = vst.msk [vmem:[#allocation2 + $0x20] sm:$0xff] %vm1753, 0.0
      %1760 = vst.msk [vmem:[#allocation2 + $0x28] sm:$0x3] %vm1755, 0.0
      %1761 = vst.msk [vmem:[#allocation2 + $0x30] sm:$0xff] %vm1753, 0.0
      %1762 = vst.msk [vmem:[#allocation2 + $0x38] sm:$0x3] %vm1755, 0.0
      %1763 = vst.msk [vmem:[#allocation2 + $0x40] sm:$0xff] %vm1753, 0.0
      %1764 = vst.msk [vmem:[#allocation2 + $0x48] sm:$0x3] %vm1755, 0.0
      %1765 = vst.msk [vmem:[#allocation2 + $0x50] sm:$0xff] %vm1753, 0.0
      %1766 = vst.msk [vmem:[#allocation2 + $0x58] sm:$0x3] %vm1755, 0.0
      %1767 = vst.msk [vmem:[#allocation2 + $0x60] sm:$0xff] %vm1753, 0.0
      %1768 = vst.msk [vmem:[#allocation2 + $0x68] sm:$0x3] %vm1755, 0.0
      %1769 = vst.msk [vmem:[#allocation2 + $0x70] sm:$0xff] %vm1753, 0.0
      %1770 = vst.msk [vmem:[#allocation2 + $0x78] sm:$0x3] %vm1755, 0.0
      %1771 = vst.msk [vmem:[#allocation2 + $0x80] sm:$0xff] %vm1753, 0.0
      %1772 = vst.msk [vmem:[#allocation2 + $0x88] sm:$0x3] %vm1755, 0.0
      %1773 = vst.msk [vmem:[#allocation2 + $0x90] sm:$0xff] %vm1753, 0.0
      %1774 = vst.msk [vmem:[#allocation2 + $0x98] sm:$0x3] %vm1755, 0.0
      %s1775 = scalar_lea.vmem [#allocation2], 16
      %1776 = vst.msk [vmem:[%s1775 + $0x1] sm:$0xff] %vm1753, %v1745
      %1777 = vst.msk [vmem:[%s1775 + $0x11] sm:$0xff] %vm1753, %v1746
      %1778 = vst.msk [vmem:[%s1775 + $0x21] sm:$0xff] %vm1753, %v1747
      %1779 = vst.msk [vmem:[%s1775 + $0x31] sm:$0xff] %vm1753, %v1748
      %1780 = vst.msk [vmem:[%s1775 + $0x41] sm:$0xff] %vm1753, %v1749
      %1781 = vst.msk [vmem:[%s1775 + $0x51] sm:$0xff] %vm1753, %v1750
      %1782 = vst.msk [vmem:[%s1775 + $0x61] sm:$0xff] %vm1753, %v1751
      %1783 = vst.msk [vmem:[%s1775 + $0x71] sm:$0xff] %vm1753, %v1752
      %v1784 = vld [vmem:[%s387] sm:$0xff]
      %v1785 = vld [vmem:[%s387 + $0x10] sm:$0xff]
      %v1786 = vld [vmem:[%s387 + $0x20] sm:$0xff]
      %v1787 = vld [vmem:[%s387 + $0x30] sm:$0xff]
      %v1788 = vld [vmem:[%s387 + $0x40] sm:$0xff]
      %v1789 = vld [vmem:[%s387 + $0x50] sm:$0xff]
      %v1790 = vld [vmem:[%s387 + $0x60] sm:$0xff]
      %v1791 = vld [vmem:[%s387 + $0x70] sm:$0xff]
      %v1792 = vld [vmem:[%s7] sm:$0xf]
      %v1793 = vld [vmem:[#allocation2] sm:$0xff]
      %v1794 = vld [vmem:[#allocation2 + $0x10] sm:$0xff]
      %v1795 = vld [vmem:[#allocation2 + $0x20] sm:$0xff]
      %v1796 = vld [vmem:[#allocation2 + $0x30] sm:$0xff]
      %v1797 = vld [vmem:[#allocation2 + $0x40] sm:$0xff]
      %v1798 = vld [vmem:[#allocation2 + $0x50] sm:$0xff]
      %v1799 = vld [vmem:[#allocation2 + $0x60] sm:$0xff]
      %v1800 = vld [vmem:[#allocation2 + $0x70] sm:$0xff]
      %v1801 = vld [vmem:[%s6] sm:$0xff]
      %v1803 = vsel %vm1753, %v1793, 0
      %v1806 = vsel %vm1753, %v1794, 0
      %v1809 = vsel %vm1753, %v1795, 0
      %v1812 = vsel %vm1753, %v1796, 0
      %v1815 = vsel %vm1753, %v1797, 0
      %v1818 = vsel %vm1753, %v1798, 0
      %v1821 = vsel %vm1753, %v1799, 0
      %v1824 = vsel %vm1753, %v1800, 0
      %1826 = vmatprep.subr.mxu0 0.0
      %1827 = vmatpush1.msra.mxu0 %v1801
      %1828 = vmatprep.subr.mxu0 0.0
      %1829 = vmatpush1.msra.mxu0 0.0
      %1830 = vmatprep.subr.mxu0 0.0
      %1831 = vmatpush1.msra.mxu0 0.0
      %1832 = vmatprep.subr.mxu0 0.0
      %1833 = vmatpush1.msra.mxu0 0.0
      %1834 = vmatprep.subr.mxu0 0.0
      %1835 = vmatpush1.msra.mxu0 0.0
      %1836 = vmatprep.subr.mxu0 0.0
      %1837 = vmatpush1.msra.mxu0 0.0
      %1838 = vmatprep.subr.mxu0 0.0
      %1839 = vmatpush1.msra.mxu0 0.0
      %1840 = vmatprep.subr.mxu0 0.0
      %1841 = vmatpush1.msra.mxu0 0.0
      %1842 = vmatprep.subr.mxu0 0.0
      %1843 = vmatpush1.msra.mxu0 0.0
      %1844 = vmatprep.subr.mxu0 0.0
      %1845 = vmatpush1.msra.mxu0 0.0
      %1846 = vmatprep.subr.mxu0 0.0
      %1847 = vmatpush1.msra.mxu0 0.0
      %1848 = vmatprep.subr.mxu0 0.0
      %1849 = vmatpush1.msra.mxu0 0.0
      %1850 = vmatprep.subr.mxu0 0.0
      %1851 = vmatpush1.msra.mxu0 0.0
      %1852 = vmatprep.subr.mxu0 0.0
      %1853 = vmatpush1.msra.mxu0 0.0
      %1854 = vmatprep.subr.mxu0 0.0
      %1855 = vmatpush1.msra.mxu0 0.0
      %1856 = vmatprep.subr.mxu0 0.0
      %1857 = vmatpush1.msra.mxu0 0.0
      %1858 = vmatprep.subr.mxu0 0.0
      %1859 = vmatpush1.msra.mxu0 0.0
      %1860 = vmatprep.subr.mxu0 0.0
      %1861 = vmatpush1.msra.mxu0 0.0
      %1862 = vmatprep.subr.mxu0 0.0
      %1863 = vmatpush1.msra.mxu0 0.0
      %1864 = vmatprep.subr.mxu0 0.0
      %1865 = vmatpush1.msra.mxu0 0.0
      %1866 = vmatprep.subr.mxu0 0.0
      %1867 = vmatpush1.msra.mxu0 0.0
      %1868 = vmatprep.subr.mxu0 0.0
      %1869 = vmatpush1.msra.mxu0 0.0
      %1870 = vmatprep.subr.mxu0 0.0
      %1871 = vmatpush1.msra.mxu0 0.0
      %1872 = vmatprep.subr.mxu0 0.0
      %1873 = vmatpush1.msra.mxu0 0.0
      %1874 = vmatprep.subr.mxu0 0.0
      %1875 = vmatpush1.msra.mxu0 0.0
      %1876 = vmatprep.subr.mxu0 0.0
      %1877 = vmatpush1.msra.mxu0 0.0
      %1878 = vmatprep.subr.mxu0 0.0
      %1879 = vmatpush1.msra.mxu0 0.0
      %1880 = vmatprep.subr.mxu0 0.0
      %1881 = vmatpush1.msra.mxu0 0.0
      %1882 = vmatprep.subr.mxu0 0.0
      %1883 = vmatpush1.msra.mxu0 0.0
      %1884 = vmatprep.subr.mxu0 0.0
      %1885 = vmatpush1.msra.mxu0 0.0
      %1886 = vmatprep.subr.mxu0 0.0
      %1887 = vmatpush1.msra.mxu0 0.0
      %1888 = vmatprep.subr.mxu0 0.0
      %1889 = vmatpush1.msra.mxu0 0.0
      %1890 = vmatprep.mubr.f32.mxu0 0.0
      %1891 = vmatmul.mubr.f32.gmra.mrb[0].mxu0 %v1803
      %v1892 = vpop.f32.mrb[0].mxu0
      %v1893 = vadd.f32 0.0, %v1892
      %v1894 = vpop.f32.mrb[0].mxu0
      %1895 = vmatprep.mubr.f32.mxu0 0.0
      %1896 = vmatmul.mubr.f32.gmra.mrb[0].mxu0 %v1806
      %v1897 = vpop.f32.mrb[0].mxu0
      %v1898 = vadd.f32 0.0, %v1897
      %v1899 = vpop.f32.mrb[0].mxu0
      %1900 = vmatprep.mubr.f32.mxu0 0.0
      %1901 = vmatmul.mubr.f32.gmra.mrb[0].mxu0 %v1809
      %v1902 = vpop.f32.mrb[0].mxu0
      %v1903 = vadd.f32 0.0, %v1902
      %v1904 = vpop.f32.mrb[0].mxu0
      %1905 = vmatprep.mubr.f32.mxu0 0.0
      %1906 = vmatmul.mubr.f32.gmra.mrb[0].mxu0 %v1812
      %v1907 = vpop.f32.mrb[0].mxu0
      %v1908 = vadd.f32 0.0, %v1907
      %v1909 = vpop.f32.mrb[0].mxu0
      %1910 = vmatprep.mubr.f32.mxu0 0.0
      %1911 = vmatmul.mubr.f32.gmra.mrb[0].mxu0 %v1815
      %v1912 = vpop.f32.mrb[0].mxu0
      %v1913 = vadd.f32 0.0, %v1912
      %v1914 = vpop.f32.mrb[0].mxu0
      %1915 = vmatprep.mubr.f32.mxu0 0.0
      %1916 = vmatmul.mubr.f32.gmra.mrb[0].mxu0 %v1818
      %v1917 = vpop.f32.mrb[0].mxu0
      %v1918 = vadd.f32 0.0, %v1917
      %v1919 = vpop.f32.mrb[0].mxu0
      %1920 = vmatprep.mubr.f32.mxu0 0.0
      %1921 = vmatmul.mubr.f32.gmra.mrb[0].mxu0 %v1821
      %v1922 = vpop.f32.mrb[0].mxu0
      %v1923 = vadd.f32 0.0, %v1922
      %v1924 = vpop.f32.mrb[0].mxu0
      %1925 = vmatprep.mubr.f32.mxu0 0.0
      %1926 = vmatmul.mubr.f32.gmra.mrb[0].mxu0 %v1824
      %v1927 = vpop.f32.mrb[0].mxu0
      %v1928 = vadd.f32 0.0, %v1927
      %v1929 = vpop.f32.mrb[0].mxu0
      %1930 = vdwg.mxu0
      %v1932 = vsel %vm412, %v1784, 0
      %v1935 = vsel %vm412, %v1785, 0
      %v1938 = vsel %vm412, %v1786, 0
      %v1941 = vsel %vm412, %v1787, 0
      %v1944 = vsel %vm412, %v1788, 0
      %v1947 = vsel %vm412, %v1789, 0
      %v1950 = vsel %vm412, %v1790, 0
      %v1953 = vsel %vm412, %v1791, 0
      %v1956 = vsel %vm437, %v1792, 0
      %1958 = vmatprep.subr.mxu0 0.0
      %1959 = vmatpush1.msra.mxu0 %v1956
      %1960 = vmatprep.subr.mxu0 0.0
      %1961 = vmatpush1.msra.mxu0 0.0
      %1962 = vmatprep.subr.mxu0 0.0
      %1963 = vmatpush1.msra.mxu0 0.0
      %1964 = vmatprep.subr.mxu0 0.0
      %1965 = vmatpush1.msra.mxu0 0.0
      %1966 = vmatprep.subr.mxu0 0.0
      %1967 = vmatpush1.msra.mxu0 0.0
      %1968 = vmatprep.subr.mxu0 0.0
      %1969 = vmatpush1.msra.mxu0 0.0
      %1970 = vmatprep.subr.mxu0 0.0
      %1971 = vmatpush1.msra.mxu0 0.0
      %1972 = vmatprep.subr.mxu0 0.0
      %1973 = vmatpush1.msra.mxu0 0.0
      %1974 = vmatprep.subr.mxu0 0.0
      %1975 = vmatpush1.msra.mxu0 0.0
      %1976 = vmatprep.subr.mxu0 0.0
      %1977 = vmatpush1.msra.mxu0 0.0
      %1978 = vmatprep.subr.mxu0 0.0
      %1979 = vmatpush1.msra.mxu0 0.0
      %1980 = vmatprep.subr.mxu0 0.0
      %1981 = vmatpush1.msra.mxu0 0.0
      %1982 = vmatprep.subr.mxu0 0.0
      %1983 = vmatpush1.msra.mxu0 0.0
      %1984 = vmatprep.subr.mxu0 0.0
      %1985 = vmatpush1.msra.mxu0 0.0
      %1986 = vmatprep.subr.mxu0 0.0
      %1987 = vmatpush1.msra.mxu0 0.0
      %1988 = vmatprep.subr.mxu0 0.0
      %1989 = vmatpush1.msra.mxu0 0.0
      %1990 = vmatprep.subr.mxu0 0.0
      %1991 = vmatpush1.msra.mxu0 0.0
      %1992 = vmatprep.subr.mxu0 0.0
      %1993 = vmatpush1.msra.mxu0 0.0
      %1994 = vmatprep.subr.mxu0 0.0
      %1995 = vmatpush1.msra.mxu0 0.0
      %1996 = vmatprep.subr.mxu0 0.0
      %1997 = vmatpush1.msra.mxu0 0.0
      %1998 = vmatprep.subr.mxu0 0.0
      %1999 = vmatpush1.msra.mxu0 0.0
      %2000 = vmatprep.subr.mxu0 0.0
      %2001 = vmatpush1.msra.mxu0 0.0
      %2002 = vmatprep.subr.mxu0 0.0
      %2003 = vmatpush1.msra.mxu0 0.0
      %2004 = vmatprep.subr.mxu0 0.0
      %2005 = vmatpush1.msra.mxu0 0.0
      %2006 = vmatprep.subr.mxu0 0.0
      %2007 = vmatpush1.msra.mxu0 0.0
      %2008 = vmatprep.subr.mxu0 0.0
      %2009 = vmatpush1.msra.mxu0 0.0
      %2010 = vmatprep.subr.mxu0 0.0
      %2011 = vmatpush1.msra.mxu0 0.0
      %2012 = vmatprep.subr.mxu0 0.0
      %2013 = vmatpush1.msra.mxu0 0.0
      %2014 = vmatprep.subr.mxu0 0.0
      %2015 = vmatpush1.msra.mxu0 0.0
      %2016 = vmatprep.subr.mxu0 0.0
      %2017 = vmatpush1.msra.mxu0 0.0
      %2018 = vmatprep.subr.mxu0 0.0
      %2019 = vmatpush1.msra.mxu0 0.0
      %2020 = vmatprep.subr.mxu0 0.0
      %2021 = vmatpush1.msra.mxu0 0.0
      %2022 = vmatprep.mubr.f32.mxu0 0.0
      %2023 = vmatmul.mubr.f32.gmra.mrb[0].mxu0 %v1932
      %v2024 = vpop.f32.mrb[0].mxu0
      %v2025 = vadd.f32 %v1893, %v2024
      %v2026 = vpop.f32.mrb[0].mxu0
      %2027 = vmatprep.mubr.f32.mxu0 0.0
      %2028 = vmatmul.mubr.f32.gmra.mrb[0].mxu0 %v1935
      %v2029 = vpop.f32.mrb[0].mxu0
      %v2030 = vadd.f32 %v1898, %v2029
      %v2031 = vpop.f32.mrb[0].mxu0
      %2032 = vmatprep.mubr.f32.mxu0 0.0
      %2033 = vmatmul.mubr.f32.gmra.mrb[0].mxu0 %v1938
      %v2034 = vpop.f32.mrb[0].mxu0
      %v2035 = vadd.f32 %v1903, %v2034
      %v2036 = vpop.f32.mrb[0].mxu0
      %2037 = vmatprep.mubr.f32.mxu0 0.0
      %2038 = vmatmul.mubr.f32.gmra.mrb[0].mxu0 %v1941
      %v2039 = vpop.f32.mrb[0].mxu0
      %v2040 = vadd.f32 %v1908, %v2039
      %v2041 = vpop.f32.mrb[0].mxu0
      %2042 = vmatprep.mubr.f32.mxu0 0.0
      %2043 = vmatmul.mubr.f32.gmra.mrb[0].mxu0 %v1944
      %v2044 = vpop.f32.mrb[0].mxu0
      %v2045 = vadd.f32 %v1913, %v2044
      %v2046 = vpop.f32.mrb[0].mxu0
      %2047 = vmatprep.mubr.f32.mxu0 0.0
      %2048 = vmatmul.mubr.f32.gmra.mrb[0].mxu0 %v1947
      %v2049 = vpop.f32.mrb[0].mxu0
      %v2050 = vadd.f32 %v1918, %v2049
      %v2051 = vpop.f32.mrb[0].mxu0
      %2052 = vmatprep.mubr.f32.mxu0 0.0
      %2053 = vmatmul.mubr.f32.gmra.mrb[0].mxu0 %v1950
      %v2054 = vpop.f32.mrb[0].mxu0
      %v2055 = vadd.f32 %v1923, %v2054
      %v2056 = vpop.f32.mrb[0].mxu0
      %2057 = vmatprep.mubr.f32.mxu0 0.0
      %2058 = vmatmul.mubr.f32.gmra.mrb[0].mxu0 %v1953
      %v2059 = vpop.f32.mrb[0].mxu0
      %v2060 = vadd.f32 %v1928, %v2059
      %v2061 = vpop.f32.mrb[0].mxu0
      %2062 = vdwg.mxu0
      %v2063 = vld [vmem:[#allocation2 + $0x1] sm:$0xff]
      %v2064 = vld [vmem:[#allocation2 + $0x11] sm:$0xff]
      %v2065 = vld [vmem:[#allocation2 + $0x21] sm:$0xff]
      %v2066 = vld [vmem:[#allocation2 + $0x31] sm:$0xff]
      %v2067 = vld [vmem:[#allocation2 + $0x41] sm:$0xff]
      %v2068 = vld [vmem:[#allocation2 + $0x51] sm:$0xff]
      %v2069 = vld [vmem:[#allocation2 + $0x61] sm:$0xff]
      %v2070 = vld [vmem:[#allocation2 + $0x71] sm:$0xff]
      %s2071 = scalar_lea.vmem %s6, 8
      %v2072 = vld [vmem:[%s2071] sm:$0xff]
      %v2074 = vsel %vm1753, %v2063, 0
      %v2077 = vsel %vm1753, %v2064, 0
      %v2080 = vsel %vm1753, %v2065, 0
      %v2083 = vsel %vm1753, %v2066, 0
      %v2086 = vsel %vm1753, %v2067, 0
      %v2089 = vsel %vm1753, %v2068, 0
      %v2092 = vsel %vm1753, %v2069, 0
      %v2095 = vsel %vm1753, %v2070, 0
      %2097 = vmatprep.subr.mxu0 0.0
      %2098 = vmatpush1.msra.mxu0 %v2072
      %2099 = vmatprep.subr.mxu0 0.0
      %2100 = vmatpush1.msra.mxu0 0.0
      %2101 = vmatprep.subr.mxu0 0.0
      %2102 = vmatpush1.msra.mxu0 0.0
      %2103 = vmatprep.subr.mxu0 0.0
      %2104 = vmatpush1.msra.mxu0 0.0
      %2105 = vmatprep.subr.mxu0 0.0
      %2106 = vmatpush1.msra.mxu0 0.0
      %2107 = vmatprep.subr.mxu0 0.0
      %2108 = vmatpush1.msra.mxu0 0.0
      %2109 = vmatprep.subr.mxu0 0.0
      %2110 = vmatpush1.msra.mxu0 0.0
      %2111 = vmatprep.subr.mxu0 0.0
      %2112 = vmatpush1.msra.mxu0 0.0
      %2113 = vmatprep.subr.mxu0 0.0
      %2114 = vmatpush1.msra.mxu0 0.0
      %2115 = vmatprep.subr.mxu0 0.0
      %2116 = vmatpush1.msra.mxu0 0.0
      %2117 = vmatprep.subr.mxu0 0.0
      %2118 = vmatpush1.msra.mxu0 0.0
      %2119 = vmatprep.subr.mxu0 0.0
      %2120 = vmatpush1.msra.mxu0 0.0
      %2121 = vmatprep.subr.mxu0 0.0
      %2122 = vmatpush1.msra.mxu0 0.0
      %2123 = vmatprep.subr.mxu0 0.0
      %2124 = vmatpush1.msra.mxu0 0.0
      %2125 = vmatprep.subr.mxu0 0.0
      %2126 = vmatpush1.msra.mxu0 0.0
      %2127 = vmatprep.subr.mxu0 0.0
      %2128 = vmatpush1.msra.mxu0 0.0
      %2129 = vmatprep.subr.mxu0 0.0
      %2130 = vmatpush1.msra.mxu0 0.0
      %2131 = vmatprep.subr.mxu0 0.0
      %2132 = vmatpush1.msra.mxu0 0.0
      %2133 = vmatprep.subr.mxu0 0.0
      %2134 = vmatpush1.msra.mxu0 0.0
      %2135 = vmatprep.subr.mxu0 0.0
      %2136 = vmatpush1.msra.mxu0 0.0
      %2137 = vmatprep.subr.mxu0 0.0
      %2138 = vmatpush1.msra.mxu0 0.0
      %2139 = vmatprep.subr.mxu0 0.0
      %2140 = vmatpush1.msra.mxu0 0.0
      %2141 = vmatprep.subr.mxu0 0.0
      %2142 = vmatpush1.msra.mxu0 0.0
      %2143 = vmatprep.subr.mxu0 0.0
      %2144 = vmatpush1.msra.mxu0 0.0
      %2145 = vmatprep.subr.mxu0 0.0
      %2146 = vmatpush1.msra.mxu0 0.0
      %2147 = vmatprep.subr.mxu0 0.0
      %2148 = vmatpush1.msra.mxu0 0.0
      %2149 = vmatprep.subr.mxu0 0.0
      %2150 = vmatpush1.msra.mxu0 0.0
      %2151 = vmatprep.subr.mxu0 0.0
      %2152 = vmatpush1.msra.mxu0 0.0
      %2153 = vmatprep.subr.mxu0 0.0
      %2154 = vmatpush1.msra.mxu0 0.0
      %2155 = vmatprep.subr.mxu0 0.0
      %2156 = vmatpush1.msra.mxu0 0.0
      %2157 = vmatprep.subr.mxu0 0.0
      %2158 = vmatpush1.msra.mxu0 0.0
      %2159 = vmatprep.subr.mxu0 0.0
      %2160 = vmatpush1.msra.mxu0 0.0
      %2161 = vmatprep.mubr.f32.mxu0 0.0
      %2162 = vmatmul.mubr.f32.gmra.mrb[0].mxu0 %v2074
      %v2163 = vpop.f32.mrb[0].mxu0
      %v2164 = vadd.f32 0.0, %v2163
      %v2165 = vpop.f32.mrb[0].mxu0
      %2166 = vmatprep.mubr.f32.mxu0 0.0
      %2167 = vmatmul.mubr.f32.gmra.mrb[0].mxu0 %v2077
      %v2168 = vpop.f32.mrb[0].mxu0
      %v2169 = vadd.f32 0.0, %v2168
      %v2170 = vpop.f32.mrb[0].mxu0
      %2171 = vmatprep.mubr.f32.mxu0 0.0
      %2172 = vmatmul.mubr.f32.gmra.mrb[0].mxu0 %v2080
      %v2173 = vpop.f32.mrb[0].mxu0
      %v2174 = vadd.f32 0.0, %v2173
      %v2175 = vpop.f32.mrb[0].mxu0
      %2176 = vmatprep.mubr.f32.mxu0 0.0
      %2177 = vmatmul.mubr.f32.gmra.mrb[0].mxu0 %v2083
      %v2178 = vpop.f32.mrb[0].mxu0
      %v2179 = vadd.f32 0.0, %v2178
      %v2180 = vpop.f32.mrb[0].mxu0
      %2181 = vmatprep.mubr.f32.mxu0 0.0
      %2182 = vmatmul.mubr.f32.gmra.mrb[0].mxu0 %v2086
      %v2183 = vpop.f32.mrb[0].mxu0
      %v2184 = vadd.f32 0.0, %v2183
      %v2185 = vpop.f32.mrb[0].mxu0
      %2186 = vmatprep.mubr.f32.mxu0 0.0
      %2187 = vmatmul.mubr.f32.gmra.mrb[0].mxu0 %v2089
      %v2188 = vpop.f32.mrb[0].mxu0
      %v2189 = vadd.f32 0.0, %v2188
      %v2190 = vpop.f32.mrb[0].mxu0
      %2191 = vmatprep.mubr.f32.mxu0 0.0
      %2192 = vmatmul.mubr.f32.gmra.mrb[0].mxu0 %v2092
      %v2193 = vpop.f32.mrb[0].mxu0
      %v2194 = vadd.f32 0.0, %v2193
      %v2195 = vpop.f32.mrb[0].mxu0
      %2196 = vmatprep.mubr.f32.mxu0 0.0
      %2197 = vmatmul.mubr.f32.gmra.mrb[0].mxu0 %v2095
      %v2198 = vpop.f32.mrb[0].mxu0
      %v2199 = vadd.f32 0.0, %v2198
      %v2200 = vpop.f32.mrb[0].mxu0
      %2201 = vdwg.mxu0
      %v2202 = vadd.f32 %v2025, %v2164
      %v2203 = vadd.f32 %v2030, %v2169
      %v2204 = vadd.f32 %v2035, %v2174
      %v2205 = vadd.f32 %v2040, %v2179
      %v2206 = vadd.f32 %v2045, %v2184
      %v2207 = vadd.f32 %v2050, %v2189
      %v2208 = vadd.f32 %v2055, %v2194
      %v2209 = vadd.f32 %v2060, %v2199
      %v2210 = vld [vmem:[#allocation2 + $0x2] sm:$0xff]
      %v2211 = vld [vmem:[#allocation2 + $0x12] sm:$0xff]
      %v2212 = vld [vmem:[#allocation2 + $0x22] sm:$0xff]
      %v2213 = vld [vmem:[#allocation2 + $0x32] sm:$0xff]
      %v2214 = vld [vmem:[#allocation2 + $0x42] sm:$0xff]
      %v2215 = vld [vmem:[#allocation2 + $0x52] sm:$0xff]
      %v2216 = vld [vmem:[#allocation2 + $0x62] sm:$0xff]
      %v2217 = vld [vmem:[#allocation2 + $0x72] sm:$0xff]
      %s2218 = scalar_lea.vmem %s6, 16
      %v2219 = vld [vmem:[%s2218] sm:$0xff]
      %v2221 = vsel %vm1753, %v2210, 0
      %v2224 = vsel %vm1753, %v2211, 0
      %v2227 = vsel %vm1753, %v2212, 0
      %v2230 = vsel %vm1753, %v2213, 0
      %v2233 = vsel %vm1753, %v2214, 0
      %v2236 = vsel %vm1753, %v2215, 0
      %v2239 = vsel %vm1753, %v2216, 0
      %v2242 = vsel %vm1753, %v2217, 0
      %2244 = vmatprep.subr.mxu0 0.0
      %2245 = vmatpush1.msra.mxu0 %v2219
      %2246 = vmatprep.subr.mxu0 0.0
      %2247 = vmatpush1.msra.mxu0 0.0
      %2248 = vmatprep.subr.mxu0 0.0
      %2249 = vmatpush1.msra.mxu0 0.0
      %2250 = vmatprep.subr.mxu0 0.0
      %2251 = vmatpush1.msra.mxu0 0.0
      %2252 = vmatprep.subr.mxu0 0.0
      %2253 = vmatpush1.msra.mxu0 0.0
      %2254 = vmatprep.subr.mxu0 0.0
      %2255 = vmatpush1.msra.mxu0 0.0
      %2256 = vmatprep.subr.mxu0 0.0
      %2257 = vmatpush1.msra.mxu0 0.0
      %2258 = vmatprep.subr.mxu0 0.0
      %2259 = vmatpush1.msra.mxu0 0.0
      %2260 = vmatprep.subr.mxu0 0.0
      %2261 = vmatpush1.msra.mxu0 0.0
      %2262 = vmatprep.subr.mxu0 0.0
      %2263 = vmatpush1.msra.mxu0 0.0
      %2264 = vmatprep.subr.mxu0 0.0
      %2265 = vmatpush1.msra.mxu0 0.0
      %2266 = vmatprep.subr.mxu0 0.0
      %2267 = vmatpush1.msra.mxu0 0.0
      %2268 = vmatprep.subr.mxu0 0.0
      %2269 = vmatpush1.msra.mxu0 0.0
      %2270 = vmatprep.subr.mxu0 0.0
      %2271 = vmatpush1.msra.mxu0 0.0
      %2272 = vmatprep.subr.mxu0 0.0
      %2273 = vmatpush1.msra.mxu0 0.0
      %2274 = vmatprep.subr.mxu0 0.0
      %2275 = vmatpush1.msra.mxu0 0.0
      %2276 = vmatprep.subr.mxu0 0.0
      %2277 = vmatpush1.msra.mxu0 0.0
      %2278 = vmatprep.subr.mxu0 0.0
      %2279 = vmatpush1.msra.mxu0 0.0
      %2280 = vmatprep.subr.mxu0 0.0
      %2281 = vmatpush1.msra.mxu0 0.0
      %2282 = vmatprep.subr.mxu0 0.0
      %2283 = vmatpush1.msra.mxu0 0.0
      %2284 = vmatprep.subr.mxu0 0.0
      %2285 = vmatpush1.msra.mxu0 0.0
      %2286 = vmatprep.subr.mxu0 0.0
      %2287 = vmatpush1.msra.mxu0 0.0
      %2288 = vmatprep.subr.mxu0 0.0
      %2289 = vmatpush1.msra.mxu0 0.0
      %2290 = vmatprep.subr.mxu0 0.0
      %2291 = vmatpush1.msra.mxu0 0.0
      %2292 = vmatprep.subr.mxu0 0.0
      %2293 = vmatpush1.msra.mxu0 0.0
      %2294 = vmatprep.subr.mxu0 0.0
      %2295 = vmatpush1.msra.mxu0 0.0
      %2296 = vmatprep.subr.mxu0 0.0
      %2297 = vmatpush1.msra.mxu0 0.0
      %2298 = vmatprep.subr.mxu0 0.0
      %2299 = vmatpush1.msra.mxu0 0.0
      %2300 = vmatprep.subr.mxu0 0.0
      %2301 = vmatpush1.msra.mxu0 0.0
      %2302 = vmatprep.subr.mxu0 0.0
      %2303 = vmatpush1.msra.mxu0 0.0
      %2304 = vmatprep.subr.mxu0 0.0
      %2305 = vmatpush1.msra.mxu0 0.0
      %2306 = vmatprep.subr.mxu0 0.0
      %2307 = vmatpush1.msra.mxu0 0.0
      %2308 = vmatprep.mubr.f32.mxu0 0.0
      %2309 = vmatmul.mubr.f32.gmra.mrb[0].mxu0 %v2221
      %v2310 = vpop.f32.mrb[0].mxu0
      %v2311 = vadd.f32 0.0, %v2310
      %v2312 = vpop.f32.mrb[0].mxu0
      %2313 = vmatprep.mubr.f32.mxu0 0.0
      %2314 = vmatmul.mubr.f32.gmra.mrb[0].mxu0 %v2224
      %v2315 = vpop.f32.mrb[0].mxu0
      %v2316 = vadd.f32 0.0, %v2315
      %v2317 = vpop.f32.mrb[0].mxu0
      %2318 = vmatprep.mubr.f32.mxu0 0.0
      %2319 = vmatmul.mubr.f32.gmra.mrb[0].mxu0 %v2227
      %v2320 = vpop.f32.mrb[0].mxu0
      %v2321 = vadd.f32 0.0, %v2320
      %v2322 = vpop.f32.mrb[0].mxu0
      %2323 = vmatprep.mubr.f32.mxu0 0.0
      %2324 = vmatmul.mubr.f32.gmra.mrb[0].mxu0 %v2230
      %v2325 = vpop.f32.mrb[0].mxu0
      %v2326 = vadd.f32 0.0, %v2325
      %v2327 = vpop.f32.mrb[0].mxu0
      %2328 = vmatprep.mubr.f32.mxu0 0.0
      %2329 = vmatmul.mubr.f32.gmra.mrb[0].mxu0 %v2233
      %v2330 = vpop.f32.mrb[0].mxu0
      %v2331 = vadd.f32 0.0, %v2330
      %v2332 = vpop.f32.mrb[0].mxu0
      %2333 = vmatprep.mubr.f32.mxu0 0.0
      %2334 = vmatmul.mubr.f32.gmra.mrb[0].mxu0 %v2236
      %v2335 = vpop.f32.mrb[0].mxu0
      %v2336 = vadd.f32 0.0, %v2335
      %v2337 = vpop.f32.mrb[0].mxu0
      %2338 = vmatprep.mubr.f32.mxu0 0.0
      %2339 = vmatmul.mubr.f32.gmra.mrb[0].mxu0 %v2239
      %v2340 = vpop.f32.mrb[0].mxu0
      %v2341 = vadd.f32 0.0, %v2340
      %v2342 = vpop.f32.mrb[0].mxu0
      %2343 = vmatprep.mubr.f32.mxu0 0.0
      %2344 = vmatmul.mubr.f32.gmra.mrb[0].mxu0 %v2242
      %v2345 = vpop.f32.mrb[0].mxu0
      %v2346 = vadd.f32 0.0, %v2345
      %v2347 = vpop.f32.mrb[0].mxu0
      %2348 = vdwg.mxu0
      %v2349 = vadd.f32 %v2202, %v2311
      %v2350 = vadd.f32 %v2203, %v2316
      %v2351 = vadd.f32 %v2204, %v2321
      %v2352 = vadd.f32 %v2205, %v2326
      %v2353 = vadd.f32 %v2206, %v2331
      %v2354 = vadd.f32 %v2207, %v2336
      %v2355 = vadd.f32 %v2208, %v2341
      %v2356 = vadd.f32 %v2209, %v2346
      %v2357 = vld [vmem:[%s1775] sm:$0xff]
      %v2358 = vld [vmem:[%s1775 + $0x10] sm:$0xff]
      %v2359 = vld [vmem:[%s1775 + $0x20] sm:$0xff]
      %v2360 = vld [vmem:[%s1775 + $0x30] sm:$0xff]
      %v2361 = vld [vmem:[%s1775 + $0x40] sm:$0xff]
      %v2362 = vld [vmem:[%s1775 + $0x50] sm:$0xff]
      %v2363 = vld [vmem:[%s1775 + $0x60] sm:$0xff]
      %v2364 = vld [vmem:[%s1775 + $0x70] sm:$0xff]
      %s2365 = scalar_lea.vmem %s6, 24
      %v2366 = vld [vmem:[%s2365] sm:$0xff]
      %v2368 = vsel %vm1753, %v2357, 0
      %v2371 = vsel %vm1753, %v2358, 0
      %v2374 = vsel %vm1753, %v2359, 0
      %v2377 = vsel %vm1753, %v2360, 0
      %v2380 = vsel %vm1753, %v2361, 0
      %v2383 = vsel %vm1753, %v2362, 0
      %v2386 = vsel %vm1753, %v2363, 0
      %v2389 = vsel %vm1753, %v2364, 0
      %2391 = vmatprep.subr.mxu0 0.0
      %2392 = vmatpush1.msra.mxu0 %v2366
      %2393 = vmatprep.subr.mxu0 0.0
      %2394 = vmatpush1.msra.mxu0 0.0
      %2395 = vmatprep.subr.mxu0 0.0
      %2396 = vmatpush1.msra.mxu0 0.0
      %2397 = vmatprep.subr.mxu0 0.0
      %2398 = vmatpush1.msra.mxu0 0.0
      %2399 = vmatprep.subr.mxu0 0.0
      %2400 = vmatpush1.msra.mxu0 0.0
      %2401 = vmatprep.subr.mxu0 0.0
      %2402 = vmatpush1.msra.mxu0 0.0
      %2403 = vmatprep.subr.mxu0 0.0
      %2404 = vmatpush1.msra.mxu0 0.0
      %2405 = vmatprep.subr.mxu0 0.0
      %2406 = vmatpush1.msra.mxu0 0.0
      %2407 = vmatprep.subr.mxu0 0.0
      %2408 = vmatpush1.msra.mxu0 0.0
      %2409 = vmatprep.subr.mxu0 0.0
      %2410 = vmatpush1.msra.mxu0 0.0
      %2411 = vmatprep.subr.mxu0 0.0
      %2412 = vmatpush1.msra.mxu0 0.0
      %2413 = vmatprep.subr.mxu0 0.0
      %2414 = vmatpush1.msra.mxu0 0.0
      %2415 = vmatprep.subr.mxu0 0.0
      %2416 = vmatpush1.msra.mxu0 0.0
      %2417 = vmatprep.subr.mxu0 0.0
      %2418 = vmatpush1.msra.mxu0 0.0
      %2419 = vmatprep.subr.mxu0 0.0
      %2420 = vmatpush1.msra.mxu0 0.0
      %2421 = vmatprep.subr.mxu0 0.0
      %2422 = vmatpush1.msra.mxu0 0.0
      %2423 = vmatprep.subr.mxu0 0.0
      %2424 = vmatpush1.msra.mxu0 0.0
      %2425 = vmatprep.subr.mxu0 0.0
      %2426 = vmatpush1.msra.mxu0 0.0
      %2427 = vmatprep.subr.mxu0 0.0
      %2428 = vmatpush1.msra.mxu0 0.0
      %2429 = vmatprep.subr.mxu0 0.0
      %2430 = vmatpush1.msra.mxu0 0.0
      %2431 = vmatprep.subr.mxu0 0.0
      %2432 = vmatpush1.msra.mxu0 0.0
      %2433 = vmatprep.subr.mxu0 0.0
      %2434 = vmatpush1.msra.mxu0 0.0
      %2435 = vmatprep.subr.mxu0 0.0
      %2436 = vmatpush1.msra.mxu0 0.0
      %2437 = vmatprep.subr.mxu0 0.0
      %2438 = vmatpush1.msra.mxu0 0.0
      %2439 = vmatprep.subr.mxu0 0.0
      %2440 = vmatpush1.msra.mxu0 0.0
      %2441 = vmatprep.subr.mxu0 0.0
      %2442 = vmatpush1.msra.mxu0 0.0
      %2443 = vmatprep.subr.mxu0 0.0
      %2444 = vmatpush1.msra.mxu0 0.0
      %2445 = vmatprep.subr.mxu0 0.0
      %2446 = vmatpush1.msra.mxu0 0.0
      %2447 = vmatprep.subr.mxu0 0.0
      %2448 = vmatpush1.msra.mxu0 0.0
      %2449 = vmatprep.subr.mxu0 0.0
      %2450 = vmatpush1.msra.mxu0 0.0
      %2451 = vmatprep.subr.mxu0 0.0
      %2452 = vmatpush1.msra.mxu0 0.0
      %2453 = vmatprep.subr.mxu0 0.0
      %2454 = vmatpush1.msra.mxu0 0.0
      %2455 = vmatprep.mubr.f32.mxu0 0.0
      %2456 = vmatmul.mubr.f32.gmra.mrb[0].mxu0 %v2368
      %v2457 = vpop.f32.mrb[0].mxu0
      %v2458 = vadd.f32 0.0, %v2457
      %v2459 = vpop.f32.mrb[0].mxu0
      %2460 = vmatprep.mubr.f32.mxu0 0.0
      %2461 = vmatmul.mubr.f32.gmra.mrb[0].mxu0 %v2371
      %v2462 = vpop.f32.mrb[0].mxu0
      %v2463 = vadd.f32 0.0, %v2462
      %v2464 = vpop.f32.mrb[0].mxu0
      %2465 = vmatprep.mubr.f32.mxu0 0.0
      %2466 = vmatmul.mubr.f32.gmra.mrb[0].mxu0 %v2374
      %v2467 = vpop.f32.mrb[0].mxu0
      %v2468 = vadd.f32 0.0, %v2467
      %v2469 = vpop.f32.mrb[0].mxu0
      %2470 = vmatprep.mubr.f32.mxu0 0.0
      %2471 = vmatmul.mubr.f32.gmra.mrb[0].mxu0 %v2377
      %v2472 = vpop.f32.mrb[0].mxu0
      %v2473 = vadd.f32 0.0, %v2472
      %v2474 = vpop.f32.mrb[0].mxu0
      %2475 = vmatprep.mubr.f32.mxu0 0.0
      %2476 = vmatmul.mubr.f32.gmra.mrb[0].mxu0 %v2380
      %v2477 = vpop.f32.mrb[0].mxu0
      %v2478 = vadd.f32 0.0, %v2477
      %v2479 = vpop.f32.mrb[0].mxu0
      %2480 = vmatprep.mubr.f32.mxu0 0.0
      %2481 = vmatmul.mubr.f32.gmra.mrb[0].mxu0 %v2383
      %v2482 = vpop.f32.mrb[0].mxu0
      %v2483 = vadd.f32 0.0, %v2482
      %v2484 = vpop.f32.mrb[0].mxu0
      %2485 = vmatprep.mubr.f32.mxu0 0.0
      %2486 = vmatmul.mubr.f32.gmra.mrb[0].mxu0 %v2386
      %v2487 = vpop.f32.mrb[0].mxu0
      %v2488 = vadd.f32 0.0, %v2487
      %v2489 = vpop.f32.mrb[0].mxu0
      %2490 = vmatprep.mubr.f32.mxu0 0.0
      %2491 = vmatmul.mubr.f32.gmra.mrb[0].mxu0 %v2389
      %v2492 = vpop.f32.mrb[0].mxu0
      %v2493 = vadd.f32 0.0, %v2492
      %v2494 = vpop.f32.mrb[0].mxu0
      %2495 = vdwg.mxu0
      %v2496 = vadd.f32 %v2349, %v2458
      %v2497 = vadd.f32 %v2350, %v2463
      %v2498 = vadd.f32 %v2351, %v2468
      %v2499 = vadd.f32 %v2352, %v2473
      %v2500 = vadd.f32 %v2353, %v2478
      %v2501 = vadd.f32 %v2354, %v2483
      %v2502 = vadd.f32 %v2355, %v2488
      %v2503 = vadd.f32 %v2356, %v2493
      %v2504 = vld [vmem:[%s1775 + $0x1] sm:$0xff]
      %v2505 = vld [vmem:[%s1775 + $0x11] sm:$0xff]
      %v2506 = vld [vmem:[%s1775 + $0x21] sm:$0xff]
      %v2507 = vld [vmem:[%s1775 + $0x31] sm:$0xff]
      %v2508 = vld [vmem:[%s1775 + $0x41] sm:$0xff]
      %v2509 = vld [vmem:[%s1775 + $0x51] sm:$0xff]
      %v2510 = vld [vmem:[%s1775 + $0x61] sm:$0xff]
      %v2511 = vld [vmem:[%s1775 + $0x71] sm:$0xff]
      %s2512 = scalar_lea.vmem %s6, 32
      %v2513 = vld [vmem:[%s2512] sm:$0xff]
      %v2515 = vsel %vm1753, %v2504, 0
      %v2518 = vsel %vm1753, %v2505, 0
      %v2521 = vsel %vm1753, %v2506, 0
      %v2524 = vsel %vm1753, %v2507, 0
      %v2527 = vsel %vm1753, %v2508, 0
      %v2530 = vsel %vm1753, %v2509, 0
      %v2533 = vsel %vm1753, %v2510, 0
      %v2536 = vsel %vm1753, %v2511, 0
      %2538 = vmatprep.subr.mxu0 0.0
      %2539 = vmatpush1.msra.mxu0 %v2513
      %2540 = vmatprep.subr.mxu0 0.0
      %2541 = vmatpush1.msra.mxu0 0.0
      %2542 = vmatprep.subr.mxu0 0.0
      %2543 = vmatpush1.msra.mxu0 0.0
      %2544 = vmatprep.subr.mxu0 0.0
      %2545 = vmatpush1.msra.mxu0 0.0
      %2546 = vmatprep.subr.mxu0 0.0
      %2547 = vmatpush1.msra.mxu0 0.0
      %2548 = vmatprep.subr.mxu0 0.0
      %2549 = vmatpush1.msra.mxu0 0.0
      %2550 = vmatprep.subr.mxu0 0.0
      %2551 = vmatpush1.msra.mxu0 0.0
      %2552 = vmatprep.subr.mxu0 0.0
      %2553 = vmatpush1.msra.mxu0 0.0
      %2554 = vmatprep.subr.mxu0 0.0
      %2555 = vmatpush1.msra.mxu0 0.0
      %2556 = vmatprep.subr.mxu0 0.0
      %2557 = vmatpush1.msra.mxu0 0.0
      %2558 = vmatprep.subr.mxu0 0.0
      %2559 = vmatpush1.msra.mxu0 0.0
      %2560 = vmatprep.subr.mxu0 0.0
      %2561 = vmatpush1.msra.mxu0 0.0
      %2562 = vmatprep.subr.mxu0 0.0
      %2563 = vmatpush1.msra.mxu0 0.0
      %2564 = vmatprep.subr.mxu0 0.0
      %2565 = vmatpush1.msra.mxu0 0.0
      %2566 = vmatprep.subr.mxu0 0.0
      %2567 = vmatpush1.msra.mxu0 0.0
      %2568 = vmatprep.subr.mxu0 0.0
      %2569 = vmatpush1.msra.mxu0 0.0
      %2570 = vmatprep.subr.mxu0 0.0
      %2571 = vmatpush1.msra.mxu0 0.0
      %2572 = vmatprep.subr.mxu0 0.0
      %2573 = vmatpush1.msra.mxu0 0.0
      %2574 = vmatprep.subr.mxu0 0.0
      %2575 = vmatpush1.msra.mxu0 0.0
      %2576 = vmatprep.subr.mxu0 0.0
      %2577 = vmatpush1.msra.mxu0 0.0
      %2578 = vmatprep.subr.mxu0 0.0
      %2579 = vmatpush1.msra.mxu0 0.0
      %2580 = vmatprep.subr.mxu0 0.0
      %2581 = vmatpush1.msra.mxu0 0.0
      %2582 = vmatprep.subr.mxu0 0.0
      %2583 = vmatpush1.msra.mxu0 0.0
      %2584 = vmatprep.subr.mxu0 0.0
      %2585 = vmatpush1.msra.mxu0 0.0
      %2586 = vmatprep.subr.mxu0 0.0
      %2587 = vmatpush1.msra.mxu0 0.0
      %2588 = vmatprep.subr.mxu0 0.0
      %2589 = vmatpush1.msra.mxu0 0.0
      %2590 = vmatprep.subr.mxu0 0.0
      %2591 = vmatpush1.msra.mxu0 0.0
      %2592 = vmatprep.subr.mxu0 0.0
      %2593 = vmatpush1.msra.mxu0 0.0
      %2594 = vmatprep.subr.mxu0 0.0
      %2595 = vmatpush1.msra.mxu0 0.0
      %2596 = vmatprep.subr.mxu0 0.0
      %2597 = vmatpush1.msra.mxu0 0.0
      %2598 = vmatprep.subr.mxu0 0.0
      %2599 = vmatpush1.msra.mxu0 0.0
      %2600 = vmatprep.subr.mxu0 0.0
      %2601 = vmatpush1.msra.mxu0 0.0
      %2602 = vmatprep.mubr.f32.mxu0 0.0
      %2603 = vmatmul.mubr.f32.gmra.mrb[0].mxu0 %v2515
      %v2604 = vpop.f32.mrb[0].mxu0
      %v2605 = vadd.f32 0.0, %v2604
      %v2606 = vpop.f32.mrb[0].mxu0
      %2607 = vmatprep.mubr.f32.mxu0 0.0
      %2608 = vmatmul.mubr.f32.gmra.mrb[0].mxu0 %v2518
      %v2609 = vpop.f32.mrb[0].mxu0
      %v2610 = vadd.f32 0.0, %v2609
      %v2611 = vpop.f32.mrb[0].mxu0
      %2612 = vmatprep.mubr.f32.mxu0 0.0
      %2613 = vmatmul.mubr.f32.gmra.mrb[0].mxu0 %v2521
      %v2614 = vpop.f32.mrb[0].mxu0
      %v2615 = vadd.f32 0.0, %v2614
      %v2616 = vpop.f32.mrb[0].mxu0
      %2617 = vmatprep.mubr.f32.mxu0 0.0
      %2618 = vmatmul.mubr.f32.gmra.mrb[0].mxu0 %v2524
      %v2619 = vpop.f32.mrb[0].mxu0
      %v2620 = vadd.f32 0.0, %v2619
      %v2621 = vpop.f32.mrb[0].mxu0
      %2622 = vmatprep.mubr.f32.mxu0 0.0
      %2623 = vmatmul.mubr.f32.gmra.mrb[0].mxu0 %v2527
      %v2624 = vpop.f32.mrb[0].mxu0
      %v2625 = vadd.f32 0.0, %v2624
      %v2626 = vpop.f32.mrb[0].mxu0
      %2627 = vmatprep.mubr.f32.mxu0 0.0
      %2628 = vmatmul.mubr.f32.gmra.mrb[0].mxu0 %v2530
      %v2629 = vpop.f32.mrb[0].mxu0
      %v2630 = vadd.f32 0.0, %v2629
      %v2631 = vpop.f32.mrb[0].mxu0
      %2632 = vmatprep.mubr.f32.mxu0 0.0
      %2633 = vmatmul.mubr.f32.gmra.mrb[0].mxu0 %v2533
      %v2634 = vpop.f32.mrb[0].mxu0
      %v2635 = vadd.f32 0.0, %v2634
      %v2636 = vpop.f32.mrb[0].mxu0
      %2637 = vmatprep.mubr.f32.mxu0 0.0
      %2638 = vmatmul.mubr.f32.gmra.mrb[0].mxu0 %v2536
      %v2639 = vpop.f32.mrb[0].mxu0
      %v2640 = vadd.f32 0.0, %v2639
      %v2641 = vpop.f32.mrb[0].mxu0
      %2642 = vdwg.mxu0
      %v2643 = vadd.f32 %v2496, %v2605
      %v2644 = vadd.f32 %v2497, %v2610
      %v2645 = vadd.f32 %v2498, %v2615
      %v2646 = vadd.f32 %v2499, %v2620
      %v2647 = vadd.f32 %v2500, %v2625
      %v2648 = vadd.f32 %v2501, %v2630
      %v2649 = vadd.f32 %v2502, %v2635
      %v2650 = vadd.f32 %v2503, %v2640
      %v2651 = vld [vmem:[%s1775 + $0x2] sm:$0xff]
      %v2652 = vld [vmem:[%s1775 + $0x12] sm:$0xff]
      %v2653 = vld [vmem:[%s1775 + $0x22] sm:$0xff]
      %v2654 = vld [vmem:[%s1775 + $0x32] sm:$0xff]
      %v2655 = vld [vmem:[%s1775 + $0x42] sm:$0xff]
      %v2656 = vld [vmem:[%s1775 + $0x52] sm:$0xff]
      %v2657 = vld [vmem:[%s1775 + $0x62] sm:$0xff]
      %v2658 = vld [vmem:[%s1775 + $0x72] sm:$0xff]
      %s2659 = scalar_lea.vmem %s6, 40
      %v2660 = vld [vmem:[%s2659] sm:$0xff]
      %v2662 = vsel %vm1753, %v2651, 0
      %v2665 = vsel %vm1753, %v2652, 0
      %v2668 = vsel %vm1753, %v2653, 0
      %v2671 = vsel %vm1753, %v2654, 0
      %v2674 = vsel %vm1753, %v2655, 0
      %v2677 = vsel %vm1753, %v2656, 0
      %v2680 = vsel %vm1753, %v2657, 0
      %v2683 = vsel %vm1753, %v2658, 0
      %2685 = vmatprep.subr.mxu0 0.0
      %2686 = vmatpush1.msra.mxu0 %v2660
      %2687 = vmatprep.subr.mxu0 0.0
      %2688 = vmatpush1.msra.mxu0 0.0
      %2689 = vmatprep.subr.mxu0 0.0
      %2690 = vmatpush1.msra.mxu0 0.0
      %2691 = vmatprep.subr.mxu0 0.0
      %2692 = vmatpush1.msra.mxu0 0.0
      %2693 = vmatprep.subr.mxu0 0.0
      %2694 = vmatpush1.msra.mxu0 0.0
      %2695 = vmatprep.subr.mxu0 0.0
      %2696 = vmatpush1.msra.mxu0 0.0
      %2697 = vmatprep.subr.mxu0 0.0
      %2698 = vmatpush1.msra.mxu0 0.0
      %2699 = vmatprep.subr.mxu0 0.0
      %2700 = vmatpush1.msra.mxu0 0.0
      %2701 = vmatprep.subr.mxu0 0.0
      %2702 = vmatpush1.msra.mxu0 0.0
      %2703 = vmatprep.subr.mxu0 0.0
      %2704 = vmatpush1.msra.mxu0 0.0
      %2705 = vmatprep.subr.mxu0 0.0
      %2706 = vmatpush1.msra.mxu0 0.0
      %2707 = vmatprep.subr.mxu0 0.0
      %2708 = vmatpush1.msra.mxu0 0.0
      %2709 = vmatprep.subr.mxu0 0.0
      %2710 = vmatpush1.msra.mxu0 0.0
      %2711 = vmatprep.subr.mxu0 0.0
      %2712 = vmatpush1.msra.mxu0 0.0
      %2713 = vmatprep.subr.mxu0 0.0
      %2714 = vmatpush1.msra.mxu0 0.0
      %2715 = vmatprep.subr.mxu0 0.0
      %2716 = vmatpush1.msra.mxu0 0.0
      %2717 = vmatprep.subr.mxu0 0.0
      %2718 = vmatpush1.msra.mxu0 0.0
      %2719 = vmatprep.subr.mxu0 0.0
      %2720 = vmatpush1.msra.mxu0 0.0
      %2721 = vmatprep.subr.mxu0 0.0
      %2722 = vmatpush1.msra.mxu0 0.0
      %2723 = vmatprep.subr.mxu0 0.0
      %2724 = vmatpush1.msra.mxu0 0.0
      %2725 = vmatprep.subr.mxu0 0.0
      %2726 = vmatpush1.msra.mxu0 0.0
      %2727 = vmatprep.subr.mxu0 0.0
      %2728 = vmatpush1.msra.mxu0 0.0
      %2729 = vmatprep.subr.mxu0 0.0
      %2730 = vmatpush1.msra.mxu0 0.0
      %2731 = vmatprep.subr.mxu0 0.0
      %2732 = vmatpush1.msra.mxu0 0.0
      %2733 = vmatprep.subr.mxu0 0.0
      %2734 = vmatpush1.msra.mxu0 0.0
      %2735 = vmatprep.subr.mxu0 0.0
      %2736 = vmatpush1.msra.mxu0 0.0
      %2737 = vmatprep.subr.mxu0 0.0
      %2738 = vmatpush1.msra.mxu0 0.0
      %2739 = vmatprep.subr.mxu0 0.0
      %2740 = vmatpush1.msra.mxu0 0.0
      %2741 = vmatprep.subr.mxu0 0.0
      %2742 = vmatpush1.msra.mxu0 0.0
      %2743 = vmatprep.subr.mxu0 0.0
      %2744 = vmatpush1.msra.mxu0 0.0
      %2745 = vmatprep.subr.mxu0 0.0
      %2746 = vmatpush1.msra.mxu0 0.0
      %2747 = vmatprep.subr.mxu0 0.0
      %2748 = vmatpush1.msra.mxu0 0.0
      %2749 = vmatprep.mubr.f32.mxu0 0.0
      %2750 = vmatmul.mubr.f32.gmra.mrb[0].mxu0 %v2662
      %v2751 = vpop.f32.mrb[0].mxu0
      %v2752 = vadd.f32 0.0, %v2751
      %v2753 = vpop.f32.mrb[0].mxu0
      %2754 = vmatprep.mubr.f32.mxu0 0.0
      %2755 = vmatmul.mubr.f32.gmra.mrb[0].mxu0 %v2665
      %v2756 = vpop.f32.mrb[0].mxu0
      %v2757 = vadd.f32 0.0, %v2756
      %v2758 = vpop.f32.mrb[0].mxu0
      %2759 = vmatprep.mubr.f32.mxu0 0.0
      %2760 = vmatmul.mubr.f32.gmra.mrb[0].mxu0 %v2668
      %v2761 = vpop.f32.mrb[0].mxu0
      %v2762 = vadd.f32 0.0, %v2761
      %v2763 = vpop.f32.mrb[0].mxu0
      %2764 = vmatprep.mubr.f32.mxu0 0.0
      %2765 = vmatmul.mubr.f32.gmra.mrb[0].mxu0 %v2671
      %v2766 = vpop.f32.mrb[0].mxu0
      %v2767 = vadd.f32 0.0, %v2766
      %v2768 = vpop.f32.mrb[0].mxu0
      %2769 = vmatprep.mubr.f32.mxu0 0.0
      %2770 = vmatmul.mubr.f32.gmra.mrb[0].mxu0 %v2674
      %v2771 = vpop.f32.mrb[0].mxu0
      %v2772 = vadd.f32 0.0, %v2771
      %v2773 = vpop.f32.mrb[0].mxu0
      %2774 = vmatprep.mubr.f32.mxu0 0.0
      %2775 = vmatmul.mubr.f32.gmra.mrb[0].mxu0 %v2677
      %v2776 = vpop.f32.mrb[0].mxu0
      %v2777 = vadd.f32 0.0, %v2776
      %v2778 = vpop.f32.mrb[0].mxu0
      %2779 = vmatprep.mubr.f32.mxu0 0.0
      %2780 = vmatmul.mubr.f32.gmra.mrb[0].mxu0 %v2680
      %v2781 = vpop.f32.mrb[0].mxu0
      %v2782 = vadd.f32 0.0, %v2781
      %v2783 = vpop.f32.mrb[0].mxu0
      %2784 = vmatprep.mubr.f32.mxu0 0.0
      %2785 = vmatmul.mubr.f32.gmra.mrb[0].mxu0 %v2683
      %v2786 = vpop.f32.mrb[0].mxu0
      %v2787 = vadd.f32 0.0, %v2786
      %v2788 = vpop.f32.mrb[0].mxu0
      %2789 = vdwg.mxu0
      %v2790 = vadd.f32 %v2643, %v2752
      %v2791 = vadd.f32 %v2644, %v2757
      %v2792 = vadd.f32 %v2645, %v2762
      %v2793 = vadd.f32 %v2646, %v2767
      %v2794 = vadd.f32 %v2647, %v2772
      %v2795 = vadd.f32 %v2648, %v2777
      %v2796 = vadd.f32 %v2649, %v2782
      %v2797 = vadd.f32 %v2650, %v2787
      %s2798 = scalar_lea.vmem [#allocation2], 32
      %v2799 = vld [vmem:[%s2798] sm:$0xff]
      %v2800 = vld [vmem:[%s2798 + $0x10] sm:$0xff]
      %v2801 = vld [vmem:[%s2798 + $0x20] sm:$0xff]
      %v2802 = vld [vmem:[%s2798 + $0x30] sm:$0xff]
      %v2803 = vld [vmem:[%s2798 + $0x40] sm:$0xff]
      %v2804 = vld [vmem:[%s2798 + $0x50] sm:$0xff]
      %v2805 = vld [vmem:[%s2798 + $0x60] sm:$0xff]
      %v2806 = vld [vmem:[%s2798 + $0x70] sm:$0xff]
      %s2807 = scalar_lea.vmem %s6, 48
      %v2808 = vld [vmem:[%s2807] sm:$0xff]
      %v2810 = vsel %vm1753, %v2799, 0
      %v2813 = vsel %vm1753, %v2800, 0
      %v2816 = vsel %vm1753, %v2801, 0
      %v2819 = vsel %vm1753, %v2802, 0
      %v2822 = vsel %vm1753, %v2803, 0
      %v2825 = vsel %vm1753, %v2804, 0
      %v2828 = vsel %vm1753, %v2805, 0
      %v2831 = vsel %vm1753, %v2806, 0
      %2833 = vmatprep.subr.mxu0 0.0
      %2834 = vmatpush1.msra.mxu0 %v2808
      %2835 = vmatprep.subr.mxu0 0.0
      %2836 = vmatpush1.msra.mxu0 0.0
      %2837 = vmatprep.subr.mxu0 0.0
      %2838 = vmatpush1.msra.mxu0 0.0
      %2839 = vmatprep.subr.mxu0 0.0
      %2840 = vmatpush1.msra.mxu0 0.0
      %2841 = vmatprep.subr.mxu0 0.0
      %2842 = vmatpush1.msra.mxu0 0.0
      %2843 = vmatprep.subr.mxu0 0.0
      %2844 = vmatpush1.msra.mxu0 0.0
      %2845 = vmatprep.subr.mxu0 0.0
      %2846 = vmatpush1.msra.mxu0 0.0
      %2847 = vmatprep.subr.mxu0 0.0
      %2848 = vmatpush1.msra.mxu0 0.0
      %2849 = vmatprep.subr.mxu0 0.0
      %2850 = vmatpush1.msra.mxu0 0.0
      %2851 = vmatprep.subr.mxu0 0.0
      %2852 = vmatpush1.msra.mxu0 0.0
      %2853 = vmatprep.subr.mxu0 0.0
      %2854 = vmatpush1.msra.mxu0 0.0
      %2855 = vmatprep.subr.mxu0 0.0
      %2856 = vmatpush1.msra.mxu0 0.0
      %2857 = vmatprep.subr.mxu0 0.0
      %2858 = vmatpush1.msra.mxu0 0.0
      %2859 = vmatprep.subr.mxu0 0.0
      %2860 = vmatpush1.msra.mxu0 0.0
      %2861 = vmatprep.subr.mxu0 0.0
      %2862 = vmatpush1.msra.mxu0 0.0
      %2863 = vmatprep.subr.mxu0 0.0
      %2864 = vmatpush1.msra.mxu0 0.0
      %2865 = vmatprep.subr.mxu0 0.0
      %2866 = vmatpush1.msra.mxu0 0.0
      %2867 = vmatprep.subr.mxu0 0.0
      %2868 = vmatpush1.msra.mxu0 0.0
      %2869 = vmatprep.subr.mxu0 0.0
      %2870 = vmatpush1.msra.mxu0 0.0
      %2871 = vmatprep.subr.mxu0 0.0
      %2872 = vmatpush1.msra.mxu0 0.0
      %2873 = vmatprep.subr.mxu0 0.0
      %2874 = vmatpush1.msra.mxu0 0.0
      %2875 = vmatprep.subr.mxu0 0.0
      %2876 = vmatpush1.msra.mxu0 0.0
      %2877 = vmatprep.subr.mxu0 0.0
      %2878 = vmatpush1.msra.mxu0 0.0
      %2879 = vmatprep.subr.mxu0 0.0
      %2880 = vmatpush1.msra.mxu0 0.0
      %2881 = vmatprep.subr.mxu0 0.0
      %2882 = vmatpush1.msra.mxu0 0.0
      %2883 = vmatprep.subr.mxu0 0.0
      %2884 = vmatpush1.msra.mxu0 0.0
      %2885 = vmatprep.subr.mxu0 0.0
      %2886 = vmatpush1.msra.mxu0 0.0
      %2887 = vmatprep.subr.mxu0 0.0
      %2888 = vmatpush1.msra.mxu0 0.0
      %2889 = vmatprep.subr.mxu0 0.0
      %2890 = vmatpush1.msra.mxu0 0.0
      %2891 = vmatprep.subr.mxu0 0.0
      %2892 = vmatpush1.msra.mxu0 0.0
      %2893 = vmatprep.subr.mxu0 0.0
      %2894 = vmatpush1.msra.mxu0 0.0
      %2895 = vmatprep.subr.mxu0 0.0
      %2896 = vmatpush1.msra.mxu0 0.0
      %2897 = vmatprep.mubr.f32.mxu0 0.0
      %2898 = vmatmul.mubr.f32.gmra.mrb[0].mxu0 %v2810
      %v2899 = vpop.f32.mrb[0].mxu0
      %v2900 = vadd.f32 0.0, %v2899
      %v2901 = vpop.f32.mrb[0].mxu0
      %2902 = vmatprep.mubr.f32.mxu0 0.0
      %2903 = vmatmul.mubr.f32.gmra.mrb[0].mxu0 %v2813
      %v2904 = vpop.f32.mrb[0].mxu0
      %v2905 = vadd.f32 0.0, %v2904
      %v2906 = vpop.f32.mrb[0].mxu0
      %2907 = vmatprep.mubr.f32.mxu0 0.0
      %2908 = vmatmul.mubr.f32.gmra.mrb[0].mxu0 %v2816
      %v2909 = vpop.f32.mrb[0].mxu0
      %v2910 = vadd.f32 0.0, %v2909
      %v2911 = vpop.f32.mrb[0].mxu0
      %2912 = vmatprep.mubr.f32.mxu0 0.0
      %2913 = vmatmul.mubr.f32.gmra.mrb[0].mxu0 %v2819
      %v2914 = vpop.f32.mrb[0].mxu0
      %v2915 = vadd.f32 0.0, %v2914
      %v2916 = vpop.f32.mrb[0].mxu0
      %2917 = vmatprep.mubr.f32.mxu0 0.0
      %2918 = vmatmul.mubr.f32.gmra.mrb[0].mxu0 %v2822
      %v2919 = vpop.f32.mrb[0].mxu0
      %v2920 = vadd.f32 0.0, %v2919
      %v2921 = vpop.f32.mrb[0].mxu0
      %2922 = vmatprep.mubr.f32.mxu0 0.0
      %2923 = vmatmul.mubr.f32.gmra.mrb[0].mxu0 %v2825
      %v2924 = vpop.f32.mrb[0].mxu0
      %v2925 = vadd.f32 0.0, %v2924
      %v2926 = vpop.f32.mrb[0].mxu0
      %2927 = vmatprep.mubr.f32.mxu0 0.0
      %2928 = vmatmul.mubr.f32.gmra.mrb[0].mxu0 %v2828
      %v2929 = vpop.f32.mrb[0].mxu0
      %v2930 = vadd.f32 0.0, %v2929
      %v2931 = vpop.f32.mrb[0].mxu0
      %2932 = vmatprep.mubr.f32.mxu0 0.0
      %2933 = vmatmul.mubr.f32.gmra.mrb[0].mxu0 %v2831
      %v2934 = vpop.f32.mrb[0].mxu0
      %v2935 = vadd.f32 0.0, %v2934
      %v2936 = vpop.f32.mrb[0].mxu0
      %2937 = vdwg.mxu0
      %v2938 = vadd.f32 %v2790, %v2900
      %v2939 = vadd.f32 %v2791, %v2905
      %v2940 = vadd.f32 %v2792, %v2910
      %v2941 = vadd.f32 %v2793, %v2915
      %v2942 = vadd.f32 %v2794, %v2920
      %v2943 = vadd.f32 %v2795, %v2925
      %v2944 = vadd.f32 %v2796, %v2930
      %v2945 = vadd.f32 %v2797, %v2935
      %v2946 = vld [vmem:[%s2798 + $0x1] sm:$0xff]
      %v2947 = vld [vmem:[%s2798 + $0x11] sm:$0xff]
      %v2948 = vld [vmem:[%s2798 + $0x21] sm:$0xff]
      %v2949 = vld [vmem:[%s2798 + $0x31] sm:$0xff]
      %v2950 = vld [vmem:[%s2798 + $0x41] sm:$0xff]
      %v2951 = vld [vmem:[%s2798 + $0x51] sm:$0xff]
      %v2952 = vld [vmem:[%s2798 + $0x61] sm:$0xff]
      %v2953 = vld [vmem:[%s2798 + $0x71] sm:$0xff]
      %s2954 = scalar_lea.vmem %s6, 56
      %v2955 = vld [vmem:[%s2954] sm:$0xff]
      %v2957 = vsel %vm1753, %v2946, 0
      %v2960 = vsel %vm1753, %v2947, 0
      %v2963 = vsel %vm1753, %v2948, 0
      %v2966 = vsel %vm1753, %v2949, 0
      %v2969 = vsel %vm1753, %v2950, 0
      %v2972 = vsel %vm1753, %v2951, 0
      %v2975 = vsel %vm1753, %v2952, 0
      %v2978 = vsel %vm1753, %v2953, 0
      %2980 = vmatprep.subr.mxu0 0.0
      %2981 = vmatpush1.msra.mxu0 %v2955
      %2982 = vmatprep.subr.mxu0 0.0
      %2983 = vmatpush1.msra.mxu0 0.0
      %2984 = vmatprep.subr.mxu0 0.0
      %2985 = vmatpush1.msra.mxu0 0.0
      %2986 = vmatprep.subr.mxu0 0.0
      %2987 = vmatpush1.msra.mxu0 0.0
      %2988 = vmatprep.subr.mxu0 0.0
      %2989 = vmatpush1.msra.mxu0 0.0
      %2990 = vmatprep.subr.mxu0 0.0
      %2991 = vmatpush1.msra.mxu0 0.0
      %2992 = vmatprep.subr.mxu0 0.0
      %2993 = vmatpush1.msra.mxu0 0.0
      %2994 = vmatprep.subr.mxu0 0.0
      %2995 = vmatpush1.msra.mxu0 0.0
      %2996 = vmatprep.subr.mxu0 0.0
      %2997 = vmatpush1.msra.mxu0 0.0
      %2998 = vmatprep.subr.mxu0 0.0
      %2999 = vmatpush1.msra.mxu0 0.0
      %3000 = vmatprep.subr.mxu0 0.0
      %3001 = vmatpush1.msra.mxu0 0.0
      %3002 = vmatprep.subr.mxu0 0.0
      %3003 = vmatpush1.msra.mxu0 0.0
      %3004 = vmatprep.subr.mxu0 0.0
      %3005 = vmatpush1.msra.mxu0 0.0
      %3006 = vmatprep.subr.mxu0 0.0
      %3007 = vmatpush1.msra.mxu0 0.0
      %3008 = vmatprep.subr.mxu0 0.0
      %3009 = vmatpush1.msra.mxu0 0.0
      %3010 = vmatprep.subr.mxu0 0.0
      %3011 = vmatpush1.msra.mxu0 0.0
      %3012 = vmatprep.subr.mxu0 0.0
      %3013 = vmatpush1.msra.mxu0 0.0
      %3014 = vmatprep.subr.mxu0 0.0
      %3015 = vmatpush1.msra.mxu0 0.0
      %3016 = vmatprep.subr.mxu0 0.0
      %3017 = vmatpush1.msra.mxu0 0.0
      %3018 = vmatprep.subr.mxu0 0.0
      %3019 = vmatpush1.msra.mxu0 0.0
      %3020 = vmatprep.subr.mxu0 0.0
      %3021 = vmatpush1.msra.mxu0 0.0
      %3022 = vmatprep.subr.mxu0 0.0
      %3023 = vmatpush1.msra.mxu0 0.0
      %3024 = vmatprep.subr.mxu0 0.0
      %3025 = vmatpush1.msra.mxu0 0.0
      %3026 = vmatprep.subr.mxu0 0.0
      %3027 = vmatpush1.msra.mxu0 0.0
      %3028 = vmatprep.subr.mxu0 0.0
      %3029 = vmatpush1.msra.mxu0 0.0
      %3030 = vmatprep.subr.mxu0 0.0
      %3031 = vmatpush1.msra.mxu0 0.0
      %3032 = vmatprep.subr.mxu0 0.0
      %3033 = vmatpush1.msra.mxu0 0.0
      %3034 = vmatprep.subr.mxu0 0.0
      %3035 = vmatpush1.msra.mxu0 0.0
      %3036 = vmatprep.subr.mxu0 0.0
      %3037 = vmatpush1.msra.mxu0 0.0
      %3038 = vmatprep.subr.mxu0 0.0
      %3039 = vmatpush1.msra.mxu0 0.0
      %3040 = vmatprep.subr.mxu0 0.0
      %3041 = vmatpush1.msra.mxu0 0.0
      %3042 = vmatprep.subr.mxu0 0.0
      %3043 = vmatpush1.msra.mxu0 0.0
      %3044 = vmatprep.mubr.f32.mxu0 0.0
      %3045 = vmatmul.mubr.f32.gmra.mrb[0].mxu0 %v2957
      %v3046 = vpop.f32.mrb[0].mxu0
      %v3047 = vadd.f32 0.0, %v3046
      %v3048 = vpop.f32.mrb[0].mxu0
      %3049 = vmatprep.mubr.f32.mxu0 0.0
      %3050 = vmatmul.mubr.f32.gmra.mrb[0].mxu0 %v2960
      %v3051 = vpop.f32.mrb[0].mxu0
      %v3052 = vadd.f32 0.0, %v3051
      %v3053 = vpop.f32.mrb[0].mxu0
      %3054 = vmatprep.mubr.f32.mxu0 0.0
      %3055 = vmatmul.mubr.f32.gmra.mrb[0].mxu0 %v2963
      %v3056 = vpop.f32.mrb[0].mxu0
      %v3057 = vadd.f32 0.0, %v3056
      %v3058 = vpop.f32.mrb[0].mxu0
      %3059 = vmatprep.mubr.f32.mxu0 0.0
      %3060 = vmatmul.mubr.f32.gmra.mrb[0].mxu0 %v2966
      %v3061 = vpop.f32.mrb[0].mxu0
      %v3062 = vadd.f32 0.0, %v3061
      %v3063 = vpop.f32.mrb[0].mxu0
      %3064 = vmatprep.mubr.f32.mxu0 0.0
      %3065 = vmatmul.mubr.f32.gmra.mrb[0].mxu0 %v2969
      %v3066 = vpop.f32.mrb[0].mxu0
      %v3067 = vadd.f32 0.0, %v3066
      %v3068 = vpop.f32.mrb[0].mxu0
      %3069 = vmatprep.mubr.f32.mxu0 0.0
      %3070 = vmatmul.mubr.f32.gmra.mrb[0].mxu0 %v2972
      %v3071 = vpop.f32.mrb[0].mxu0
      %v3072 = vadd.f32 0.0, %v3071
      %v3073 = vpop.f32.mrb[0].mxu0
      %3074 = vmatprep.mubr.f32.mxu0 0.0
      %3075 = vmatmul.mubr.f32.gmra.mrb[0].mxu0 %v2975
      %v3076 = vpop.f32.mrb[0].mxu0
      %v3077 = vadd.f32 0.0, %v3076
      %v3078 = vpop.f32.mrb[0].mxu0
      %3079 = vmatprep.mubr.f32.mxu0 0.0
      %3080 = vmatmul.mubr.f32.gmra.mrb[0].mxu0 %v2978
      %v3081 = vpop.f32.mrb[0].mxu0
      %v3082 = vadd.f32 0.0, %v3081
      %v3083 = vpop.f32.mrb[0].mxu0
      %3084 = vdwg.mxu0
      %v3085 = vadd.f32 %v2938, %v3047
      %v3086 = vadd.f32 %v2939, %v3052
      %v3087 = vadd.f32 %v2940, %v3057
      %v3088 = vadd.f32 %v2941, %v3062
      %v3089 = vadd.f32 %v2942, %v3067
      %v3090 = vadd.f32 %v2943, %v3072
      %v3091 = vadd.f32 %v2944, %v3077
      %v3092 = vadd.f32 %v2945, %v3082
      %v3093 = vld [vmem:[%s2798 + $0x2] sm:$0xff]
      %v3094 = vld [vmem:[%s2798 + $0x12] sm:$0xff]
      %v3095 = vld [vmem:[%s2798 + $0x22] sm:$0xff]
      %v3096 = vld [vmem:[%s2798 + $0x32] sm:$0xff]
      %v3097 = vld [vmem:[%s2798 + $0x42] sm:$0xff]
      %v3098 = vld [vmem:[%s2798 + $0x52] sm:$0xff]
      %v3099 = vld [vmem:[%s2798 + $0x62] sm:$0xff]
      %v3100 = vld [vmem:[%s2798 + $0x72] sm:$0xff]
      %s3101 = scalar_lea.vmem %s6, 64
      %v3102 = vld [vmem:[%s3101] sm:$0xff]
      %v3104 = vsel %vm1753, %v3093, 0
      %v3107 = vsel %vm1753, %v3094, 0
      %v3110 = vsel %vm1753, %v3095, 0
      %v3113 = vsel %vm1753, %v3096, 0
      %v3116 = vsel %vm1753, %v3097, 0
      %v3119 = vsel %vm1753, %v3098, 0
      %v3122 = vsel %vm1753, %v3099, 0
      %v3125 = vsel %vm1753, %v3100, 0
      %3127 = vmatprep.subr.mxu0 0.0
      %3128 = vmatpush1.msra.mxu0 %v3102
      %3129 = vmatprep.subr.mxu0 0.0
      %3130 = vmatpush1.msra.mxu0 0.0
      %3131 = vmatprep.subr.mxu0 0.0
      %3132 = vmatpush1.msra.mxu0 0.0
      %3133 = vmatprep.subr.mxu0 0.0
      %3134 = vmatpush1.msra.mxu0 0.0
      %3135 = vmatprep.subr.mxu0 0.0
      %3136 = vmatpush1.msra.mxu0 0.0
      %3137 = vmatprep.subr.mxu0 0.0
      %3138 = vmatpush1.msra.mxu0 0.0
      %3139 = vmatprep.subr.mxu0 0.0
      %3140 = vmatpush1.msra.mxu0 0.0
      %3141 = vmatprep.subr.mxu0 0.0
      %3142 = vmatpush1.msra.mxu0 0.0
      %3143 = vmatprep.subr.mxu0 0.0
      %3144 = vmatpush1.msra.mxu0 0.0
      %3145 = vmatprep.subr.mxu0 0.0
      %3146 = vmatpush1.msra.mxu0 0.0
      %3147 = vmatprep.subr.mxu0 0.0
      %3148 = vmatpush1.msra.mxu0 0.0
      %3149 = vmatprep.subr.mxu0 0.0
      %3150 = vmatpush1.msra.mxu0 0.0
      %3151 = vmatprep.subr.mxu0 0.0
      %3152 = vmatpush1.msra.mxu0 0.0
      %3153 = vmatprep.subr.mxu0 0.0
      %3154 = vmatpush1.msra.mxu0 0.0
      %3155 = vmatprep.subr.mxu0 0.0
      %3156 = vmatpush1.msra.mxu0 0.0
      %3157 = vmatprep.subr.mxu0 0.0
      %3158 = vmatpush1.msra.mxu0 0.0
      %3159 = vmatprep.subr.mxu0 0.0
      %3160 = vmatpush1.msra.mxu0 0.0
      %3161 = vmatprep.subr.mxu0 0.0
      %3162 = vmatpush1.msra.mxu0 0.0
      %3163 = vmatprep.subr.mxu0 0.0
      %3164 = vmatpush1.msra.mxu0 0.0
      %3165 = vmatprep.subr.mxu0 0.0
      %3166 = vmatpush1.msra.mxu0 0.0
      %3167 = vmatprep.subr.mxu0 0.0
      %3168 = vmatpush1.msra.mxu0 0.0
      %3169 = vmatprep.subr.mxu0 0.0
      %3170 = vmatpush1.msra.mxu0 0.0
      %3171 = vmatprep.subr.mxu0 0.0
      %3172 = vmatpush1.msra.mxu0 0.0
      %3173 = vmatprep.subr.mxu0 0.0
      %3174 = vmatpush1.msra.mxu0 0.0
      %3175 = vmatprep.subr.mxu0 0.0
      %3176 = vmatpush1.msra.mxu0 0.0
      %3177 = vmatprep.subr.mxu0 0.0
      %3178 = vmatpush1.msra.mxu0 0.0
      %3179 = vmatprep.subr.mxu0 0.0
      %3180 = vmatpush1.msra.mxu0 0.0
      %3181 = vmatprep.subr.mxu0 0.0
      %3182 = vmatpush1.msra.mxu0 0.0
      %3183 = vmatprep.subr.mxu0 0.0
      %3184 = vmatpush1.msra.mxu0 0.0
      %3185 = vmatprep.subr.mxu0 0.0
      %3186 = vmatpush1.msra.mxu0 0.0
      %3187 = vmatprep.subr.mxu0 0.0
      %3188 = vmatpush1.msra.mxu0 0.0
      %3189 = vmatprep.subr.mxu0 0.0
      %3190 = vmatpush1.msra.mxu0 0.0
      %3191 = vmatprep.mubr.f32.mxu0 0.0
      %3192 = vmatmul.mubr.f32.gmra.mrb[0].mxu0 %v3104
      %v3193 = vpop.f32.mrb[0].mxu0
      %v3194 = vadd.f32 0.0, %v3193
      %v3195 = vpop.f32.mrb[0].mxu0
      %3196 = vmatprep.mubr.f32.mxu0 0.0
      %3197 = vmatmul.mubr.f32.gmra.mrb[0].mxu0 %v3107
      %v3198 = vpop.f32.mrb[0].mxu0
      %v3199 = vadd.f32 0.0, %v3198
      %v3200 = vpop.f32.mrb[0].mxu0
      %3201 = vmatprep.mubr.f32.mxu0 0.0
      %3202 = vmatmul.mubr.f32.gmra.mrb[0].mxu0 %v3110
      %v3203 = vpop.f32.mrb[0].mxu0
      %v3204 = vadd.f32 0.0, %v3203
      %v3205 = vpop.f32.mrb[0].mxu0
      %3206 = vmatprep.mubr.f32.mxu0 0.0
      %3207 = vmatmul.mubr.f32.gmra.mrb[0].mxu0 %v3113
      %v3208 = vpop.f32.mrb[0].mxu0
      %v3209 = vadd.f32 0.0, %v3208
      %v3210 = vpop.f32.mrb[0].mxu0
      %3211 = vmatprep.mubr.f32.mxu0 0.0
      %3212 = vmatmul.mubr.f32.gmra.mrb[0].mxu0 %v3116
      %v3213 = vpop.f32.mrb[0].mxu0
      %v3214 = vadd.f32 0.0, %v3213
      %v3215 = vpop.f32.mrb[0].mxu0
      %3216 = vmatprep.mubr.f32.mxu0 0.0
      %3217 = vmatmul.mubr.f32.gmra.mrb[0].mxu0 %v3119
      %v3218 = vpop.f32.mrb[0].mxu0
      %v3219 = vadd.f32 0.0, %v3218
      %v3220 = vpop.f32.mrb[0].mxu0
      %3221 = vmatprep.mubr.f32.mxu0 0.0
      %3222 = vmatmul.mubr.f32.gmra.mrb[0].mxu0 %v3122
      %v3223 = vpop.f32.mrb[0].mxu0
      %v3224 = vadd.f32 0.0, %v3223
      %v3225 = vpop.f32.mrb[0].mxu0
      %3226 = vmatprep.mubr.f32.mxu0 0.0
      %3227 = vmatmul.mubr.f32.gmra.mrb[0].mxu0 %v3125
      %v3228 = vpop.f32.mrb[0].mxu0
      %v3229 = vadd.f32 0.0, %v3228
      %v3230 = vpop.f32.mrb[0].mxu0
      %3231 = vdwg.mxu0
      %v3232 = vadd.f32 %v3085, %v3194
      %v3233 = vadd.f32 %v3086, %v3199
      %v3234 = vadd.f32 %v3087, %v3204
      %v3235 = vadd.f32 %v3088, %v3209
      %v3236 = vadd.f32 %v3089, %v3214
      %v3237 = vadd.f32 %v3090, %v3219
      %v3238 = vadd.f32 %v3091, %v3224
      %v3239 = vadd.f32 %v3092, %v3229
      %v3240 = vld [vmem:[%s8] sm:$0x1]
      %v3242 = vlaneseq
      %v3243 = vshrl.u32 %v3242, 7
      %v3244 = vsub.s32 0, %v3243
      %v3245 = vrot.slane %v3240, %v3244
      %v3247 = vadd.f32 %v3232, %v3245
      %v3248 = vadd.f32 %v3233, %v3245
      %v3249 = vadd.f32 %v3234, %v3245
      %v3250 = vadd.f32 %v3235, %v3245
      %v3251 = vadd.f32 %v3236, %v3245
      %v3252 = vadd.f32 %v3237, %v3245
      %v3253 = vadd.f32 %v3238, %v3245
      %v3254 = vadd.f32 %v3239, %v3245
      %v3255 = vmax.f32 %v3247, 0.0
      %v3256 = vmax.f32 %v3248, 0.0
      %v3257 = vmax.f32 %v3249, 0.0
      %v3258 = vmax.f32 %v3250, 0.0
      %v3259 = vmax.f32 %v3251, 0.0
      %v3260 = vmax.f32 %v3252, 0.0
      %v3261 = vmax.f32 %v3253, 0.0
      %v3262 = vmax.f32 %v3254, 0.0
      %3263 = vst.msk [vmem:[%s392] sm:$0xff] %vm1753, %v3255
      %3264 = vst.msk [vmem:[%s392 + $0x8] sm:$0xff] %vm1753, %v3256
      %3265 = vst.msk [vmem:[%s392 + $0x10] sm:$0xff] %vm1753, %v3257
      %3266 = vst.msk [vmem:[%s392 + $0x18] sm:$0xff] %vm1753, %v3258
      %3267 = vst.msk [vmem:[%s392 + $0x20] sm:$0xff] %vm1753, %v3259
      %3268 = vst.msk [vmem:[%s392 + $0x28] sm:$0xff] %vm1753, %v3260
      %3269 = vst.msk [vmem:[%s392 + $0x30] sm:$0xff] %vm1753, %v3261
      %3270 = vst.msk [vmem:[%s392 + $0x38] sm:$0xff] %vm1753, %v3262
      %p3271 = scmp.lt.s32.totalorder %s20, 1
      %s3272 = scalar_select %p3271, %s20, 1
      %s3273 = smul.addr %s3272, 8
      %s3274 = smul.addr %s3273, 8
      %s3275 = scalar_lea.vmem %s9, %s3274
      // Predicated region
      $region57: #{tpu_custom_call.1} parent=55 // pred_check
        %p3276 = pneg %p247
      $region58: #{tpu_custom_call.1} parent=55 // pred_check_branch
        %3278 = sbr.rel (%p3276) target = $region60
      $region59: #{tpu_custom_call.1} parent=55 // pred_region
        _
      $region60: #{tpu_custom_call.1} parent=55 // pred_fallthru
        _
    $region56: #{tpu_custom_call.1} parent=5 // pred_fallthru
      _
    %p3279 = scmp.le.s32.totalorder 2, %s15
    // Predicated region
    $region61: #{tpu_custom_call.1} parent=5 // pred_check
      %p3280 = pneg %p3279
    $region62: #{tpu_custom_call.1} parent=5 // pred_check_branch
      %3282 = sbr.rel (%p3280) target = $region64
    $region63: #{tpu_custom_call.1} parent=5 // pred_region
      %s3283 = ssub.s32 %s15, 2
      // Predicated region
      $region65: #{tpu_custom_call.1} parent=63 // pred_check
        %p3284 = pneg %p253
      $region66: #{tpu_custom_call.1} parent=63 // pred_check_branch
        %3286 = sbr.rel (%p3284) target = $region68
      $region67: #{tpu_custom_call.1} parent=63 // pred_region
        %p3287 = scmp.lt.s32.totalorder %s21, 1
        %s3288 = scalar_select %p3287, %s21, 1
        %s3289 = smul.addr %s3288, 8
        %s3290 = smul.addr %s3289, 8
        %s3291 = scalar_lea.vmem %s9, %s3290
      $region68: #{tpu_custom_call.1} parent=63 // pred_fallthru
        _
    $region64: #{tpu_custom_call.1} parent=5 // pred_fallthru
      _
  $region6: #{tpu_custom_call.1} parent=0 // loop_footer
    %s19 = sadd.s32 1, %s15
  $region7: #{tpu_custom_call.1} parent=0 // loop_footer_branch
    %14 = sbr.rel target = $region3
  $region8: #{tpu_custom_call.1} parent=0 // loop_exit
    _

</llo_original>
